<compile_context>
chip_gen: v6e
topology: v6e:2x2x1
jax: 0.10.0
libtpu: 0.0.40
codegen_flags: <defaults>
</compile_context>

<pallas_src>
import functools

import jax
import jax.numpy as jnp
from jax.experimental import pallas as pl
from jax.experimental.pallas import tpu as pltpu


def _round_up(x, m):
    return (x + m - 1) // m * m


def _pick_rows_tile(m, cap=512):
    """Row tile for a flattened (M, C) activation: multiple of 8, divides the
    (8-padded) row count, and prefers >= 2 grid steps (megacore / pipelining)."""
    m8 = _round_up(m, 8)
    cap = max(8, min(cap, m8))
    for tm in range(cap, 7, -8):
        if m8 % tm == 0 and m8 // tm >= 2:
            return tm, m8
    for tm in range(cap, 7, -8):
        if m8 % tm == 0:
            return tm, m8
    return cap, _round_up(m8, cap)


def _pick_row_block(h, w, cap=128):
    """Output-row block (th image rows -> th*w matmul rows) for the 3x3 conv;
    th divides H and th*W <= cap (vreg-pressure bound) whenever possible."""
    best = 1
    for th in range(1, h + 1):
        if h % th == 0 and th * w <= cap:
            best = th
    return best


# ----------------------------------------------------------------------------
# Kernel 1: 1x1 conv as a matmul with fused per-channel BN batch statistics.
#   grid = (i over M tiles, j over Cout tiles), both parallel.
#   Partial colsum / colsumsq per M tile are reduced outside (tiny).
# ----------------------------------------------------------------------------
def _conv1x1_kernel(x_ref, w_ref, y_ref, s_ref, q_ref):
    a = x_ref[...].astype(jnp.bfloat16)            # cast in-kernel (hidden under MXU)
    t = jnp.dot(a, w_ref[...], preferred_element_type=jnp.float32)
    y_ref[...] = t.astype(y_ref.dtype)
    s_ref[0] = jnp.sum(t, axis=0, keepdims=True)
    q_ref[0] = jnp.sum(t * t, axis=0, keepdims=True)


def conv1x1_bnstats(x_flat, w):
    """x_flat: (M, C) f32.  w: (C, Np) bf16, output channels padded to 128.

    Returns y (Mp, Np) bf16 and per-M-tile partial colsum / colsumsq of shape
    (num_m_tiles, 1, Np) f32 (padded rows contribute exactly zero).
    """
    m, c = x_flat.shape
    cw, np_ = w.shape
    assert cw == c
    tm, mp = _pick_rows_tile(m, cap=256)
    tn = 256 if np_ % 256 == 0 else 128
    ni, nj = mp // tm, np_ // tn
    x_p = jnp.pad(x_flat, ((0, mp - m), (0, 0)))   # no-op when mp == m

    y, s, q = pl.pallas_call(
        _conv1x1_kernel,
        out_shape=(jax.ShapeDtypeStruct((mp, np_), jnp.bfloat16),
                   jax.ShapeDtypeStruct((ni, 1, np_), jnp.float32),
                   jax.ShapeDtypeStruct((ni, 1, np_), jnp.float32)),
        grid_spec=pltpu.PrefetchScalarGridSpec(
            num_scalar_prefetch=0,
            grid=(ni, nj),
            in_specs=[
                pl.BlockSpec((tm, c), lambda i, j: (i, 0)),     # full-K block
                pl.BlockSpec((c, tn), lambda i, j: (0, j)),
            ],
            out_specs=[
                pl.BlockSpec((tm, tn), lambda i, j: (i, j)),
                pl.BlockSpec((1, 1, tn), lambda i, j: (i, 0, j)),
                pl.BlockSpec((1, 1, tn), lambda i, j: (i, 0, j)),
            ]),
        compiler_params=pltpu.CompilerParams(
            dimension_semantics=("parallel", "parallel"),
            vmem_limit_bytes=32 * 1024 * 1024),
    )(x_p, w)
    return y, s, q


# ----------------------------------------------------------------------------
# Kernel 2: implicit-im2col 3x3 conv (stride 1, pad 1) with fused BN stats.
#   Input is the *un-duplicated* spatially padded NHWC plane (bf16).  Per grid
#   step a small (th+2)*W x 3*Cp1 im2col slab is built in VMEM (column taps
#   only); the 3 row taps are row-offset slices of that slab -> 3 dots with
#   K = 3*Cp1.  grid = (n, j over Cout tiles, r over row tiles), all parallel.
# ----------------------------------------------------------------------------
def _conv3x3_kernel(x_ref, w_ref, y_ref, s_ref, q_ref, im2col, *, th, W, Cp1):
    r = pl.program_id(2)
    row0 = r * th
    # Build the column-tap ("kw") expanded slab in VMEM; the 3x duplication
    # never touches HBM.  (th+2)*3 small vector copies, hidden under the MXU.
    for t in range(th + 2):
        for kw in range(3):
            im2col[t * W:(t + 1) * W, kw * Cp1:(kw + 1) * Cp1] = (
                x_ref[0, row0 + t, kw:kw + W, :])
    acc = jnp.dot(im2col[0:th * W, :], w_ref[0],
                  preferred_element_type=jnp.float32)
    acc += jnp.dot(im2col[W:W + th * W, :], w_ref[1],
                   preferred_element_type=jnp.float32)
    acc += jnp.dot(im2col[2 * W:2 * W + th * W, :], w_ref[2],
                   preferred_element_type=jnp.float32)
    y_ref[0] = acc.astype(y_ref.dtype)
    s_ref[0] = jnp.sum(acc, axis=0, keepdims=True)
    q_ref[0] = jnp.sum(acc * acc, axis=0, keepdims=True)


def conv3x3_bnstats(xpad, w2):
    """xpad: (N, H+2, W+2, Cp1) bf16 activated y1, zero spatial border and zero
    pad channels.  w2: (3, 3*Cp1, Np) bf16, laid out [kh][kw*Cp1 + ci][co].

    Returns y (N, H*W, Np) bf16 and per-(image, row-tile) partial channel
    sums / sums-of-squares of shape (N*num_r, 1, Np) f32.
    """
    n, hp2, wp2, cp1 = xpad.shape
    h, w = hp2 - 2, wp2 - 2
    _, k2, np_ = w2.shape
    assert k2 == 3 * cp1
    th = _pick_row_block(h, w, cap=128)
    num_r = h // th
    tn = 256 if np_ % 256 == 0 else 128
    nj = np_ // tn
    kern = functools.partial(_conv3x3_kernel, th=th, W=w, Cp1=cp1)

    y, s, q = pl.pallas_call(
        kern,
        out_shape=(jax.ShapeDtypeStruct((n, h * w, np_), jnp.bfloat16),
                   jax.ShapeDtypeStruct((n * num_r, 1, np_), jnp.float32),
                   jax.ShapeDtypeStruct((n * num_r, 1, np_), jnp.float32)),
        grid_spec=pltpu.PrefetchScalarGridSpec(
            num_scalar_prefetch=0,
            grid=(n, nj, num_r),
            in_specs=[
                pl.BlockSpec((1, hp2, wp2, cp1), lambda ni, j, r: (ni, 0, 0, 0)),
                pl.BlockSpec((3, 3 * cp1, tn), lambda ni, j, r: (0, 0, j)),
            ],
            out_specs=[
                pl.BlockSpec((1, th * w, tn), lambda ni, j, r: (ni, r, j)),
                pl.BlockSpec((1, 1, tn),
                             lambda ni, j, r: (ni * num_r + r, 0, j)),
                pl.BlockSpec((1, 1, tn),
                             lambda ni, j, r: (ni * num_r + r, 0, j)),
            ],
            scratch_shapes=[
                pltpu.VMEM(((th + 2) * w, 3 * cp1), jnp.bfloat16)]),
        compiler_params=pltpu.CompilerParams(
            dimension_semantics=("parallel", "parallel", "parallel"),
            vmem_limit_bytes=32 * 1024 * 1024),
    )(xpad, w2)
    return y, s, q


# ----------------------------------------------------------------------------
# Kernel 3: fused BN-apply + LeakyReLU(0.1)  (+ optional residual add)
# ----------------------------------------------------------------------------
def _bn_act_kernel(y_ref, sc_ref, sh_ref, o_ref):
    z = y_ref[...].astype(jnp.float32) * sc_ref[...] + sh_ref[...]
    o_ref[...] = jnp.where(z >= 0.0, z, 0.1 * z).astype(o_ref.dtype)


def _bn_act_add_kernel(y_ref, sc_ref, sh_ref, r_ref, y2_ref, o_ref, *, C, Cp):
    z = y_ref[...].astype(jnp.float32) * sc_ref[...] + sh_ref[...]
    act = jnp.where(z >= 0.0, z, 0.1 * z)
    y2_ref[...] = act
    res = r_ref[...]
    if C < Cp:  # pad residual to the 128-lane width in-kernel (no HBM pad copy)
        res = jnp.concatenate(
            [res, jnp.zeros((res.shape[0], Cp - C), jnp.float32)], axis=-1)
    o_ref[...] = act + res


def bn_leaky(y, scale, shift):
    """BN-apply + LeakyReLU; bf16 in, bf16 out (feeds the 3x3 conv directly)."""
    m, cp = y.shape
    tm, mp = _pick_rows_tile(m, cap=512)
    y_p = jnp.pad(y, ((0, mp - m), (0, 0)))
    out = pl.pallas_call(
        _bn_act_kernel,
        out_shape=jax.ShapeDtypeStruct((mp, cp), jnp.bfloat16),
        grid_spec=pltpu.PrefetchScalarGridSpec(
            num_scalar_prefetch=0, grid=(mp // tm,),
            in_specs=[pl.BlockSpec((tm, cp), lambda i: (i, 0)),
                      pl.BlockSpec((1, cp), lambda i: (0, 0)),
                      pl.BlockSpec((1, cp), lambda i: (0, 0))],
            out_specs=pl.BlockSpec((tm, cp), lambda i: (i, 0))),
        compiler_params=pltpu.CompilerParams(dimension_semantics=("parallel",)),
    )(y_p, scale, shift)
    return out[:m]


def bn_leaky_add(y, scale, shift, residual):
    """(leaky(bn(y)), leaky(bn(y)) + residual).  y: (M, Cp) bf16; residual:
    (M, C) f32 at its true channel count (lane padding done in-kernel)."""
    m, cp = y.shape
    _, c = residual.shape
    tm, mp = _pick_rows_tile(m, cap=512)
    y_p = jnp.pad(y, ((0, mp - m), (0, 0)))
    r_p = jnp.pad(residual, ((0, mp - m), (0, 0)))
    kern = functools.partial(_bn_act_add_kernel, C=c, Cp=cp)
    pre, post = pl.pallas_call(
        kern,
        out_shape=(jax.ShapeDtypeStruct((mp, cp), jnp.float32),
                   jax.ShapeDtypeStruct((mp, cp), jnp.float32)),
        grid_spec=pltpu.PrefetchScalarGridSpec(
            num_scalar_prefetch=0, grid=(mp // tm,),
            in_specs=[pl.BlockSpec((tm, cp), lambda i: (i, 0)),
                      pl.BlockSpec((1, cp), lambda i: (0, 0)),
                      pl.BlockSpec((1, cp), lambda i: (0, 0)),
                      pl.BlockSpec((tm, c), lambda i: (i, 0))],
            out_specs=[pl.BlockSpec((tm, cp), lambda i: (i, 0)),
                       pl.BlockSpec((tm, cp), lambda i: (i, 0))]),
        compiler_params=pltpu.CompilerParams(dimension_semantics=("parallel",)),
    )(y_p, scale, shift, r_p)
    return pre[:m], post[:m]


def _bn_scale_shift(psum, psumsq, count, gamma, beta, eps=1e-5):
    # Partial per-tile sums -> batch mean / biased variance (training-mode BN).
    # NOTE: E[x^2]-E[x]^2 in f32 can cancel for extremely large counts; fine at
    # residual-block sizes (stats are accumulated in f32 inside the kernels).
    s = jnp.sum(psum, axis=0)        # (1, Cp)
    q = jnp.sum(psumsq, axis=0)      # (1, Cp)
    mean = s / count
    var = jnp.maximum(q / count - mean * mean, 0.0)
    scale = gamma * jax.lax.rsqrt(var + eps)
    shift = beta - mean * scale
    return scale, shift


# ----------------------------------------------------------------------------
# Parameters (PyTorch layout) + one-time repack into kernel-friendly layout
# ----------------------------------------------------------------------------
def init_residual_block_params(key, channels_in):
    C = channels_in
    Cmid = C // 2
    k1, k2, k3, k4, k5, k6 = jax.random.split(key, 6)
    return {
        "conv1": dict(
            w=0.1 * jax.random.normal(k1, (Cmid, C, 1, 1), jnp.float32),
            gamma=1.0 + 0.1 * jax.random.normal(k2, (Cmid,), jnp.float32),
            beta=0.05 * jax.random.normal(k3, (Cmid,), jnp.float32)),
        "conv2": dict(
            w=0.05 * jax.random.normal(k4, (C, Cmid, 3, 3), jnp.float32),
            gamma=1.0 + 0.1 * jax.random.normal(k5, (C,), jnp.float32),
            beta=0.05 * jax.random.normal(k6, (C,), jnp.float32)),
    }


def prepare_params(params):
    """Pre-transpose / pre-pad / bf16-cast weights once (out of the fwd path)."""
    p1, p2 = params["conv1"], params["conv2"]

    # conv1: (Cmid, C, 1, 1) -> (C, Np1) bf16; BN params padded to Np1.
    cmid, c, _, _ = p1["w"].shape
    np1 = _round_up(cmid, 128)
    w1 = jnp.pad(p1["w"][:, :, 0, 0].T, ((0, 0), (0, np1 - cmid)))
    g1 = jnp.pad(p1["gamma"], (0, np1 - cmid)).reshape(1, np1)
    b1 = jnp.pad(p1["beta"], (0, np1 - cmid)).reshape(1, np1)

    # conv2: (C, Cmid, 3, 3) -> (3, 3*Cp1, Np2), [kh][kw*Cp1 + ci][co].  The ci
    # axis is padded to Cp1 = Np1 so y1 keeps its 128-padded channel layout
    # end-to-end (no lane-narrow slice between the two convs).
    cout, cmid2, kh_, kw_ = p2["w"].shape
    cp1 = np1
    np2 = _round_up(cout, 128)
    w2 = jnp.transpose(p2["w"], (2, 3, 1, 0))              # (KH, KW, Cin, Cout)
    w2 = jnp.pad(w2, ((0, 0), (0, 0), (0, cp1 - cmid2), (0, np2 - cout)))
    w2 = w2.reshape(kh_, kw_ * cp1, np2)
    g2 = jnp.pad(p2["gamma"], (0, np2 - cout)).reshape(1, np2)
    b2 = jnp.pad(p2["beta"], (0, np2 - cout)).reshape(1, np2)

    return {"conv1": {"wmat": w1.astype(jnp.bfloat16), "gamma": g1, "beta": b1},
            "conv2": {"wmat": w2.astype(jnp.bfloat16), "gamma": g2, "beta": b2}}


# ----------------------------------------------------------------------------
# ResidualBlock forward
# ----------------------------------------------------------------------------
@jax.jit
def residual_block_forward(x, kparams):
    N, C, H, W = x.shape
    Cmid = C // 2
    p1, p2 = kparams["conv1"], kparams["conv2"]
    np1 = p1["wmat"].shape[1]
    np2 = p2["wmat"].shape[2]
    M = N * H * W

    xh = jnp.transpose(x, (0, 2, 3, 1))              # NCHW -> NHWC, once
    x_flat = xh.reshape(M, C)

    # ---- ConvBlock 1: 1x1 conv (+ fused BN batch stats) -> BN + LeakyReLU ----
    y1r, s1, q1 = conv1x1_bnstats(x_flat, p1["wmat"])
    sc1, sh1 = _bn_scale_shift(s1, q1, M, p1["gamma"], p1["beta"])
    y1act = bn_leaky(y1r, sc1, sh1)[:M]              # (M, Np1) bf16

    # ---- ConvBlock 2: 3x3 conv pad=1 (+ fused stats) -> BN + LeakyReLU + add
    # Spatial zero-pad of the *activated* y1 only (pad channels are exactly 0).
    y1p = jnp.pad(y1act.reshape(N, H, W, np1),
                  ((0, 0), (1, 1), (1, 1), (0, 0)))
    y2r, s2, q2 = conv3x3_bnstats(y1p, p2["wmat"])
    sc2, sh2 = _bn_scale_shift(s2, q2, M, p2["gamma"], p2["beta"])
    y2, out = bn_leaky_add(y2r.reshape(M, np2), sc2, sh2, x_flat)

    def to_nchw(t, ch):
        return (t[:, :ch].astype(jnp.float32)
                .reshape(N, H, W, ch).transpose(0, 3, 1, 2))

    y1_o, y2_o, out_o = to_nchw(y1act, Cmid), to_nchw(y2, C), to_nchw(out, C)
    return out_o, [y1_o, y2_o, out_o]


# ----------------------------------------------------------------------------
# Pure-JAX (dtype-matched) reference for validation
# ----------------------------------------------------------------------------
@jax.jit
def reference_forward(x, params):
    eps = 1e-5

    def conv_bn_leaky(inp, w, gamma, beta, pad):
        y = jax.lax.conv_general_dilated(
            inp.astype(jnp.bfloat16), w.astype(jnp.bfloat16),
            window_strides=(1, 1), padding=[(pad, pad), (pad, pad)],
            dimension_numbers=("NCHW", "OIHW", "NCHW"),
            preferred_element_type=jnp.float32)
        mean = jnp.mean(y, axis=(0, 2, 3), keepdims=True)
        var = jnp.var(y, axis=(0, 2, 3), keepdims=True)
        z = (y - mean) * jax.lax.rsqrt(var + eps)
        z = z * gamma.reshape(1, -1, 1, 1) + beta.reshape(1, -1, 1, 1)
        return jnp.where(z >= 0.0, z, 0.1 * z)

    p1, p2 = params["conv1"], params["conv2"]
    y1 = conv_bn_leaky(x, p1["w"], p1["gamma"], p1["beta"], 0)
    y2 = conv_bn_leaky(y1, p2["w"], p2["gamma"], p2["beta"], 1)
    out = y2 + x
    return out, [y1, y2, out]


# ----------------------------------------------------------------------------
if __name__ == "__main__":
    key = jax.random.PRNGKey(0)
    kx, kp = jax.random.split(key)

    N, C, H, W = 2, 64, 16, 16
    x = jax.random.normal(kx, (N, C, H, W), jnp.float32)

    params = init_residual_block_params(kp, C)
    kparams = prepare_params(params)

    out, layer_outputs = residual_block_forward(x, kparams)
    out = jax.block_until_ready(out)

    assert out.shape == (N, C, H, W), out.shape
    assert len(layer_outputs) == 3
    assert layer_outputs[0].shape == (N, C // 2, H, W)
    assert layer_outputs[1].shape == (N, C, H, W)
    assert layer_outputs[2].shape == (N, C, H, W)
    assert all(bool(jnp.all(jnp.isfinite(o))) for o in layer_outputs)

    # dtype-matched pure-JAX reference (bf16 conv operands, f32 accumulation)
    ref_out, ref_layers = reference_forward(x, params)
    for got, ref in zip(layer_outputs, ref_layers):
        err = float(jnp.max(jnp.abs(got - ref) / (1.0 + jnp.abs(ref))))
        assert err < 1e-1, f"mismatch: {err}"

    print("KERNEL_OK")
</pallas_src>

<mosaic_0001>
module attributes {stable_mosaic.version = 11 : i64} {
  func.func @_bn_act_kernel(%arg0: i32, %arg1: memref<256x128xbf16, #tpu.memory_space<vmem>>, %arg2: memref<1x128xf32, #tpu.memory_space<vmem>>, %arg3: memref<1x128xf32, #tpu.memory_space<vmem>>, %arg4: memref<256x128xbf16, #tpu.memory_space<vmem>>) attributes {dimension_semantics = [#tpu.dimension_semantics<parallel>], iteration_bounds = array<i64: 2>, scalar_prefetch = 0 : i64, scratch_operands = 0 : i64, tpu.core_type = #tpu.core_type<tc>, window_params = [{transform_indices = @transform_0, window_bounds = array<i64: 256, 128>}, {pipeline_mode = #tpu.pipeline_mode<synchronous>, transform_indices = @transform_1, window_bounds = array<i64: 1, 128>}, {pipeline_mode = #tpu.pipeline_mode<synchronous>, transform_indices = @transform_2, window_bounds = array<i64: 1, 128>}, {transform_indices = @transform_3, window_bounds = array<i64: 256, 128>}]} {
    %c0 = arith.constant 0 : index
    %c0_0 = arith.constant 0 : index
    %0 = vector.load %arg1[%c0, %c0_0] : memref<256x128xbf16, #tpu.memory_space<vmem>>, vector<256x128xbf16>
    %1 = arith.extf %0 : vector<256x128xbf16> to vector<256x128xf32>
    %c0_1 = arith.constant 0 : index
    %c0_2 = arith.constant 0 : index
    %2 = vector.load %arg2[%c0_1, %c0_2] : memref<1x128xf32, #tpu.memory_space<vmem>>, vector<1x128xf32>
    %3 = vector.broadcast %2 : vector<1x128xf32> to vector<256x128xf32>
    %4 = arith.mulf %1, %3 : vector<256x128xf32>
    %c0_3 = arith.constant 0 : index
    %c0_4 = arith.constant 0 : index
    %5 = vector.load %arg3[%c0_3, %c0_4] : memref<1x128xf32, #tpu.memory_space<vmem>>, vector<1x128xf32>
    %6 = vector.broadcast %5 : vector<1x128xf32> to vector<256x128xf32>
    %7 = arith.addf %4, %6 : vector<256x128xf32>
    %cst = arith.constant 0.000000e+00 : f32
    %8 = vector.broadcast %cst : f32 to vector<256x128xf32>
    %9 = arith.cmpf oge, %7, %8 : vector<256x128xf32>
    %cst_5 = arith.constant 1.000000e-01 : f32
    %10 = vector.broadcast %cst_5 : f32 to vector<256x128xf32>
    %11 = arith.mulf %10, %7 : vector<256x128xf32>
    %12 = arith.select %9, %7, %11 : vector<256x128xi1>, vector<256x128xf32>
    %13 = arith.truncf %12 : vector<256x128xf32> to vector<256x128xbf16>
    %c0_6 = arith.constant 0 : index
    %c0_7 = arith.constant 0 : index
    %14 = vector.load %arg4[%c0_6, %c0_7] : memref<256x128xbf16, #tpu.memory_space<vmem>>, vector<256x128xbf16>
    tpu.vector_store %arg4[%c0_6, %c0_7], %13 {strides = array<i32>} : memref<256x128xbf16, #tpu.memory_space<vmem>>, vector<256x128xbf16>,
    return
  }
  func.func @transform_0(%arg0: i32) -> (i32, i32) {
    %c0_i32 = arith.constant 0 : i32
    %c0_i32_0 = arith.constant 0 : i32
    return %arg0, %c0_i32 : i32, i32
  }
  func.func @transform_1(%arg0: i32) -> (i32, i32) {
    %c0_i32 = arith.constant 0 : i32
    %c0_i32_0 = arith.constant 0 : i32
    %c0_i32_1 = arith.constant 0 : i32
    return %c0_i32, %c0_i32_0 : i32, i32
  }
  func.func @transform_2(%arg0: i32) -> (i32, i32) {
    %c0_i32 = arith.constant 0 : i32
    %c0_i32_0 = arith.constant 0 : i32
    %c0_i32_1 = arith.constant 0 : i32
    return %c0_i32, %c0_i32_0 : i32, i32
  }
  func.func @transform_3(%arg0: i32) -> (i32, i32) {
    %c0_i32 = arith.constant 0 : i32
    %c0_i32_0 = arith.constant 0 : i32
    return %arg0, %c0_i32 : i32, i32
  }
}

module attributes {stable_mosaic.version = 11 : i64} {
  func.func @_conv1x1_kernel(%arg0: i32, %arg1: i32, %arg2: memref<256x64xf32, #tpu.memory_space<vmem>>, %arg3: memref<64x128xbf16, #tpu.memory_space<vmem>>, %arg4: memref<256x128xbf16, #tpu.memory_space<vmem>>, %arg5: memref<1x1x128xf32, #tpu.memory_space<vmem>>, %arg6: memref<1x1x128xf32, #tpu.memory_space<vmem>>) attributes {dimension_semantics = [#tpu.dimension_semantics<parallel>, #tpu.dimension_semantics<parallel>], iteration_bounds = array<i64: 2, 1>, scalar_prefetch = 0 : i64, scratch_operands = 0 : i64, tpu.core_type = #tpu.core_type<tc>, window_params = [{transform_indices = @transform_0, window_bounds = array<i64: 256, 64>}, {transform_indices = @transform_1, window_bounds = array<i64: 64, 128>}, {transform_indices = @transform_2, window_bounds = array<i64: 256, 128>}, {transform_indices = @transform_3, window_bounds = array<i64: 1, 1, 128>}, {transform_indices = @transform_4, window_bounds = array<i64: 1, 1, 128>}]} {
    %c0 = arith.constant 0 : index
    %c0_0 = arith.constant 0 : index
    %0 = vector.load %arg2[%c0, %c0_0] : memref<256x64xf32, #tpu.memory_space<vmem>>, vector<256x64xf32>
    %1 = arith.truncf %0 : vector<256x64xf32> to vector<256x64xbf16>
    %c0_1 = arith.constant 0 : index
    %c0_2 = arith.constant 0 : index
    %2 = vector.load %arg3[%c0_1, %c0_2] : memref<64x128xbf16, #tpu.memory_space<vmem>>, vector<64x128xbf16>
    %cst = arith.constant dense<0.000000e+00> : vector<256x128xf32>
    %3 = tpu.matmul %1, %2, %cst {dimension_numbers = #tpu.dot_dimension_numbers<[1], [0], [0], [1], [0, 0, 1, 1], [], []>} : vector<256x64xbf16>, vector<64x128xbf16>, vector<256x128xf32> -> vector<256x128xf32>
    %4 = arith.truncf %3 : vector<256x128xf32> to vector<256x128xbf16>
    %c0_3 = arith.constant 0 : index
    %c0_4 = arith.constant 0 : index
    %5 = vector.load %arg4[%c0_3, %c0_4] : memref<256x128xbf16, #tpu.memory_space<vmem>>, vector<256x128xbf16>
    tpu.vector_store %arg4[%c0_3, %c0_4], %4 {strides = array<i32>} : memref<256x128xbf16, #tpu.memory_space<vmem>>, vector<256x128xbf16>,
    %cst_5 = arith.constant dense<0.000000e+00> : vector<128xf32>
    %6 = vector.multi_reduction <add>, %3, %cst_5 [0] : vector<256x128xf32> to vector<128xf32>
    %7 = vector.shape_cast %6 : vector<128xf32> to vector<1x128xf32>
    %c0_6 = arith.constant 0 : index
    %c0_7 = arith.constant 0 : index
    %c0_8 = arith.constant 0 : index
    %8 = vector.load %arg5[%c0_6, %c0_7, %c0_8] : memref<1x1x128xf32, #tpu.memory_space<vmem>>, vector<1x1x128xf32>
    %9 = vector.shape_cast %8 : vector<1x1x128xf32> to vector<1x128xf32>
    %10 = vector.shape_cast %7 : vector<1x128xf32> to vector<1x1x128xf32>
    tpu.vector_store %arg5[%c0_6, %c0_7, %c0_8], %10 {strides = array<i32>} : memref<1x1x128xf32, #tpu.memory_space<vmem>>, vector<1x1x128xf32>,
    %11 = arith.mulf %3, %3 : vector<256x128xf32>
    %cst_9 = arith.constant dense<0.000000e+00> : vector<128xf32>
    %12 = vector.multi_reduction <add>, %11, %cst_9 [0] : vector<256x128xf32> to vector<128xf32>
    %13 = vector.shape_cast %12 : vector<128xf32> to vector<1x128xf32>
    %c0_10 = arith.constant 0 : index
    %c0_11 = arith.constant 0 : index
    %c0_12 = arith.constant 0 : index
    %14 = vector.load %arg6[%c0_10, %c0_11, %c0_12] : memref<1x1x128xf32, #tpu.memory_space<vmem>>, vector<1x1x128xf32>
    %15 = vector.shape_cast %14 : vector<1x1x128xf32> to vector<1x128xf32>
    %16 = vector.shape_cast %13 : vector<1x128xf32> to vector<1x1x128xf32>
    tpu.vector_store %arg6[%c0_10, %c0_11, %c0_12], %16 {strides = array<i32>} : memref<1x1x128xf32, #tpu.memory_space<vmem>>, vector<1x1x128xf32>,
    return
  }
  func.func @transform_0(%arg0: i32, %arg1: i32) -> (i32, i32) {
    %c0_i32 = arith.constant 0 : i32
    %c0_i32_0 = arith.constant 0 : i32
    return %arg0, %c0_i32 : i32, i32
  }
  func.func @transform_1(%arg0: i32, %arg1: i32) -> (i32, i32) {
    %c0_i32 = arith.constant 0 : i32
    %c0_i32_0 = arith.constant 0 : i32
    return %c0_i32, %arg1 : i32, i32
  }
  func.func @transform_2(%arg0: i32, %arg1: i32) -> (i32, i32) {
    %c0_i32 = arith.constant 0 : i32
    return %arg0, %arg1 : i32, i32
  }
  func.func @transform_3(%arg0: i32, %arg1: i32) -> (i32, i32, i32) {
    %c0_i32 = arith.constant 0 : i32
    %c0_i32_0 = arith.constant 0 : i32
    return %arg0, %c0_i32, %arg1 : i32, i32, i32
  }
  func.func @transform_4(%arg0: i32, %arg1: i32) -> (i32, i32, i32) {
    %c0_i32 = arith.constant 0 : i32
    %c0_i32_0 = arith.constant 0 : i32
    return %arg0, %c0_i32, %arg1 : i32, i32, i32
  }
}

module attributes {stable_mosaic.version = 11 : i64} {
  func.func @_conv3x3_kernel(%arg0: i32, %arg1: i32, %arg2: i32, %arg3: memref<1x18x18x128xbf16, #tpu.memory_space<vmem>>, %arg4: memref<3x384x128xbf16, #tpu.memory_space<vmem>>, %arg5: memref<1x128x128xbf16, #tpu.memory_space<vmem>>, %arg6: memref<1x1x128xf32, #tpu.memory_space<vmem>>, %arg7: memref<1x1x128xf32, #tpu.memory_space<vmem>>, %arg8: memref<160x384xbf16, #tpu.memory_space<vmem>>) attributes {dimension_semantics = [#tpu.dimension_semantics<parallel>, #tpu.dimension_semantics<parallel>, #tpu.dimension_semantics<parallel>], iteration_bounds = array<i64: 2, 1, 2>, scalar_prefetch = 0 : i64, scratch_operands = 1 : i64, tpu.core_type = #tpu.core_type<tc>, window_params = [{transform_indices = @transform_0, window_bounds = array<i64: 1, 18, 18, 128>}, {transform_indices = @transform_1, window_bounds = array<i64: 3, 384, 128>}, {transform_indices = @transform_2, window_bounds = array<i64: 1, 128, 128>}, {transform_indices = @transform_3, window_bounds = array<i64: 1, 1, 128>}, {transform_indices = @transform_4, window_bounds = array<i64: 1, 1, 128>}]} {
    %c8_i32 = arith.constant 8 : i32
    %0 = arith.muli %arg2, %c8_i32 : i32
    %c0_i32 = arith.constant 0 : i32
    %1 = arith.addi %0, %c0_i32 : i32
    %c0 = arith.constant 0 : index
    %2 = arith.index_cast %1 : i32 to index
    %c0_0 = arith.constant 0 : index
    %c0_1 = arith.constant 0 : index
    %3 = vector.load %arg3[%c0, %2, %c0_0, %c0_1] : memref<1x18x18x128xbf16, #tpu.memory_space<vmem>>, vector<1x1x16x128xbf16>
    %4 = vector.shape_cast %3 : vector<1x1x16x128xbf16> to vector<16x128xbf16>
    %c0_2 = arith.constant 0 : index
    %c0_3 = arith.constant 0 : index
    %5 = vector.load %arg8[%c0_2, %c0_3] : memref<160x384xbf16, #tpu.memory_space<vmem>>, vector<16x128xbf16>
    tpu.vector_store %arg8[%c0_2, %c0_3], %4 {strides = array<i32>} : memref<160x384xbf16, #tpu.memory_space<vmem>>, vector<16x128xbf16>,
    %c0_i32_4 = arith.constant 0 : i32
    %6 = arith.addi %0, %c0_i32_4 : i32
    %c0_5 = arith.constant 0 : index
    %7 = arith.index_cast %6 : i32 to index
    %c1 = arith.constant 1 : index
    %c0_6 = arith.constant 0 : index
    %8 = vector.load %arg3[%c0_5, %7, %c1, %c0_6] : memref<1x18x18x128xbf16, #tpu.memory_space<vmem>>, vector<1x1x16x128xbf16>
    %9 = vector.shape_cast %8 : vector<1x1x16x128xbf16> to vector<16x128xbf16>
    %c0_7 = arith.constant 0 : index
    %c128 = arith.constant 128 : index
    %10 = vector.load %arg8[%c0_7, %c128] : memref<160x384xbf16, #tpu.memory_space<vmem>>, vector<16x128xbf16>
    tpu.vector_store %arg8[%c0_7, %c128], %9 {strides = array<i32>} : memref<160x384xbf16, #tpu.memory_space<vmem>>, vector<16x128xbf16>,
    %c0_i32_8 = arith.constant 0 : i32
    %11 = arith.addi %0, %c0_i32_8 : i32
    %c0_9 = arith.constant 0 : index
    %12 = arith.index_cast %11 : i32 to index
    %c2 = arith.constant 2 : index
    %c0_10 = arith.constant 0 : index
    %13 = vector.load %arg3[%c0_9, %12, %c2, %c0_10] : memref<1x18x18x128xbf16, #tpu.memory_space<vmem>>, vector<1x1x16x128xbf16>
    %14 = vector.shape_cast %13 : vector<1x1x16x128xbf16> to vector<16x128xbf16>
    %c0_11 = arith.constant 0 : index
    %c256 = arith.constant 256 : index
    %15 = vector.load %arg8[%c0_11, %c256] : memref<160x384xbf16, #tpu.memory_space<vmem>>, vector<16x128xbf16>
    tpu.vector_store %arg8[%c0_11, %c256], %14 {strides = array<i32>} : memref<160x384xbf16, #tpu.memory_space<vmem>>, vector<16x128xbf16>,
    %c1_i32 = arith.constant 1 : i32
    %16 = arith.addi %0, %c1_i32 : i32
    %c0_12 = arith.constant 0 : index
    %17 = arith.index_cast %16 : i32 to index
    %c0_13 = arith.constant 0 : index
    %c0_14 = arith.constant 0 : index
    %18 = vector.load %arg3[%c0_12, %17, %c0_13, %c0_14] : memref<1x18x18x128xbf16, #tpu.memory_space<vmem>>, vector<1x1x16x128xbf16>
    %19 = vector.shape_cast %18 : vector<1x1x16x128xbf16> to vector<16x128xbf16>
    %c16 = arith.constant 16 : index
    %c0_15 = arith.constant 0 : index
    %20 = vector.load %arg8[%c16, %c0_15] : memref<160x384xbf16, #tpu.memory_space<vmem>>, vector<16x128xbf16>
    tpu.vector_store %arg8[%c16, %c0_15], %19 {strides = array<i32>} : memref<160x384xbf16, #tpu.memory_space<vmem>>, vector<16x128xbf16>,
    %c1_i32_16 = arith.constant 1 : i32
    %21 = arith.addi %0, %c1_i32_16 : i32
    %c0_17 = arith.constant 0 : index
    %22 = arith.index_cast %21 : i32 to index
    %c1_18 = arith.constant 1 : index
    %c0_19 = arith.constant 0 : index
    %23 = vector.load %arg3[%c0_17, %22, %c1_18, %c0_19] : memref<1x18x18x128xbf16, #tpu.memory_space<vmem>>, vector<1x1x16x128xbf16>
    %24 = vector.shape_cast %23 : vector<1x1x16x128xbf16> to vector<16x128xbf16>
    %c16_20 = arith.constant 16 : index
    %c128_21 = arith.constant 128 : index
    %25 = vector.load %arg8[%c16_20, %c128_21] : memref<160x384xbf16, #tpu.memory_space<vmem>>, vector<16x128xbf16>
    tpu.vector_store %arg8[%c16_20, %c128_21], %24 {strides = array<i32>} : memref<160x384xbf16, #tpu.memory_space<vmem>>, vector<16x128xbf16>,
    %c1_i32_22 = arith.constant 1 : i32
    %26 = arith.addi %0, %c1_i32_22 : i32
    %c0_23 = arith.constant 0 : index
    %27 = arith.index_cast %26 : i32 to index
    %c2_24 = arith.constant 2 : index
    %c0_25 = arith.constant 0 : index
    %28 = vector.load %arg3[%c0_23, %27, %c2_24, %c0_25] : memref<1x18x18x128xbf16, #tpu.memory_space<vmem>>, vector<1x1x16x128xbf16>
    %29 = vector.shape_cast %28 : vector<1x1x16x128xbf16> to vector<16x128xbf16>
    %c16_26 = arith.constant 16 : index
    %c256_27 = arith.constant 256 : index
    %30 = vector.load %arg8[%c16_26, %c256_27] : memref<160x384xbf16, #tpu.memory_space<vmem>>, vector<16x128xbf16>
    tpu.vector_store %arg8[%c16_26, %c256_27], %29 {strides = array<i32>} : memref<160x384xbf16, #tpu.memory_space<vmem>>, vector<16x128xbf16>,
    %c2_i32 = arith.constant 2 : i32
    %31 = arith.addi %0, %c2_i32 : i32
    %c0_28 = arith.constant 0 : index
    %32 = arith.index_cast %31 : i32 to index
    %c0_29 = arith.constant 0 : index
    %c0_30 = arith.constant 0 : index
    %33 = vector.load %arg3[%c0_28, %32, %c0_29, %c0_30] : memref<1x18x18x128xbf16, #tpu.memory_space<vmem>>, vector<1x1x16x128xbf16>
    %34 = vector.shape_cast %33 : vector<1x1x16x128xbf16> to vector<16x128xbf16>
    %c32 = arith.constant 32 : index
    %c0_31 = arith.constant 0 : index
    %35 = vector.load %arg8[%c32, %c0_31] : memref<160x384xbf16, #tpu.memory_space<vmem>>, vector<16x128xbf16>
    tpu.vector_store %arg8[%c32, %c0_31], %34 {strides = array<i32>} : memref<160x384xbf16, #tpu.memory_space<vmem>>, vector<16x128xbf16>,
    %c2_i32_32 = arith.constant 2 : i32
    %36 = arith.addi %0, %c2_i32_32 : i32
    %c0_33 = arith.constant 0 : index
    %37 = arith.index_cast %36 : i32 to index
    %c1_34 = arith.constant 1 : index
    %c0_35 = arith.constant 0 : index
    %38 = vector.load %arg3[%c0_33, %37, %c1_34, %c0_35] : memref<1x18x18x128xbf16, #tpu.memory_space<vmem>>, vector<1x1x16x128xbf16>
    %39 = vector.shape_cast %38 : vector<1x1x16x128xbf16> to vector<16x128xbf16>
    %c32_36 = arith.constant 32 : index
    %c128_37 = arith.constant 128 : index
    %40 = vector.load %arg8[%c32_36, %c128_37] : memref<160x384xbf16, #tpu.memory_space<vmem>>, vector<16x128xbf16>
    tpu.vector_store %arg8[%c32_36, %c128_37], %39 {strides = array<i32>} : memref<160x384xbf16, #tpu.memory_space<vmem>>, vector<16x128xbf16>,
    %c2_i32_38 = arith.constant 2 : i32
    %41 = arith.addi %0, %c2_i32_38 : i32
    %c0_39 = arith.constant 0 : index
    %42 = arith.index_cast %41 : i32 to index
    %c2_40 = arith.constant 2 : index
    %c0_41 = arith.constant 0 : index
    %43 = vector.load %arg3[%c0_39, %42, %c2_40, %c0_41] : memref<1x18x18x128xbf16, #tpu.memory_space<vmem>>, vector<1x1x16x128xbf16>
    %44 = vector.shape_cast %43 : vector<1x1x16x128xbf16> to vector<16x128xbf16>
    %c32_42 = arith.constant 32 : index
    %c256_43 = arith.constant 256 : index
    %45 = vector.load %arg8[%c32_42, %c256_43] : memref<160x384xbf16, #tpu.memory_space<vmem>>, vector<16x128xbf16>
    tpu.vector_store %arg8[%c32_42, %c256_43], %44 {strides = array<i32>} : memref<160x384xbf16, #tpu.memory_space<vmem>>, vector<16x128xbf16>,
    %c3_i32 = arith.constant 3 : i32
    %46 = arith.addi %0, %c3_i32 : i32
    %c0_44 = arith.constant 0 : index
    %47 = arith.index_cast %46 : i32 to index
    %c0_45 = arith.constant 0 : index
    %c0_46 = arith.constant 0 : index
    %48 = vector.load %arg3[%c0_44, %47, %c0_45, %c0_46] : memref<1x18x18x128xbf16, #tpu.memory_space<vmem>>, vector<1x1x16x128xbf16>
    %49 = vector.shape_cast %48 : vector<1x1x16x128xbf16> to vector<16x128xbf16>
    %c48 = arith.constant 48 : index
    %c0_47 = arith.constant 0 : index
    %50 = vector.load %arg8[%c48, %c0_47] : memref<160x384xbf16, #tpu.memory_space<vmem>>, vector<16x128xbf16>
    tpu.vector_store %arg8[%c48, %c0_47], %49 {strides = array<i32>} : memref<160x384xbf16, #tpu.memory_space<vmem>>, vector<16x128xbf16>,
    %c3_i32_48 = arith.constant 3 : i32
    %51 = arith.addi %0, %c3_i32_48 : i32
    %c0_49 = arith.constant 0 : index
    %52 = arith.index_cast %51 : i32 to index
    %c1_50 = arith.constant 1 : index
    %c0_51 = arith.constant 0 : index
    %53 = vector.load %arg3[%c0_49, %52, %c1_50, %c0_51] : memref<1x18x18x128xbf16, #tpu.memory_space<vmem>>, vector<1x1x16x128xbf16>
    %54 = vector.shape_cast %53 : vector<1x1x16x128xbf16> to vector<16x128xbf16>
    %c48_52 = arith.constant 48 : index
    %c128_53 = arith.constant 128 : index
    %55 = vector.load %arg8[%c48_52, %c128_53] : memref<160x384xbf16, #tpu.memory_space<vmem>>, vector<16x128xbf16>
    tpu.vector_store %arg8[%c48_52, %c128_53], %54 {strides = array<i32>} : memref<160x384xbf16, #tpu.memory_space<vmem>>, vector<16x128xbf16>,
    %c3_i32_54 = arith.constant 3 : i32
    %56 = arith.addi %0, %c3_i32_54 : i32
    %c0_55 = arith.constant 0 : index
    %57 = arith.index_cast %56 : i32 to index
    %c2_56 = arith.constant 2 : index
    %c0_57 = arith.constant 0 : index
    %58 = vector.load %arg3[%c0_55, %57, %c2_56, %c0_57] : memref<1x18x18x128xbf16, #tpu.memory_space<vmem>>, vector<1x1x16x128xbf16>
    %59 = vector.shape_cast %58 : vector<1x1x16x128xbf16> to vector<16x128xbf16>
    %c48_58 = arith.constant 48 : index
    %c256_59 = arith.constant 256 : index
    %60 = vector.load %arg8[%c48_58, %c256_59] : memref<160x384xbf16, #tpu.memory_space<vmem>>, vector<16x128xbf16>
    tpu.vector_store %arg8[%c48_58, %c256_59], %59 {strides = array<i32>} : memref<160x384xbf16, #tpu.memory_space<vmem>>, vector<16x128xbf16>,
    %c4_i32 = arith.constant 4 : i32
    %61 = arith.addi %0, %c4_i32 : i32
    %c0_60 = arith.constant 0 : index
    %62 = arith.index_cast %61 : i32 to index
    %c0_61 = arith.constant 0 : index
    %c0_62 = arith.constant 0 : index
    %63 = vector.load %arg3[%c0_60, %62, %c0_61, %c0_62] : memref<1x18x18x128xbf16, #tpu.memory_space<vmem>>, vector<1x1x16x128xbf16>
    %64 = vector.shape_cast %63 : vector<1x1x16x128xbf16> to vector<16x128xbf16>
    %c64 = arith.constant 64 : index
    %c0_63 = arith.constant 0 : index
    %65 = vector.load %arg8[%c64, %c0_63] : memref<160x384xbf16, #tpu.memory_space<vmem>>, vector<16x128xbf16>
    tpu.vector_store %arg8[%c64, %c0_63], %64 {strides = array<i32>} : memref<160x384xbf16, #tpu.memory_space<vmem>>, vector<16x128xbf16>,
    %c4_i32_64 = arith.constant 4 : i32
    %66 = arith.addi %0, %c4_i32_64 : i32
    %c0_65 = arith.constant 0 : index
    %67 = arith.index_cast %66 : i32 to index
    %c1_66 = arith.constant 1 : index
    %c0_67 = arith.constant 0 : index
    %68 = vector.load %arg3[%c0_65, %67, %c1_66, %c0_67] : memref<1x18x18x128xbf16, #tpu.memory_space<vmem>>, vector<1x1x16x128xbf16>
    %69 = vector.shape_cast %68 : vector<1x1x16x128xbf16> to vector<16x128xbf16>
    %c64_68 = arith.constant 64 : index
    %c128_69 = arith.constant 128 : index
    %70 = vector.load %arg8[%c64_68, %c128_69] : memref<160x384xbf16, #tpu.memory_space<vmem>>, vector<16x128xbf16>
    tpu.vector_store %arg8[%c64_68, %c128_69], %69 {strides = array<i32>} : memref<160x384xbf16, #tpu.memory_space<vmem>>, vector<16x128xbf16>,
    %c4_i32_70 = arith.constant 4 : i32
    %71 = arith.addi %0, %c4_i32_70 : i32
    %c0_71 = arith.constant 0 : index
    %72 = arith.index_cast %71 : i32 to index
    %c2_72 = arith.constant 2 : index
    %c0_73 = arith.constant 0 : index
    %73 = vector.load %arg3[%c0_71, %72, %c2_72, %c0_73] : memref<1x18x18x128xbf16, #tpu.memory_space<vmem>>, vector<1x1x16x128xbf16>
    %74 = vector.shape_cast %73 : vector<1x1x16x128xbf16> to vector<16x128xbf16>
    %c64_74 = arith.constant 64 : index
    %c256_75 = arith.constant 256 : index
    %75 = vector.load %arg8[%c64_74, %c256_75] : memref<160x384xbf16, #tpu.memory_space<vmem>>, vector<16x128xbf16>
    tpu.vector_store %arg8[%c64_74, %c256_75], %74 {strides = array<i32>} : memref<160x384xbf16, #tpu.memory_space<vmem>>, vector<16x128xbf16>,
    %c5_i32 = arith.constant 5 : i32
    %76 = arith.addi %0, %c5_i32 : i32
    %c0_76 = arith.constant 0 : index
    %77 = arith.index_cast %76 : i32 to index
    %c0_77 = arith.constant 0 : index
    %c0_78 = arith.constant 0 : index
    %78 = vector.load %arg3[%c0_76, %77, %c0_77, %c0_78] : memref<1x18x18x128xbf16, #tpu.memory_space<vmem>>, vector<1x1x16x128xbf16>
    %79 = vector.shape_cast %78 : vector<1x1x16x128xbf16> to vector<16x128xbf16>
    %c80 = arith.constant 80 : index
    %c0_79 = arith.constant 0 : index
    %80 = vector.load %arg8[%c80, %c0_79] : memref<160x384xbf16, #tpu.memory_space<vmem>>, vector<16x128xbf16>
    tpu.vector_store %arg8[%c80, %c0_79], %79 {strides = array<i32>} : memref<160x384xbf16, #tpu.memory_space<vmem>>, vector<16x128xbf16>,
    %c5_i32_80 = arith.constant 5 : i32
    %81 = arith.addi %0, %c5_i32_80 : i32
    %c0_81 = arith.constant 0 : index
    %82 = arith.index_cast %81 : i32 to index
    %c1_82 = arith.constant 1 : index
    %c0_83 = arith.constant 0 : index
    %83 = vector.load %arg3[%c0_81, %82, %c1_82, %c0_83] : memref<1x18x18x128xbf16, #tpu.memory_space<vmem>>, vector<1x1x16x128xbf16>
    %84 = vector.shape_cast %83 : vector<1x1x16x128xbf16> to vector<16x128xbf16>
    %c80_84 = arith.constant 80 : index
    %c128_85 = arith.constant 128 : index
    %85 = vector.load %arg8[%c80_84, %c128_85] : memref<160x384xbf16, #tpu.memory_space<vmem>>, vector<16x128xbf16>
    tpu.vector_store %arg8[%c80_84, %c128_85], %84 {strides = array<i32>} : memref<160x384xbf16, #tpu.memory_space<vmem>>, vector<16x128xbf16>,
    %c5_i32_86 = arith.constant 5 : i32
    %86 = arith.addi %0, %c5_i32_86 : i32
    %c0_87 = arith.constant 0 : index
    %87 = arith.index_cast %86 : i32 to index
    %c2_88 = arith.constant 2 : index
    %c0_89 = arith.constant 0 : index
    %88 = vector.load %arg3[%c0_87, %87, %c2_88, %c0_89] : memref<1x18x18x128xbf16, #tpu.memory_space<vmem>>, vector<1x1x16x128xbf16>
    %89 = vector.shape_cast %88 : vector<1x1x16x128xbf16> to vector<16x128xbf16>
    %c80_90 = arith.constant 80 : index
    %c256_91 = arith.constant 256 : index
    %90 = vector.load %arg8[%c80_90, %c256_91] : memref<160x384xbf16, #tpu.memory_space<vmem>>, vector<16x128xbf16>
    tpu.vector_store %arg8[%c80_90, %c256_91], %89 {strides = array<i32>} : memref<160x384xbf16, #tpu.memory_space<vmem>>, vector<16x128xbf16>,
    %c6_i32 = arith.constant 6 : i32
    %91 = arith.addi %0, %c6_i32 : i32
    %c0_92 = arith.constant 0 : index
    %92 = arith.index_cast %91 : i32 to index
    %c0_93 = arith.constant 0 : index
    %c0_94 = arith.constant 0 : index
    %93 = vector.load %arg3[%c0_92, %92, %c0_93, %c0_94] : memref<1x18x18x128xbf16, #tpu.memory_space<vmem>>, vector<1x1x16x128xbf16>
    %94 = vector.shape_cast %93 : vector<1x1x16x128xbf16> to vector<16x128xbf16>
    %c96 = arith.constant 96 : index
    %c0_95 = arith.constant 0 : index
    %95 = vector.load %arg8[%c96, %c0_95] : memref<160x384xbf16, #tpu.memory_space<vmem>>, vector<16x128xbf16>
    tpu.vector_store %arg8[%c96, %c0_95], %94 {strides = array<i32>} : memref<160x384xbf16, #tpu.memory_space<vmem>>, vector<16x128xbf16>,
    %c6_i32_96 = arith.constant 6 : i32
    %96 = arith.addi %0, %c6_i32_96 : i32
    %c0_97 = arith.constant 0 : index
    %97 = arith.index_cast %96 : i32 to index
    %c1_98 = arith.constant 1 : index
    %c0_99 = arith.constant 0 : index
    %98 = vector.load %arg3[%c0_97, %97, %c1_98, %c0_99] : memref<1x18x18x128xbf16, #tpu.memory_space<vmem>>, vector<1x1x16x128xbf16>
    %99 = vector.shape_cast %98 : vector<1x1x16x128xbf16> to vector<16x128xbf16>
    %c96_100 = arith.constant 96 : index
    %c128_101 = arith.constant 128 : index
    %100 = vector.load %arg8[%c96_100, %c128_101] : memref<160x384xbf16, #tpu.memory_space<vmem>>, vector<16x128xbf16>
    tpu.vector_store %arg8[%c96_100, %c128_101], %99 {strides = array<i32>} : memref<160x384xbf16, #tpu.memory_space<vmem>>, vector<16x128xbf16>,
    %c6_i32_102 = arith.constant 6 : i32
    %101 = arith.addi %0, %c6_i32_102 : i32
    %c0_103 = arith.constant 0 : index
    %102 = arith.index_cast %101 : i32 to index
    %c2_104 = arith.constant 2 : index
    %c0_105 = arith.constant 0 : index
    %103 = vector.load %arg3[%c0_103, %102, %c2_104, %c0_105] : memref<1x18x18x128xbf16, #tpu.memory_space<vmem>>, vector<1x1x16x128xbf16>
    %104 = vector.shape_cast %103 : vector<1x1x16x128xbf16> to vector<16x128xbf16>
    %c96_106 = arith.constant 96 : index
    %c256_107 = arith.constant 256 : index
    %105 = vector.load %arg8[%c96_106, %c256_107] : memref<160x384xbf16, #tpu.memory_space<vmem>>, vector<16x128xbf16>
    tpu.vector_store %arg8[%c96_106, %c256_107], %104 {strides = array<i32>} : memref<160x384xbf16, #tpu.memory_space<vmem>>, vector<16x128xbf16>,
    %c7_i32 = arith.constant 7 : i32
    %106 = arith.addi %0, %c7_i32 : i32
    %c0_108 = arith.constant 0 : index
    %107 = arith.index_cast %106 : i32 to index
    %c0_109 = arith.constant 0 : index
    %c0_110 = arith.constant 0 : index
    %108 = vector.load %arg3[%c0_108, %107, %c0_109, %c0_110] : memref<1x18x18x128xbf16, #tpu.memory_space<vmem>>, vector<1x1x16x128xbf16>
    %109 = vector.shape_cast %108 : vector<1x1x16x128xbf16> to vector<16x128xbf16>
    %c112 = arith.constant 112 : index
    %c0_111 = arith.constant 0 : index
    %110 = vector.load %arg8[%c112, %c0_111] : memref<160x384xbf16, #tpu.memory_space<vmem>>, vector<16x128xbf16>
    tpu.vector_store %arg8[%c112, %c0_111], %109 {strides = array<i32>} : memref<160x384xbf16, #tpu.memory_space<vmem>>, vector<16x128xbf16>,
    %c7_i32_112 = arith.constant 7 : i32
    %111 = arith.addi %0, %c7_i32_112 : i32
    %c0_113 = arith.constant 0 : index
    %112 = arith.index_cast %111 : i32 to index
    %c1_114 = arith.constant 1 : index
    %c0_115 = arith.constant 0 : index
    %113 = vector.load %arg3[%c0_113, %112, %c1_114, %c0_115] : memref<1x18x18x128xbf16, #tpu.memory_space<vmem>>, vector<1x1x16x128xbf16>
    %114 = vector.shape_cast %113 : vector<1x1x16x128xbf16> to vector<16x128xbf16>
    %c112_116 = arith.constant 112 : index
    %c128_117 = arith.constant 128 : index
    %115 = vector.load %arg8[%c112_116, %c128_117] : memref<160x384xbf16, #tpu.memory_space<vmem>>, vector<16x128xbf16>
    tpu.vector_store %arg8[%c112_116, %c128_117], %114 {strides = array<i32>} : memref<160x384xbf16, #tpu.memory_space<vmem>>, vector<16x128xbf16>,
    %c7_i32_118 = arith.constant 7 : i32
    %116 = arith.addi %0, %c7_i32_118 : i32
    %c0_119 = arith.constant 0 : index
    %117 = arith.index_cast %116 : i32 to index
    %c2_120 = arith.constant 2 : index
    %c0_121 = arith.constant 0 : index
    %118 = vector.load %arg3[%c0_119, %117, %c2_120, %c0_121] : memref<1x18x18x128xbf16, #tpu.memory_space<vmem>>, vector<1x1x16x128xbf16>
    %119 = vector.shape_cast %118 : vector<1x1x16x128xbf16> to vector<16x128xbf16>
    %c112_122 = arith.constant 112 : index
    %c256_123 = arith.constant 256 : index
    %120 = vector.load %arg8[%c112_122, %c256_123] : memref<160x384xbf16, #tpu.memory_space<vmem>>, vector<16x128xbf16>
    tpu.vector_store %arg8[%c112_122, %c256_123], %119 {strides = array<i32>} : memref<160x384xbf16, #tpu.memory_space<vmem>>, vector<16x128xbf16>,
    %c8_i32_124 = arith.constant 8 : i32
    %121 = arith.addi %0, %c8_i32_124 : i32
    %c0_125 = arith.constant 0 : index
    %122 = arith.index_cast %121 : i32 to index
    %c0_126 = arith.constant 0 : index
    %c0_127 = arith.constant 0 : index
    %123 = vector.load %arg3[%c0_125, %122, %c0_126, %c0_127] : memref<1x18x18x128xbf16, #tpu.memory_space<vmem>>, vector<1x1x16x128xbf16>
    %124 = vector.shape_cast %123 : vector<1x1x16x128xbf16> to vector<16x128xbf16>
    %c128_128 = arith.constant 128 : index
    %c0_129 = arith.constant 0 : index
    %125 = vector.load %arg8[%c128_128, %c0_129] : memref<160x384xbf16, #tpu.memory_space<vmem>>, vector<16x128xbf16>
    tpu.vector_store %arg8[%c128_128, %c0_129], %124 {strides = array<i32>} : memref<160x384xbf16, #tpu.memory_space<vmem>>, vector<16x128xbf16>,
    %c8_i32_130 = arith.constant 8 : i32
    %126 = arith.addi %0, %c8_i32_130 : i32
    %c0_131 = arith.constant 0 : index
    %127 = arith.index_cast %126 : i32 to index
    %c1_132 = arith.constant 1 : index
    %c0_133 = arith.constant 0 : index
    %128 = vector.load %arg3[%c0_131, %127, %c1_132, %c0_133] : memref<1x18x18x128xbf16, #tpu.memory_space<vmem>>, vector<1x1x16x128xbf16>
    %129 = vector.shape_cast %128 : vector<1x1x16x128xbf16> to vector<16x128xbf16>
    %c128_134 = arith.constant 128 : index
    %c128_135 = arith.constant 128 : index
    %130 = vector.load %arg8[%c128_134, %c128_135] : memref<160x384xbf16, #tpu.memory_space<vmem>>, vector<16x128xbf16>
    tpu.vector_store %arg8[%c128_134, %c128_135], %129 {strides = array<i32>} : memref<160x384xbf16, #tpu.memory_space<vmem>>, vector<16x128xbf16>,
    %c8_i32_136 = arith.constant 8 : i32
    %131 = arith.addi %0, %c8_i32_136 : i32
    %c0_137 = arith.constant 0 : index
    %132 = arith.index_cast %131 : i32 to index
    %c2_138 = arith.constant 2 : index
    %c0_139 = arith.constant 0 : index
    %133 = vector.load %arg3[%c0_137, %132, %c2_138, %c0_139] : memref<1x18x18x128xbf16, #tpu.memory_space<vmem>>, vector<1x1x16x128xbf16>
    %134 = vector.shape_cast %133 : vector<1x1x16x128xbf16> to vector<16x128xbf16>
    %c128_140 = arith.constant 128 : index
    %c256_141 = arith.constant 256 : index
    %135 = vector.load %arg8[%c128_140, %c256_141] : memref<160x384xbf16, #tpu.memory_space<vmem>>, vector<16x128xbf16>
    tpu.vector_store %arg8[%c128_140, %c256_141], %134 {strides = array<i32>} : memref<160x384xbf16, #tpu.memory_space<vmem>>, vector<16x128xbf16>,
    %c9_i32 = arith.constant 9 : i32
    %136 = arith.addi %0, %c9_i32 : i32
    %c0_142 = arith.constant 0 : index
    %137 = arith.index_cast %136 : i32 to index
    %c0_143 = arith.constant 0 : index
    %c0_144 = arith.constant 0 : index
    %138 = vector.load %arg3[%c0_142, %137, %c0_143, %c0_144] : memref<1x18x18x128xbf16, #tpu.memory_space<vmem>>, vector<1x1x16x128xbf16>
    %139 = vector.shape_cast %138 : vector<1x1x16x128xbf16> to vector<16x128xbf16>
    %c144 = arith.constant 144 : index
    %c0_145 = arith.constant 0 : index
    %140 = vector.load %arg8[%c144, %c0_145] : memref<160x384xbf16, #tpu.memory_space<vmem>>, vector<16x128xbf16>
    tpu.vector_store %arg8[%c144, %c0_145], %139 {strides = array<i32>} : memref<160x384xbf16, #tpu.memory_space<vmem>>, vector<16x128xbf16>,
    %c9_i32_146 = arith.constant 9 : i32
    %141 = arith.addi %0, %c9_i32_146 : i32
    %c0_147 = arith.constant 0 : index
    %142 = arith.index_cast %141 : i32 to index
    %c1_148 = arith.constant 1 : index
    %c0_149 = arith.constant 0 : index
    %143 = vector.load %arg3[%c0_147, %142, %c1_148, %c0_149] : memref<1x18x18x128xbf16, #tpu.memory_space<vmem>>, vector<1x1x16x128xbf16>
    %144 = vector.shape_cast %143 : vector<1x1x16x128xbf16> to vector<16x128xbf16>
    %c144_150 = arith.constant 144 : index
    %c128_151 = arith.constant 128 : index
    %145 = vector.load %arg8[%c144_150, %c128_151] : memref<160x384xbf16, #tpu.memory_space<vmem>>, vector<16x128xbf16>
    tpu.vector_store %arg8[%c144_150, %c128_151], %144 {strides = array<i32>} : memref<160x384xbf16, #tpu.memory_space<vmem>>, vector<16x128xbf16>,
    %c9_i32_152 = arith.constant 9 : i32
    %146 = arith.addi %0, %c9_i32_152 : i32
    %c0_153 = arith.constant 0 : index
    %147 = arith.index_cast %146 : i32 to index
    %c2_154 = arith.constant 2 : index
    %c0_155 = arith.constant 0 : index
    %148 = vector.load %arg3[%c0_153, %147, %c2_154, %c0_155] : memref<1x18x18x128xbf16, #tpu.memory_space<vmem>>, vector<1x1x16x128xbf16>
    %149 = vector.shape_cast %148 : vector<1x1x16x128xbf16> to vector<16x128xbf16>
    %c144_156 = arith.constant 144 : index
    %c256_157 = arith.constant 256 : index
    %150 = vector.load %arg8[%c144_156, %c256_157] : memref<160x384xbf16, #tpu.memory_space<vmem>>, vector<16x128xbf16>
    tpu.vector_store %arg8[%c144_156, %c256_157], %149 {strides = array<i32>} : memref<160x384xbf16, #tpu.memory_space<vmem>>, vector<16x128xbf16>,
    %c0_158 = arith.constant 0 : index
    %c0_159 = arith.constant 0 : index
    %151 = vector.load %arg8[%c0_158, %c0_159] : memref<160x384xbf16, #tpu.memory_space<vmem>>, vector<128x384xbf16>
    %c0_160 = arith.constant 0 : index
    %c0_161 = arith.constant 0 : index
    %c0_162 = arith.constant 0 : index
    %152 = vector.load %arg4[%c0_160, %c0_161, %c0_162] : memref<3x384x128xbf16, #tpu.memory_space<vmem>>, vector<1x384x128xbf16>
    %153 = vector.shape_cast %152 : vector<1x384x128xbf16> to vector<384x128xbf16>
    %cst = arith.constant dense<0.000000e+00> : vector<128x128xf32>
    %154 = tpu.matmul %151, %153, %cst {dimension_numbers = #tpu.dot_dimension_numbers<[1], [0], [0], [1], [0, 0, 1, 1], [], []>} : vector<128x384xbf16>, vector<384x128xbf16>, vector<128x128xf32> -> vector<128x128xf32>
    %c16_163 = arith.constant 16 : index
    %c0_164 = arith.constant 0 : index
    %155 = vector.load %arg8[%c16_163, %c0_164] : memref<160x384xbf16, #tpu.memory_space<vmem>>, vector<128x384xbf16>
    %c1_165 = arith.constant 1 : index
    %c0_166 = arith.constant 0 : index
    %c0_167 = arith.constant 0 : index
    %156 = vector.load %arg4[%c1_165, %c0_166, %c0_167] : memref<3x384x128xbf16, #tpu.memory_space<vmem>>, vector<1x384x128xbf16>
    %157 = vector.shape_cast %156 : vector<1x384x128xbf16> to vector<384x128xbf16>
    %cst_168 = arith.constant dense<0.000000e+00> : vector<128x128xf32>
    %158 = tpu.matmul %155, %157, %cst_168 {dimension_numbers = #tpu.dot_dimension_numbers<[1], [0], [0], [1], [0, 0, 1, 1], [], []>} : vector<128x384xbf16>, vector<384x128xbf16>, vector<128x128xf32> -> vector<128x128xf32>
    %159 = arith.addf %154, %158 : vector<128x128xf32>
    %c32_169 = arith.constant 32 : index
    %c0_170 = arith.constant 0 : index
    %160 = vector.load %arg8[%c32_169, %c0_170] : memref<160x384xbf16, #tpu.memory_space<vmem>>, vector<128x384xbf16>
    %c2_171 = arith.constant 2 : index
    %c0_172 = arith.constant 0 : index
    %c0_173 = arith.constant 0 : index
    %161 = vector.load %arg4[%c2_171, %c0_172, %c0_173] : memref<3x384x128xbf16, #tpu.memory_space<vmem>>, vector<1x384x128xbf16>
    %162 = vector.shape_cast %161 : vector<1x384x128xbf16> to vector<384x128xbf16>
    %cst_174 = arith.constant dense<0.000000e+00> : vector<128x128xf32>
    %163 = tpu.matmul %160, %162, %cst_174 {dimension_numbers = #tpu.dot_dimension_numbers<[1], [0], [0], [1], [0, 0, 1, 1], [], []>} : vector<128x384xbf16>, vector<384x128xbf16>, vector<128x128xf32> -> vector<128x128xf32>
    %164 = arith.addf %159, %163 : vector<128x128xf32>
    %165 = arith.truncf %164 : vector<128x128xf32> to vector<128x128xbf16>
    %c0_175 = arith.constant 0 : index
    %c0_176 = arith.constant 0 : index
    %c0_177 = arith.constant 0 : index
    %166 = vector.load %arg5[%c0_175, %c0_176, %c0_177] : memref<1x128x128xbf16, #tpu.memory_space<vmem>>, vector<1x128x128xbf16>
    %167 = vector.shape_cast %166 : vector<1x128x128xbf16> to vector<128x128xbf16>
    %168 = vector.shape_cast %165 : vector<128x128xbf16> to vector<1x128x128xbf16>
    tpu.vector_store %arg5[%c0_175, %c0_176, %c0_177], %168 {strides = array<i32>} : memref<1x128x128xbf16, #tpu.memory_space<vmem>>, vector<1x128x128xbf16>,
    %cst_178 = arith.constant dense<0.000000e+00> : vector<128xf32>
    %169 = vector.multi_reduction <add>, %164, %cst_178 [0] : vector<128x128xf32> to vector<128xf32>
    %170 = vector.shape_cast %169 : vector<128xf32> to vector<1x128xf32>
    %c0_179 = arith.constant 0 : index
    %c0_180 = arith.constant 0 : index
    %c0_181 = arith.constant 0 : index
    %171 = vector.load %arg6[%c0_179, %c0_180, %c0_181] : memref<1x1x128xf32, #tpu.memory_space<vmem>>, vector<1x1x128xf32>
    %172 = vector.shape_cast %171 : vector<1x1x128xf32> to vector<1x128xf32>
    %173 = vector.shape_cast %170 : vector<1x128xf32> to vector<1x1x128xf32>
    tpu.vector_store %arg6[%c0_179, %c0_180, %c0_181], %173 {strides = array<i32>} : memref<1x1x128xf32, #tpu.memory_space<vmem>>, vector<1x1x128xf32>,
    %174 = arith.mulf %164, %164 : vector<128x128xf32>
    %cst_182 = arith.constant dense<0.000000e+00> : vector<128xf32>
    %175 = vector.multi_reduction <add>, %174, %cst_182 [0] : vector<128x128xf32> to vector<128xf32>
    %176 = vector.shape_cast %175 : vector<128xf32> to vector<1x128xf32>
    %c0_183 = arith.constant 0 : index
    %c0_184 = arith.constant 0 : index
    %c0_185 = arith.constant 0 : index
    %177 = vector.load %arg7[%c0_183, %c0_184, %c0_185] : memref<1x1x128xf32, #tpu.memory_space<vmem>>, vector<1x1x128xf32>
    %178 = vector.shape_cast %177 : vector<1x1x128xf32> to vector<1x128xf32>
    %179 = vector.shape_cast %176 : vector<1x128xf32> to vector<1x1x128xf32>
    tpu.vector_store %arg7[%c0_183, %c0_184, %c0_185], %179 {strides = array<i32>} : memref<1x1x128xf32, #tpu.memory_space<vmem>>, vector<1x1x128xf32>,
    return
  }
  func.func @transform_0(%arg0: i32, %arg1: i32, %arg2: i32) -> (i32, i32, i32, i32) {
    %c0_i32 = arith.constant 0 : i32
    %c0_i32_0 = arith.constant 0 : i32
    %c0_i32_1 = arith.constant 0 : i32
    %c0_i32_2 = arith.constant 0 : i32
    return %arg0, %c0_i32, %c0_i32_0, %c0_i32_1 : i32, i32, i32, i32
  }
  func.func @transform_1(%arg0: i32, %arg1: i32, %arg2: i32) -> (i32, i32, i32) {
    %c0_i32 = arith.constant 0 : i32
    %c0_i32_0 = arith.constant 0 : i32
    %c0_i32_1 = arith.constant 0 : i32
    return %c0_i32, %c0_i32_0, %arg1 : i32, i32, i32
  }
  func.func @transform_2(%arg0: i32, %arg1: i32, %arg2: i32) -> (i32, i32, i32) {
    %c0_i32 = arith.constant 0 : i32
    return %arg0, %arg2, %arg1 : i32, i32, i32
  }
  func.func @transform_3(%arg0: i32, %arg1: i32, %arg2: i32) -> (i32, i32, i32) {
    %c2_i32 = arith.constant 2 : i32
    %0 = arith.muli %arg0, %c2_i32 : i32
    %1 = arith.addi %0, %arg2 : i32
    %c0_i32 = arith.constant 0 : i32
    %c0_i32_0 = arith.constant 0 : i32
    return %1, %c0_i32, %arg1 : i32, i32, i32
  }
  func.func @transform_4(%arg0: i32, %arg1: i32, %arg2: i32) -> (i32, i32, i32) {
    %c2_i32 = arith.constant 2 : i32
    %0 = arith.muli %arg0, %c2_i32 : i32
    %1 = arith.addi %0, %arg2 : i32
    %c0_i32 = arith.constant 0 : i32
    %c0_i32_0 = arith.constant 0 : i32
    return %1, %c0_i32, %arg1 : i32, i32, i32
  }
}

module attributes {stable_mosaic.version = 11 : i64} {
  func.func @_bn_act_add_kernel(%arg0: i32, %arg1: memref<256x128xbf16, #tpu.memory_space<vmem>>, %arg2: memref<1x128xf32, #tpu.memory_space<vmem>>, %arg3: memref<1x128xf32, #tpu.memory_space<vmem>>, %arg4: memref<256x64xf32, #tpu.memory_space<vmem>>, %arg5: memref<256x128xf32, #tpu.memory_space<vmem>>, %arg6: memref<256x128xf32, #tpu.memory_space<vmem>>) attributes {dimension_semantics = [#tpu.dimension_semantics<parallel>], iteration_bounds = array<i64: 2>, scalar_prefetch = 0 : i64, scratch_operands = 0 : i64, tpu.core_type = #tpu.core_type<tc>, window_params = [{transform_indices = @transform_0, window_bounds = array<i64: 256, 128>}, {pipeline_mode = #tpu.pipeline_mode<synchronous>, transform_indices = @transform_1, window_bounds = array<i64: 1, 128>}, {pipeline_mode = #tpu.pipeline_mode<synchronous>, transform_indices = @transform_2, window_bounds = array<i64: 1, 128>}, {transform_indices = @transform_3, window_bounds = array<i64: 256, 64>}, {transform_indices = @transform_4, window_bounds = array<i64: 256, 128>}, {transform_indices = @transform_5, window_bounds = array<i64: 256, 128>}]} {
    %c0 = arith.constant 0 : index
    %c0_0 = arith.constant 0 : index
    %0 = vector.load %arg1[%c0, %c0_0] : memref<256x128xbf16, #tpu.memory_space<vmem>>, vector<256x128xbf16>
    %1 = arith.extf %0 : vector<256x128xbf16> to vector<256x128xf32>
    %c0_1 = arith.constant 0 : index
    %c0_2 = arith.constant 0 : index
    %2 = vector.load %arg2[%c0_1, %c0_2] : memref<1x128xf32, #tpu.memory_space<vmem>>, vector<1x128xf32>
    %3 = vector.broadcast %2 : vector<1x128xf32> to vector<256x128xf32>
    %4 = arith.mulf %1, %3 : vector<256x128xf32>
    %c0_3 = arith.constant 0 : index
    %c0_4 = arith.constant 0 : index
    %5 = vector.load %arg3[%c0_3, %c0_4] : memref<1x128xf32, #tpu.memory_space<vmem>>, vector<1x128xf32>
    %6 = vector.broadcast %5 : vector<1x128xf32> to vector<256x128xf32>
    %7 = arith.addf %4, %6 : vector<256x128xf32>
    %cst = arith.constant 0.000000e+00 : f32
    %8 = vector.broadcast %cst : f32 to vector<256x128xf32>
    %9 = arith.cmpf oge, %7, %8 : vector<256x128xf32>
    %cst_5 = arith.constant 1.000000e-01 : f32
    %10 = vector.broadcast %cst_5 : f32 to vector<256x128xf32>
    %11 = arith.mulf %10, %7 : vector<256x128xf32>
    %12 = arith.select %9, %7, %11 : vector<256x128xi1>, vector<256x128xf32>
    %c0_6 = arith.constant 0 : index
    %c0_7 = arith.constant 0 : index
    %13 = vector.load %arg5[%c0_6, %c0_7] : memref<256x128xf32, #tpu.memory_space<vmem>>, vector<256x128xf32>
    tpu.vector_store %arg5[%c0_6, %c0_7], %12 {strides = array<i32>} : memref<256x128xf32, #tpu.memory_space<vmem>>, vector<256x128xf32>,
    %c0_8 = arith.constant 0 : index
    %c0_9 = arith.constant 0 : index
    %14 = vector.load %arg4[%c0_8, %c0_9] : memref<256x64xf32, #tpu.memory_space<vmem>>, vector<256x64xf32>
    %cst_10 = arith.constant 0.000000e+00 : f32
    %15 = vector.broadcast %cst_10 : f32 to vector<256x64xf32>
    %16 = tpu.concatenate %14, %15 in 1 : vector<256x64xf32>, vector<256x64xf32> -> vector<256x128xf32>
    %17 = arith.addf %12, %16 : vector<256x128xf32>
    %c0_11 = arith.constant 0 : index
    %c0_12 = arith.constant 0 : index
    %18 = vector.load %arg6[%c0_11, %c0_12] : memref<256x128xf32, #tpu.memory_space<vmem>>, vector<256x128xf32>
    tpu.vector_store %arg6[%c0_11, %c0_12], %17 {strides = array<i32>} : memref<256x128xf32, #tpu.memory_space<vmem>>, vector<256x128xf32>,
    return
  }
  func.func @transform_0(%arg0: i32) -> (i32, i32) {
    %c0_i32 = arith.constant 0 : i32
    %c0_i32_0 = arith.constant 0 : i32
    return %arg0, %c0_i32 : i32, i32
  }
  func.func @transform_1(%arg0: i32) -> (i32, i32) {
    %c0_i32 = arith.constant 0 : i32
    %c0_i32_0 = arith.constant 0 : i32
    %c0_i32_1 = arith.constant 0 : i32
    return %c0_i32, %c0_i32_0 : i32, i32
  }
  func.func @transform_2(%arg0: i32) -> (i32, i32) {
    %c0_i32 = arith.constant 0 : i32
    %c0_i32_0 = arith.constant 0 : i32
    %c0_i32_1 = arith.constant 0 : i32
    return %c0_i32, %c0_i32_0 : i32, i32
  }
  func.func @transform_3(%arg0: i32) -> (i32, i32) {
    %c0_i32 = arith.constant 0 : i32
    %c0_i32_0 = arith.constant 0 : i32
    return %arg0, %c0_i32 : i32, i32
  }
  func.func @transform_4(%arg0: i32) -> (i32, i32) {
    %c0_i32 = arith.constant 0 : i32
    %c0_i32_0 = arith.constant 0 : i32
    return %arg0, %c0_i32 : i32, i32
  }
  func.func @transform_5(%arg0: i32) -> (i32, i32) {
    %c0_i32 = arith.constant 0 : i32
    %c0_i32_0 = arith.constant 0 : i32
    return %arg0, %c0_i32 : i32, i32
  }
}

</mosaic_0001>

<llo_original>
// kernel: residual_block_forward.5
$region0: #{residual_block_forward.5}
  #allocation0 [shape = 'u32[]', space=smem, size = 0x4, offset = 0x4, fixed_abs, tag = 'smem constant byte address 0x4 - core index']
  #allocation1 [shape = 'u32[144,128]{1,0:T(1,128)}', space=vmem, size = 0x12000, scoped, tag = 'internal scratch']
  %s0 = inlined_call_operand.vmem [shape: bf16[512,128], index: 0, kind: input, shape index: {}]
  %s1 = inlined_call_operand.vmem [shape: f32[1,128], index: 1, kind: input, shape index: {}]
  %s2 = inlined_call_operand.vmem [shape: f32[1,128], index: 2, kind: input, shape index: {}]
  %s3 = inlined_call_operand.vmem [shape: bf16[512,128], index: 3, kind: output, shape index: {}]
  %s4 = sld [smem:[#allocation0]]
  $region45: #{residual_block_forward.5} parent=0
    _
  %s6 = ssub.s32 1, %s4
  %s7 = scalar_select 0, %s6, %s4
  loop: start=0, step=1, limit=4
  $region2: #{residual_block_forward.5} parent=0 // loop_pre_header
    _
  $region3: #{residual_block_forward.5} parent=0 // loop_header
    %s9 = sphi 0, %s13
    %p10 = scmp.ge.s32.totalorder %s9, 4
    %s19 = sphi 0, %s21
    %s22 = sphi 0, %s19
    %s23 = sphi 0, %s22
    %s39 = sphi 0, %s23
    %s43 = sphi 0, %s43
    %s45 = sphi 0, %s43
    %s46 = sphi 0, %s45
    %s60 = sphi 0, %s46
    %s64 = sphi 0, %s64
    %s66 = sphi 0, %s64
    %s67 = sphi 0, %s66
    %s81 = sphi 0, %s67
    %s87 = sphi 0, %s89
    %s90 = sphi 0, %s87
    %s91 = sphi 0, %s90
    %s107 = sphi 0, %s91
  $region4: #{residual_block_forward.5} parent=0 // loop_header_branch
    %12 = sbr.rel (%p10) target = $region8
  $region5: #{residual_block_forward.5} parent=0 // loop_body
    %s14 = ssub.s32 %s9, 1
    %s15 = ssub.s32 %s9, 2
    %s16 = sadd.s32 %s9, 1
    %s17 = ssub.s32 %s9, %s16
    %p18 = scmp.eq.s32.totalorder %s17, 0
    %s20 = sadd.s32 %s19, 1
    %s21 = scalar_select %p18, %s19, %s20
    %p24 = pneg %p18
    %p25 = scmp.eq.s32.totalorder %s9, 1
    %p26 = por %p24, %p25
    %p27 = scmp.ne.s32.totalorder %s19, %s22
    %p28 = scmp.eq.s32.totalorder %s9, 0
    %p29 = por %p27, %p28
    %p30 = scmp.ne.s32.totalorder %s19, %s22
    %p31 = scmp.eq.s32.totalorder %s14, 1
    %p32 = por %p30, %p31
    %p33 = scmp.ne.s32.totalorder %s22, %s23
    %p34 = scmp.eq.s32.totalorder %s14, 0
    %p35 = por %p33, %p34
    %p36 = scmp.ne.s32.totalorder %s22, %s23
    %p37 = scmp.eq.s32.totalorder %s15, 1
    %p38 = por %p36, %p37
    %p40 = scmp.ne.s32.totalorder %s23, %s39
    %p41 = scmp.eq.s32.totalorder %s15, 0
    %p42 = por %p40, %p41
    %s44 = sadd.s32 %s43, 1
    %p47 = scmp.eq.s32.totalorder %s9, 1
    %p48 = scmp.ne.s32.totalorder %s43, %s45
    %p49 = scmp.eq.s32.totalorder %s9, 0
    %p50 = por %p48, %p49
    %p51 = scmp.ne.s32.totalorder %s43, %s45
    %p52 = scmp.eq.s32.totalorder %s14, 1
    %p53 = por %p51, %p52
    %p54 = scmp.ne.s32.totalorder %s45, %s46
    %p55 = scmp.eq.s32.totalorder %s14, 0
    %p56 = por %p54, %p55
    %p57 = scmp.ne.s32.totalorder %s45, %s46
    %p58 = scmp.eq.s32.totalorder %s15, 1
    %p59 = por %p57, %p58
    %p61 = scmp.ne.s32.totalorder %s46, %s60
    %p62 = scmp.eq.s32.totalorder %s15, 0
    %p63 = por %p61, %p62
    %s65 = sadd.s32 %s64, 1
    %p68 = scmp.eq.s32.totalorder %s9, 1
    %p69 = scmp.ne.s32.totalorder %s64, %s66
    %p70 = scmp.eq.s32.totalorder %s9, 0
    %p71 = por %p69, %p70
    %p72 = scmp.ne.s32.totalorder %s64, %s66
    %p73 = scmp.eq.s32.totalorder %s14, 1
    %p74 = por %p72, %p73
    %p75 = scmp.ne.s32.totalorder %s66, %s67
    %p76 = scmp.eq.s32.totalorder %s14, 0
    %p77 = por %p75, %p76
    %p78 = scmp.ne.s32.totalorder %s66, %s67
    %p79 = scmp.eq.s32.totalorder %s15, 1
    %p80 = por %p78, %p79
    %p82 = scmp.ne.s32.totalorder %s67, %s81
    %p83 = scmp.eq.s32.totalorder %s15, 0
    %p84 = por %p82, %p83
    %s85 = ssub.s32 %s9, %s16
    %p86 = scmp.eq.s32.totalorder %s85, 0
    %s88 = sadd.s32 %s87, 1
    %s89 = scalar_select %p86, %s87, %s88
    %p92 = pneg %p86
    %p93 = scmp.eq.s32.totalorder %s9, 1
    %p94 = por %p92, %p93
    %p95 = scmp.ne.s32.totalorder %s87, %s90
    %p96 = scmp.eq.s32.totalorder %s9, 0
    %p97 = por %p95, %p96
    %p98 = scmp.ne.s32.totalorder %s87, %s90
    %p99 = scmp.eq.s32.totalorder %s14, 1
    %p100 = por %p98, %p99
    %p101 = scmp.ne.s32.totalorder %s90, %s91
    %p102 = scmp.eq.s32.totalorder %s14, 0
    %p103 = por %p101, %p102
    %p104 = scmp.ne.s32.totalorder %s90, %s91
    %p105 = scmp.eq.s32.totalorder %s15, 1
    %p106 = por %p104, %p105
    %p108 = scmp.ne.s32.totalorder %s91, %s107
    %p109 = scmp.eq.s32.totalorder %s15, 0
    %p110 = por %p108, %p109
    %p111 = scmp.le.s32.totalorder 1, %s9
    %p112 = scmp.lt.s32.totalorder %s9, 3
    %p113 = pnand %p111, %p112
    %p114 = pneg %p113
    // Predicated region
    $region9: #{residual_block_forward.5} parent=5 // pred_check
      _
    $region10: #{residual_block_forward.5} parent=5 // pred_check_branch
      %116 = sbr.rel (%p113) target = $region12
    $region11: #{residual_block_forward.5} parent=5 // pred_region
      %s117 = ssub.s32 %s9, 1
      // Predicated region
      $region13: #{residual_block_forward.5} parent=11 // pred_check
        %p118 = pneg %p56
      $region14: #{residual_block_forward.5} parent=11 // pred_check_branch
        %120 = sbr.rel (%p118) target = $region16
      $region15: #{residual_block_forward.5} parent=11 // pred_region
        _
      $region16: #{residual_block_forward.5} parent=11 // pred_fallthru
        _
      // Predicated region
      $region17: #{residual_block_forward.5} parent=11 // pred_check
        %p121 = pneg %p77
      $region18: #{residual_block_forward.5} parent=11 // pred_check_branch
        %123 = sbr.rel (%p121) target = $region20
      $region19: #{residual_block_forward.5} parent=11 // pred_region
        _
      $region20: #{residual_block_forward.5} parent=11 // pred_fallthru
        _
    $region12: #{residual_block_forward.5} parent=5 // pred_fallthru
      _
    %p124 = scmp.lt.s32.totalorder %s9, 2
    // Predicated region
    $region21: #{residual_block_forward.5} parent=5 // pred_check
      %p125 = pneg %p124
    $region22: #{residual_block_forward.5} parent=5 // pred_check_branch
      %127 = sbr.rel (%p125) target = $region24
    $region23: #{residual_block_forward.5} parent=5 // pred_region
      // Predicated region
      $region25: #{residual_block_forward.5} parent=23 // pred_check
        %p128 = pneg %p29
      $region26: #{residual_block_forward.5} parent=23 // pred_check_branch
        %130 = sbr.rel (%p128) target = $region28
      $region27: #{residual_block_forward.5} parent=23 // pred_region
        %s131 = smul.u32 32, %s9
        %p132 = scmp.lt.s32.totalorder %s131, 63
        %s133 = scalar_select %p132, %s131, 63
        %s134 = smul.addr %s133, 4
        %s135 = scalar_lea.vmem %s0, %s134
        %s136 = smul.u32 32, %s9
      $region28: #{residual_block_forward.5} parent=23 // pred_fallthru
        _
    $region24: #{residual_block_forward.5} parent=5 // pred_fallthru
      _
    %p137 = scmp.le.s32.totalorder 1, %s9
    %p138 = scmp.lt.s32.totalorder %s9, 3
    %p139 = pnand %p137, %p138
    %p140 = pneg %p139
    // Predicated region
    $region29: #{residual_block_forward.5} parent=5 // pred_check
      _
    $region30: #{residual_block_forward.5} parent=5 // pred_check_branch
      %142 = sbr.rel (%p139) target = $region32
    $region31: #{residual_block_forward.5} parent=5 // pred_region
      %s143 = ssub.s32 %s9, 1
      %s144 = smul.u32 32, %s14
      %p145 = scmp.lt.s32.totalorder %s144, 63
      %s146 = scalar_select %p145, %s144, 63
      %s147 = smul.addr %s146, 4
      %s148 = scalar_lea.vmem %s0, %s147
      %p149 = pneg %p35
      %p150 = pneg %p32
      %p151 = pneg %p56
      %p152 = pneg %p53
      %p153 = pneg %p77
      %p154 = pneg %p74
      %p155 = pneg %p103
      %p156 = pneg %p100
      %s157 = smul.u32 32, %s14
      %p158 = scmp.lt.s32.totalorder %s157, 63
      %s159 = scalar_select %p158, %s157, 63
      %s160 = smul.addr %s159, 4
      %s161 = scalar_lea.vmem %s3, %s160
      %s162 = smul.u32 32, %s14
      %p163 = scmp.lt.s32.totalorder %s162, 63
      %s164 = scalar_select %p163, %s162, 63
      %s165 = smul.addr %s164, 4
      %s166 = scalar_lea.vmem %s0, %s165
      %s167 = smul.u32 32, %s14
      %s168 = smul.u32 32, %s14
      %p169 = scmp.lt.s32.totalorder %s168, 63
      %s170 = scalar_select %p169, %s168, 63
      %s171 = smul.addr %s170, 4
      %s172 = scalar_lea.vmem %s3, %s171
      %s173 = smul.u32 32, %s14
      %v174 = vld [vmem:[%s166] sm:$0xf]
      %v175 = vld [vmem:[%s166 + $0x4] sm:$0xf]
      %v176 = vld [vmem:[%s166 + $0x8] sm:$0xf]
      %v177 = vld [vmem:[%s166 + $0xc] sm:$0xf]
      %v178 = vld [vmem:[%s166 + $0x10] sm:$0xf]
      %v179 = vld [vmem:[%s166 + $0x14] sm:$0xf]
      %v180 = vld [vmem:[%s166 + $0x18] sm:$0xf]
      %v181 = vld [vmem:[%s166 + $0x1c] sm:$0xf]
      %v182 = vld [vmem:[%s166 + $0x20] sm:$0xf]
      %v183 = vld [vmem:[%s166 + $0x24] sm:$0xf]
      %v184 = vld [vmem:[%s166 + $0x28] sm:$0xf]
      %v185 = vld [vmem:[%s166 + $0x2c] sm:$0xf]
      %v186 = vld [vmem:[%s166 + $0x30] sm:$0xf]
      %v187 = vld [vmem:[%s166 + $0x34] sm:$0xf]
      %v188 = vld [vmem:[%s166 + $0x38] sm:$0xf]
      %v189 = vld [vmem:[%s166 + $0x3c] sm:$0xf]
      %v190 = vld [vmem:[%s166 + $0x40] sm:$0xf]
      %v191 = vld [vmem:[%s166 + $0x44] sm:$0xf]
      %v192 = vld [vmem:[%s166 + $0x48] sm:$0xf]
      %v193 = vld [vmem:[%s166 + $0x4c] sm:$0xf]
      %v194 = vld [vmem:[%s166 + $0x50] sm:$0xf]
      %v195 = vld [vmem:[%s166 + $0x54] sm:$0xf]
      %v196 = vld [vmem:[%s166 + $0x58] sm:$0xf]
      %v197 = vld [vmem:[%s166 + $0x5c] sm:$0xf]
      %v198 = vld [vmem:[%s166 + $0x60] sm:$0xf]
      %v199 = vld [vmem:[%s166 + $0x64] sm:$0xf]
      %v200 = vld [vmem:[%s166 + $0x68] sm:$0xf]
      %v201 = vld [vmem:[%s166 + $0x6c] sm:$0xf]
      %v202 = vld [vmem:[%s166 + $0x70] sm:$0xf]
      %v203 = vld [vmem:[%s166 + $0x74] sm:$0xf]
      %v204 = vld [vmem:[%s166 + $0x78] sm:$0xf]
      %v205 = vld [vmem:[%s166 + $0x7c] sm:$0xf]
      %v206 = vunpack.c.l.bf16 %v174
      %v207 = vunpack.c.l.bf16 %v175
      %v208 = vunpack.c.l.bf16 %v176
      %v209 = vunpack.c.l.bf16 %v177
      %v210 = vunpack.c.l.bf16 %v178
      %v211 = vunpack.c.l.bf16 %v179
      %v212 = vunpack.c.l.bf16 %v180
      %v213 = vunpack.c.l.bf16 %v181
      %v214 = vunpack.c.l.bf16 %v182
      %v215 = vunpack.c.l.bf16 %v183
      %v216 = vunpack.c.l.bf16 %v184
      %v217 = vunpack.c.l.bf16 %v185
      %v218 = vunpack.c.l.bf16 %v186
      %v219 = vunpack.c.l.bf16 %v187
      %v220 = vunpack.c.l.bf16 %v188
      %v221 = vunpack.c.l.bf16 %v189
      %v222 = vunpack.c.l.bf16 %v190
      %v223 = vunpack.c.l.bf16 %v191
      %v224 = vunpack.c.l.bf16 %v192
      %v225 = vunpack.c.l.bf16 %v193
      %v226 = vunpack.c.l.bf16 %v194
      %v227 = vunpack.c.l.bf16 %v195
      %v228 = vunpack.c.l.bf16 %v196
      %v229 = vunpack.c.l.bf16 %v197
      %v230 = vunpack.c.l.bf16 %v198
      %v231 = vunpack.c.l.bf16 %v199
      %v232 = vunpack.c.l.bf16 %v200
      %v233 = vunpack.c.l.bf16 %v201
      %v234 = vunpack.c.l.bf16 %v202
      %v235 = vunpack.c.l.bf16 %v203
      %v236 = vunpack.c.l.bf16 %v204
      %v237 = vunpack.c.l.bf16 %v205
      %v238 = vld [vmem:[%s1] sm:$0x1]
      %v240 = vlaneseq
      %v241 = vshrl.u32 %v240, 7
      %v242 = vsub.s32 0, %v241
      %v243 = vrot.slane %v238, %v242
      %v245 = vmul.f32 %v206, %v243
      %v246 = vmul.f32 %v207, %v243
      %v247 = vmul.f32 %v208, %v243
      %v248 = vmul.f32 %v209, %v243
      %v249 = vmul.f32 %v210, %v243
      %v250 = vmul.f32 %v211, %v243
      %v251 = vmul.f32 %v212, %v243
      %v252 = vmul.f32 %v213, %v243
      %v253 = vmul.f32 %v214, %v243
      %v254 = vmul.f32 %v215, %v243
      %v255 = vmul.f32 %v216, %v243
      %v256 = vmul.f32 %v217, %v243
      %v257 = vmul.f32 %v218, %v243
      %v258 = vmul.f32 %v219, %v243
      %v259 = vmul.f32 %v220, %v243
      %v260 = vmul.f32 %v221, %v243
      %v261 = vmul.f32 %v222, %v243
      %v262 = vmul.f32 %v223, %v243
      %v263 = vmul.f32 %v224, %v243
      %v264 = vmul.f32 %v225, %v243
      %v265 = vmul.f32 %v226, %v243
      %v266 = vmul.f32 %v227, %v243
      %v267 = vmul.f32 %v228, %v243
      %v268 = vmul.f32 %v229, %v243
      %v269 = vmul.f32 %v230, %v243
      %v270 = vmul.f32 %v231, %v243
      %v271 = vmul.f32 %v232, %v243
      %v272 = vmul.f32 %v233, %v243
      %v273 = vmul.f32 %v234, %v243
      %v274 = vmul.f32 %v235, %v243
      %v275 = vmul.f32 %v236, %v243
      %v276 = vmul.f32 %v237, %v243
      %v277 = vld [vmem:[%s2] sm:$0x1]
      %v279 = vlaneseq
      %v280 = vshrl.u32 %v279, 7
      %v281 = vsub.s32 0, %v280
      %v282 = vrot.slane %v277, %v281
      %v284 = vadd.f32 %v245, %v282
      %v285 = vadd.f32 %v246, %v282
      %v286 = vadd.f32 %v247, %v282
      %v287 = vadd.f32 %v248, %v282
      %v288 = vadd.f32 %v249, %v282
      %v289 = vadd.f32 %v250, %v282
      %v290 = vadd.f32 %v251, %v282
      %v291 = vadd.f32 %v252, %v282
      %v292 = vadd.f32 %v253, %v282
      %v293 = vadd.f32 %v254, %v282
      %v294 = vadd.f32 %v255, %v282
      %v295 = vadd.f32 %v256, %v282
      %v296 = vadd.f32 %v257, %v282
      %v297 = vadd.f32 %v258, %v282
      %v298 = vadd.f32 %v259, %v282
      %v299 = vadd.f32 %v260, %v282
      %v300 = vadd.f32 %v261, %v282
      %v301 = vadd.f32 %v262, %v282
      %v302 = vadd.f32 %v263, %v282
      %v303 = vadd.f32 %v264, %v282
      %v304 = vadd.f32 %v265, %v282
      %v305 = vadd.f32 %v266, %v282
      %v306 = vadd.f32 %v267, %v282
      %v307 = vadd.f32 %v268, %v282
      %v308 = vadd.f32 %v269, %v282
      %v309 = vadd.f32 %v270, %v282
      %v310 = vadd.f32 %v271, %v282
      %v311 = vadd.f32 %v272, %v282
      %v312 = vadd.f32 %v273, %v282
      %v313 = vadd.f32 %v274, %v282
      %v314 = vadd.f32 %v275, %v282
      %v315 = vadd.f32 %v276, %v282
      %vm316 = vcmp.ge.f32.partialorder %v284, 0.0
      %vm317 = vcmp.ge.f32.partialorder %v285, 0.0
      %vm318 = vcmp.ge.f32.partialorder %v286, 0.0
      %vm319 = vcmp.ge.f32.partialorder %v287, 0.0
      %vm320 = vcmp.ge.f32.partialorder %v288, 0.0
      %vm321 = vcmp.ge.f32.partialorder %v289, 0.0
      %vm322 = vcmp.ge.f32.partialorder %v290, 0.0
      %vm323 = vcmp.ge.f32.partialorder %v291, 0.0
      %vm324 = vcmp.ge.f32.partialorder %v292, 0.0
      %vm325 = vcmp.ge.f32.partialorder %v293, 0.0
      %vm326 = vcmp.ge.f32.partialorder %v294, 0.0
      %vm327 = vcmp.ge.f32.partialorder %v295, 0.0
      %vm328 = vcmp.ge.f32.partialorder %v296, 0.0
      %vm329 = vcmp.ge.f32.partialorder %v297, 0.0
      %vm330 = vcmp.ge.f32.partialorder %v298, 0.0
      %vm331 = vcmp.ge.f32.partialorder %v299, 0.0
      %vm332 = vcmp.ge.f32.partialorder %v300, 0.0
      %vm333 = vcmp.ge.f32.partialorder %v301, 0.0
      %vm334 = vcmp.ge.f32.partialorder %v302, 0.0
      %vm335 = vcmp.ge.f32.partialorder %v303, 0.0
      %vm336 = vcmp.ge.f32.partialorder %v304, 0.0
      %vm337 = vcmp.ge.f32.partialorder %v305, 0.0
      %vm338 = vcmp.ge.f32.partialorder %v306, 0.0
      %vm339 = vcmp.ge.f32.partialorder %v307, 0.0
      %vm340 = vcmp.ge.f32.partialorder %v308, 0.0
      %vm341 = vcmp.ge.f32.partialorder %v309, 0.0
      %vm342 = vcmp.ge.f32.partialorder %v310, 0.0
      %vm343 = vcmp.ge.f32.partialorder %v311, 0.0
      %vm344 = vcmp.ge.f32.partialorder %v312, 0.0
      %vm345 = vcmp.ge.f32.partialorder %v313, 0.0
      %vm346 = vcmp.ge.f32.partialorder %v314, 0.0
      %vm347 = vcmp.ge.f32.partialorder %v315, 0.0
      %v348 = vmul.f32 %v284, 0.1
      %v349 = vmul.f32 %v285, 0.1
      %v350 = vmul.f32 %v286, 0.1
      %v351 = vmul.f32 %v287, 0.1
      %v352 = vmul.f32 %v288, 0.1
      %v353 = vmul.f32 %v289, 0.1
      %v354 = vmul.f32 %v290, 0.1
      %v355 = vmul.f32 %v291, 0.1
      %v356 = vmul.f32 %v292, 0.1
      %v357 = vmul.f32 %v293, 0.1
      %v358 = vmul.f32 %v294, 0.1
      %v359 = vmul.f32 %v295, 0.1
      %v360 = vmul.f32 %v296, 0.1
      %v361 = vmul.f32 %v297, 0.1
      %v362 = vmul.f32 %v298, 0.1
      %v363 = vmul.f32 %v299, 0.1
      %v364 = vmul.f32 %v300, 0.1
      %v365 = vmul.f32 %v301, 0.1
      %v366 = vmul.f32 %v302, 0.1
      %v367 = vmul.f32 %v303, 0.1
      %v368 = vmul.f32 %v304, 0.1
      %v369 = vmul.f32 %v305, 0.1
      %v370 = vmul.f32 %v306, 0.1
      %v371 = vmul.f32 %v307, 0.1
      %v372 = vmul.f32 %v308, 0.1
      %v373 = vmul.f32 %v309, 0.1
      %v374 = vmul.f32 %v310, 0.1
      %v375 = vmul.f32 %v311, 0.1
      %v376 = vmul.f32 %v312, 0.1
      %v377 = vmul.f32 %v313, 0.1
      %v378 = vmul.f32 %v314, 0.1
      %v379 = vmul.f32 %v315, 0.1
      %v380 = vsel %vm316, %v284, %v348
      %v381 = vsel %vm317, %v285, %v349
      %v382 = vsel %vm318, %v286, %v350
      %v383 = vsel %vm319, %v287, %v351
      %v384 = vsel %vm320, %v288, %v352
      %v385 = vsel %vm321, %v289, %v353
      %v386 = vsel %vm322, %v290, %v354
      %v387 = vsel %vm323, %v291, %v355
      %v388 = vsel %vm324, %v292, %v356
      %v389 = vsel %vm325, %v293, %v357
      %v390 = vsel %vm326, %v294, %v358
      %v391 = vsel %vm327, %v295, %v359
      %v392 = vsel %vm328, %v296, %v360
      %v393 = vsel %vm329, %v297, %v361
      %v394 = vsel %vm330, %v298, %v362
      %v395 = vsel %vm331, %v299, %v363
      %v396 = vsel %vm332, %v300, %v364
      %v397 = vsel %vm333, %v301, %v365
      %v398 = vsel %vm334, %v302, %v366
      %v399 = vsel %vm335, %v303, %v367
      %v400 = vsel %vm336, %v304, %v368
      %v401 = vsel %vm337, %v305, %v369
      %v402 = vsel %vm338, %v306, %v370
      %v403 = vsel %vm339, %v307, %v371
      %v404 = vsel %vm340, %v308, %v372
      %v405 = vsel %vm341, %v309, %v373
      %v406 = vsel %vm342, %v310, %v374
      %v407 = vsel %vm343, %v311, %v375
      %v408 = vsel %vm344, %v312, %v376
      %v409 = vsel %vm345, %v313, %v377
      %v410 = vsel %vm346, %v314, %v378
      %v411 = vsel %vm347, %v315, %v379
      %v412 = vpack.c.bf16 %v381, %v380
      %v413 = vpack.c.bf16 %v383, %v382
      %v414 = vpack.c.bf16 %v385, %v384
      %v415 = vpack.c.bf16 %v387, %v386
      %v416 = vpack.c.bf16 %v389, %v388
      %v417 = vpack.c.bf16 %v391, %v390
      %v418 = vpack.c.bf16 %v393, %v392
      %v419 = vpack.c.bf16 %v395, %v394
      %v420 = vpack.c.bf16 %v397, %v396
      %v421 = vpack.c.bf16 %v399, %v398
      %v422 = vpack.c.bf16 %v401, %v400
      %v423 = vpack.c.bf16 %v403, %v402
      %v424 = vpack.c.bf16 %v405, %v404
      %v425 = vpack.c.bf16 %v407, %v406
      %v426 = vpack.c.bf16 %v409, %v408
      %v427 = vpack.c.bf16 %v411, %v410
      %v444 = vunpack.c.l.b16 %v412
      %v445 = vunpack.c.h.b16 %v412
      %v446 = vunpack.c.l.b16 %v413
      %v447 = vunpack.c.h.b16 %v413
      %v448 = vunpack.c.l.b16 %v414
      %v449 = vunpack.c.h.b16 %v414
      %v450 = vunpack.c.l.b16 %v415
      %v451 = vunpack.c.h.b16 %v415
      %v452 = vunpack.c.l.b16 %v416
      %v453 = vunpack.c.h.b16 %v416
      %v454 = vunpack.c.l.b16 %v417
      %v455 = vunpack.c.h.b16 %v417
      %v456 = vunpack.c.l.b16 %v418
      %v457 = vunpack.c.h.b16 %v418
      %v458 = vunpack.c.l.b16 %v419
      %v459 = vunpack.c.h.b16 %v419
      %v460 = vunpack.c.l.b16 %v420
      %v461 = vunpack.c.h.b16 %v420
      %v462 = vunpack.c.l.b16 %v421
      %v463 = vunpack.c.h.b16 %v421
      %v464 = vunpack.c.l.b16 %v422
      %v465 = vunpack.c.h.b16 %v422
      %v466 = vunpack.c.l.b16 %v423
      %v467 = vunpack.c.h.b16 %v423
      %v468 = vunpack.c.l.b16 %v424
      %v469 = vunpack.c.h.b16 %v424
      %v470 = vunpack.c.l.b16 %v425
      %v471 = vunpack.c.h.b16 %v425
      %v472 = vunpack.c.l.b16 %v426
      %v473 = vunpack.c.h.b16 %v426
      %v474 = vunpack.c.l.b16 %v427
      %v475 = vunpack.c.h.b16 %v427
      %v476 = vpack.c.b16 %v444, %v444
      %v477 = vpack.c.b16 %v445, %v445
      %v478 = vpack.c.b16 %v446, %v446
      %v479 = vpack.c.b16 %v447, %v447
      %v480 = vpack.c.b16 %v448, %v448
      %v481 = vpack.c.b16 %v449, %v449
      %v482 = vpack.c.b16 %v450, %v450
      %v483 = vpack.c.b16 %v451, %v451
      %v484 = vpack.c.b16 %v452, %v452
      %v485 = vpack.c.b16 %v453, %v453
      %v486 = vpack.c.b16 %v454, %v454
      %v487 = vpack.c.b16 %v455, %v455
      %v488 = vpack.c.b16 %v456, %v456
      %v489 = vpack.c.b16 %v457, %v457
      %v490 = vpack.c.b16 %v458, %v458
      %v491 = vpack.c.b16 %v459, %v459
      %v492 = vpack.c.b16 %v460, %v460
      %v493 = vpack.c.b16 %v461, %v461
      %v494 = vpack.c.b16 %v462, %v462
      %v495 = vpack.c.b16 %v463, %v463
      %v496 = vpack.c.b16 %v464, %v464
      %v497 = vpack.c.b16 %v465, %v465
      %v498 = vpack.c.b16 %v466, %v466
      %v499 = vpack.c.b16 %v467, %v467
      %v500 = vpack.c.b16 %v468, %v468
      %v501 = vpack.c.b16 %v469, %v469
      %v502 = vpack.c.b16 %v470, %v470
      %v503 = vpack.c.b16 %v471, %v471
      %v504 = vpack.c.b16 %v472, %v472
      %v505 = vpack.c.b16 %v473, %v473
      %v506 = vpack.c.b16 %v474, %v474
      %v507 = vpack.c.b16 %v475, %v475
      %540 = vst [vmem:[%s172] sm:$0xf] %v476
      %541 = vst [vmem:[%s172 + $0x4] sm:$0xf] %v477
      %542 = vst [vmem:[%s172 + $0x8] sm:$0xf] %v478
      %543 = vst [vmem:[%s172 + $0xc] sm:$0xf] %v479
      %544 = vst [vmem:[%s172 + $0x10] sm:$0xf] %v480
      %545 = vst [vmem:[%s172 + $0x14] sm:$0xf] %v481
      %546 = vst [vmem:[%s172 + $0x18] sm:$0xf] %v482
      %547 = vst [vmem:[%s172 + $0x1c] sm:$0xf] %v483
      %548 = vst [vmem:[%s172 + $0x20] sm:$0xf] %v484
      %549 = vst [vmem:[%s172 + $0x24] sm:$0xf] %v485
      %550 = vst [vmem:[%s172 + $0x28] sm:$0xf] %v486
      %551 = vst [vmem:[%s172 + $0x2c] sm:$0xf] %v487
      %552 = vst [vmem:[%s172 + $0x30] sm:$0xf] %v488
      %553 = vst [vmem:[%s172 + $0x34] sm:$0xf] %v489
      %554 = vst [vmem:[%s172 + $0x38] sm:$0xf] %v490
      %555 = vst [vmem:[%s172 + $0x3c] sm:$0xf] %v491
      %556 = vst [vmem:[%s172 + $0x40] sm:$0xf] %v492
      %557 = vst [vmem:[%s172 + $0x44] sm:$0xf] %v493
      %558 = vst [vmem:[%s172 + $0x48] sm:$0xf] %v494
      %559 = vst [vmem:[%s172 + $0x4c] sm:$0xf] %v495
      %560 = vst [vmem:[%s172 + $0x50] sm:$0xf] %v496
      %561 = vst [vmem:[%s172 + $0x54] sm:$0xf] %v497
      %562 = vst [vmem:[%s172 + $0x58] sm:$0xf] %v498
      %563 = vst [vmem:[%s172 + $0x5c] sm:$0xf] %v499
      %564 = vst [vmem:[%s172 + $0x60] sm:$0xf] %v500
      %565 = vst [vmem:[%s172 + $0x64] sm:$0xf] %v501
      %566 = vst [vmem:[%s172 + $0x68] sm:$0xf] %v502
      %567 = vst [vmem:[%s172 + $0x6c] sm:$0xf] %v503
      %568 = vst [vmem:[%s172 + $0x70] sm:$0xf] %v504
      %569 = vst [vmem:[%s172 + $0x74] sm:$0xf] %v505
      %570 = vst [vmem:[%s172 + $0x78] sm:$0xf] %v506
      %571 = vst [vmem:[%s172 + $0x7c] sm:$0xf] %v507
      %s572 = smul.u32 32, %s14
      %p573 = scmp.lt.s32.totalorder %s572, 63
      %s574 = scalar_select %p573, %s572, 63
      %s575 = smul.addr %s574, 4
      %s576 = scalar_lea.vmem %s3, %s575
      // Predicated region
      $region33: #{residual_block_forward.5} parent=31 // pred_check
        %p577 = pneg %p100
      $region34: #{residual_block_forward.5} parent=31 // pred_check_branch
        %579 = sbr.rel (%p577) target = $region36
      $region35: #{residual_block_forward.5} parent=31 // pred_region
        %s580 = smul.u32 32, %s14
      $region36: #{residual_block_forward.5} parent=31 // pred_fallthru
        _
    $region32: #{residual_block_forward.5} parent=5 // pred_fallthru
      _
    %p581 = scmp.le.s32.totalorder 2, %s9
    // Predicated region
    $region37: #{residual_block_forward.5} parent=5 // pred_check
      %p582 = pneg %p581
    $region38: #{residual_block_forward.5} parent=5 // pred_check_branch
      %584 = sbr.rel (%p582) target = $region40
    $region39: #{residual_block_forward.5} parent=5 // pred_region
      %s585 = ssub.s32 %s9, 2
      // Predicated region
      $region41: #{residual_block_forward.5} parent=39 // pred_check
        %p586 = pneg %p106
      $region42: #{residual_block_forward.5} parent=39 // pred_check_branch
        %588 = sbr.rel (%p586) target = $region44
      $region43: #{residual_block_forward.5} parent=39 // pred_region
        %s589 = smul.u32 32, %s15
        %p590 = scmp.lt.s32.totalorder %s589, 63
        %s591 = scalar_select %p590, %s589, 63
        %s592 = smul.addr %s591, 4
        %s593 = scalar_lea.vmem %s3, %s592
      $region44: #{residual_block_forward.5} parent=39 // pred_fallthru
        _
    $region40: #{residual_block_forward.5} parent=5 // pred_fallthru
      _
  $region6: #{residual_block_forward.5} parent=0 // loop_footer
    %s13 = sadd.s32 1, %s9
  $region7: #{residual_block_forward.5} parent=0 // loop_footer_branch
    %8 = sbr.rel target = $region3
  $region8: #{residual_block_forward.5} parent=0 // loop_exit
    _

// kernel: residual_block_forward.4
$region0: #{residual_block_forward.4}
  #allocation0 [shape = 'u32[]', space=smem, size = 0x4, offset = 0x4, fixed_abs, tag = 'smem constant byte address 0x4 - core index']
  #allocation1 [shape = 'u32[144,128]{1,0:T(1,128)}', space=vmem, size = 0x12000, scoped, tag = 'internal scratch']
  %s0 = inlined_call_operand.hbm [shape: f32[512,64], index: 0, kind: input, shape index: {}]
  %s1 = inlined_call_operand.hbm [shape: bf16[64,128], index: 1, kind: input, shape index: {}]
  %s2 = inlined_call_operand.vmem [shape: bf16[512,128], index: 2, kind: output, shape index: {0}]
  %s3 = inlined_call_operand.vmem [shape: f32[2,1,128], index: 3, kind: output, shape index: {1}]
  %s4 = inlined_call_operand.vmem [shape: f32[2,1,128], index: 4, kind: output, shape index: {2}]
  %5 = xla_tuple %s2, %s3, %s4
  %s6 = sld [smem:[#allocation0]]
  $region65: #{residual_block_forward.4} parent=0
    _
  %s8 = ssub.s32 1, %s6
  %s9 = scalar_select 0, %s8, %s6
  $region1: #{residual_block_forward.4} parent=0
    #allocation2 [shape = 'u8[262144]{0}', space=vmem, size = 0x40000, scoped, tag = 'input window, operand 0']
    #allocation3 [shape = 's32[2]{0}', space=sflag, size = 0x8, scoped, tag = 'scoped memory for residual_block_forward.4']
    #allocation4 [shape = 'u8[16384]{0}', space=vmem, size = 0x4000, scoped, tag = 'input window, operand 1, single buffered']
    #allocation5 [shape = 's32[1]{0}', space=sflag, size = 0x4, scoped, tag = 'scoped memory for residual_block_forward.4']
    %10 = vsyncpa [#allocation3], 0
    %s11 = scalar_lea.sflag [#allocation3], 1
    %12 = vsyncpa %s11, 0
    %13 = vsyncpa [#allocation5], 0
    loop: start=0, step=1, limit=4
    $region2: #{residual_block_forward.4} parent=1 // loop_pre_header
      _
    $region3: #{residual_block_forward.4} parent=1 // loop_header
      %s15 = sphi 0, %s19
      %p16 = scmp.ge.s32.totalorder %s15, 4
      %s22 = sphi 0, %s34
      %s23 = sphi 0, %s30
      %s24 = sphi 0, %s22
      %s25 = sphi 0, %s23
      %s26 = sphi 0, %s24
      %s27 = sphi 0, %s25
      %s37 = sphi 0, %s39
      %s40 = sphi 0, %s37
      %s41 = sphi 0, %s40
      %s57 = sphi 0, %s41
      %s63 = sphi 0, %s65
      %s66 = sphi 0, %s63
      %s67 = sphi 0, %s66
      %s83 = sphi 0, %s67
      %s91 = sphi 0, %s93
      %s94 = sphi 0, %s91
      %s95 = sphi 0, %s94
      %s111 = sphi 0, %s95
      %s119 = sphi 0, %s121
      %s122 = sphi 0, %s119
      %s123 = sphi 0, %s122
      %s139 = sphi 0, %s123
      %s147 = sphi 0, %s149
      %s150 = sphi 0, %s147
      %s151 = sphi 0, %s150
      %s167 = sphi 0, %s151
    $region4: #{residual_block_forward.4} parent=1 // loop_header_branch
      %18 = sbr.rel (%p16) target = $region8
    $region5: #{residual_block_forward.4} parent=1 // loop_body
      %s20 = ssub.s32 %s15, 1
      %s21 = ssub.s32 %s15, 2
      %s28 = sadd.s32 1, %s23
      %p29 = scmp.ge.s32.totalorder %s28, 1
      %s30 = scalar_select %p29, 0, %s28
      %s31 = sadd.s32 1, %s22
      %s32 = scalar_select %p29, %s31, %s22
      %p33 = scmp.ge.s32.totalorder %s32, 2
      %s34 = scalar_select %p33, 0, %s32
      %s35 = ssub.s32 %s22, %s34
      %p36 = scmp.eq.s32.totalorder %s35, 0
      %s38 = sadd.s32 %s37, 1
      %s39 = scalar_select %p36, %s37, %s38
      %p42 = pneg %p36
      %p43 = scmp.eq.s32.totalorder %s15, 1
      %p44 = por %p42, %p43
      %p45 = scmp.ne.s32.totalorder %s37, %s40
      %p46 = scmp.eq.s32.totalorder %s15, 0
      %p47 = por %p45, %p46
      %p48 = scmp.ne.s32.totalorder %s37, %s40
      %p49 = scmp.eq.s32.totalorder %s20, 1
      %p50 = por %p48, %p49
      %p51 = scmp.ne.s32.totalorder %s40, %s41
      %p52 = scmp.eq.s32.totalorder %s20, 0
      %p53 = por %p51, %p52
      %p54 = scmp.ne.s32.totalorder %s40, %s41
      %p55 = scmp.eq.s32.totalorder %s21, 1
      %p56 = por %p54, %p55
      %p58 = scmp.ne.s32.totalorder %s41, %s57
      %p59 = scmp.eq.s32.totalorder %s21, 0
      %p60 = por %p58, %p59
      %s61 = ssub.s32 %s23, %s30
      %p62 = scmp.eq.s32.totalorder %s61, 0
      %s64 = sadd.s32 %s63, 1
      %s65 = scalar_select %p62, %s63, %s64
      %p68 = pneg %p62
      %p69 = scmp.eq.s32.totalorder %s15, 1
      %p70 = por %p68, %p69
      %p71 = scmp.ne.s32.totalorder %s63, %s66
      %p72 = scmp.eq.s32.totalorder %s15, 0
      %p73 = por %p71, %p72
      %p74 = scmp.ne.s32.totalorder %s63, %s66
      %p75 = scmp.eq.s32.totalorder %s20, 1
      %p76 = por %p74, %p75
      %p77 = scmp.ne.s32.totalorder %s66, %s67
      %p78 = scmp.eq.s32.totalorder %s20, 0
      %p79 = por %p77, %p78
      %p80 = scmp.ne.s32.totalorder %s66, %s67
      %p81 = scmp.eq.s32.totalorder %s21, 1
      %p82 = por %p80, %p81
      %p84 = scmp.ne.s32.totalorder %s67, %s83
      %p85 = scmp.eq.s32.totalorder %s21, 0
      %p86 = por %p84, %p85
      %s87 = ssub.s32 %s22, %s34
      %s88 = ssub.s32 %s23, %s30
      %s89 = sor.u32 %s87, %s88
      %p90 = scmp.eq.s32.totalorder %s89, 0
      %s92 = sadd.s32 %s91, 1
      %s93 = scalar_select %p90, %s91, %s92
      %p96 = pneg %p90
      %p97 = scmp.eq.s32.totalorder %s15, 1
      %p98 = por %p96, %p97
      %p99 = scmp.ne.s32.totalorder %s91, %s94
      %p100 = scmp.eq.s32.totalorder %s15, 0
      %p101 = por %p99, %p100
      %p102 = scmp.ne.s32.totalorder %s91, %s94
      %p103 = scmp.eq.s32.totalorder %s20, 1
      %p104 = por %p102, %p103
      %p105 = scmp.ne.s32.totalorder %s94, %s95
      %p106 = scmp.eq.s32.totalorder %s20, 0
      %p107 = por %p105, %p106
      %p108 = scmp.ne.s32.totalorder %s94, %s95
      %p109 = scmp.eq.s32.totalorder %s21, 1
      %p110 = por %p108, %p109
      %p112 = scmp.ne.s32.totalorder %s95, %s111
      %p113 = scmp.eq.s32.totalorder %s21, 0
      %p114 = por %p112, %p113
      %s115 = ssub.s32 %s22, %s34
      %s116 = ssub.s32 %s23, %s30
      %s117 = sor.u32 %s115, %s116
      %p118 = scmp.eq.s32.totalorder %s117, 0
      %s120 = sadd.s32 %s119, 1
      %s121 = scalar_select %p118, %s119, %s120
      %p124 = pneg %p118
      %p125 = scmp.eq.s32.totalorder %s15, 1
      %p126 = por %p124, %p125
      %p127 = scmp.ne.s32.totalorder %s119, %s122
      %p128 = scmp.eq.s32.totalorder %s15, 0
      %p129 = por %p127, %p128
      %p130 = scmp.ne.s32.totalorder %s119, %s122
      %p131 = scmp.eq.s32.totalorder %s20, 1
      %p132 = por %p130, %p131
      %p133 = scmp.ne.s32.totalorder %s122, %s123
      %p134 = scmp.eq.s32.totalorder %s20, 0
      %p135 = por %p133, %p134
      %p136 = scmp.ne.s32.totalorder %s122, %s123
      %p137 = scmp.eq.s32.totalorder %s21, 1
      %p138 = por %p136, %p137
      %p140 = scmp.ne.s32.totalorder %s123, %s139
      %p141 = scmp.eq.s32.totalorder %s21, 0
      %p142 = por %p140, %p141
      %s143 = ssub.s32 %s22, %s34
      %s144 = ssub.s32 %s23, %s30
      %s145 = sor.u32 %s143, %s144
      %p146 = scmp.eq.s32.totalorder %s145, 0
      %s148 = sadd.s32 %s147, 1
      %s149 = scalar_select %p146, %s147, %s148
      %p152 = pneg %p146
      %p153 = scmp.eq.s32.totalorder %s15, 1
      %p154 = por %p152, %p153
      %p155 = scmp.ne.s32.totalorder %s147, %s150
      %p156 = scmp.eq.s32.totalorder %s15, 0
      %p157 = por %p155, %p156
      %p158 = scmp.ne.s32.totalorder %s147, %s150
      %p159 = scmp.eq.s32.totalorder %s20, 1
      %p160 = por %p158, %p159
      %p161 = scmp.ne.s32.totalorder %s150, %s151
      %p162 = scmp.eq.s32.totalorder %s20, 0
      %p163 = por %p161, %p162
      %p164 = scmp.ne.s32.totalorder %s150, %s151
      %p165 = scmp.eq.s32.totalorder %s21, 1
      %p166 = por %p164, %p165
      %p168 = scmp.ne.s32.totalorder %s151, %s167
      %p169 = scmp.eq.s32.totalorder %s21, 0
      %p170 = por %p168, %p169
      %p171 = scmp.le.s32.totalorder 1, %s15
      %p172 = scmp.lt.s32.totalorder %s15, 3
      %p173 = pnand %p171, %p172
      %p174 = pneg %p173
      // Predicated region
      $region9: #{residual_block_forward.4} parent=5 // pred_check
        _
      $region10: #{residual_block_forward.4} parent=5 // pred_check_branch
        %176 = sbr.rel (%p173) target = $region12
      $region11: #{residual_block_forward.4} parent=5 // pred_region
        %s177 = ssub.s32 %s15, 1
        // Predicated region
        $region13: #{residual_block_forward.4} parent=11 // pred_check
          %p178 = pneg %p79
        $region14: #{residual_block_forward.4} parent=11 // pred_check_branch
          %180 = sbr.rel (%p178) target = $region16
        $region15: #{residual_block_forward.4} parent=11 // pred_region
          %s182 = ssub.s32 512, 512
          %183 = vsyncadd [#allocation5], %s182
          %s184 = smul.addr %s25, 64
          %s185 = scalar_lea.hbm %s1, %s184
          %s186 = sshll.u32 [#allocation4], 4
          %s187 = int_to_ptr.vmem [resolvable:$true] %s186
          %192 = dma.hbm_to_vmem [thread:$0]  %s185, 512, %s187, [#allocation5], 64, 64, 4
        $region16: #{residual_block_forward.4} parent=11 // pred_fallthru
          _
      $region12: #{residual_block_forward.4} parent=5 // pred_fallthru
        _
      %p193 = scmp.lt.s32.totalorder %s15, 2
      // Predicated region
      $region17: #{residual_block_forward.4} parent=5 // pred_check
        %p194 = pneg %p193
      $region18: #{residual_block_forward.4} parent=5 // pred_check_branch
        %196 = sbr.rel (%p194) target = $region20
      $region19: #{residual_block_forward.4} parent=5 // pred_region
        // Predicated region
        $region21: #{residual_block_forward.4} parent=19 // pred_check
          %p197 = pneg %p47
        $region22: #{residual_block_forward.4} parent=19 // pred_check_branch
          %199 = sbr.rel (%p197) target = $region24
        $region23: #{residual_block_forward.4} parent=19 // pred_region
          %s200 = sand.u32 %s37, 1
          %s201 = scalar_lea.sflag [#allocation3], %s200
          %s202 = sand.u32 %s37, 1
          %s203 = smul.addr %s202, 256
          %s204 = scalar_lea.vmem [#allocation2], %s203
          %s205 = smul.u32 32, %s22
          %s207 = ssub.s32 4096, 4096
          %208 = vsyncadd %s201, %s207
          %s209 = smul.addr %s205, 128
          %s210 = scalar_lea.hbm %s0, %s209
          %s211 = sshll.u32 %s204, 4
          %s212 = int_to_ptr.vmem [resolvable:$true] %s211
          %217 = dma.hbm_to_vmem [thread:$0]  %s210, 4096, %s212, %s201, 128, 128, 8
        $region24: #{residual_block_forward.4} parent=19 // pred_fallthru
          _
      $region20: #{residual_block_forward.4} parent=5 // pred_fallthru
        _
      %p218 = scmp.le.s32.totalorder 1, %s15
      %p219 = scmp.lt.s32.totalorder %s15, 3
      %p220 = pnand %p218, %p219
      %p221 = pneg %p220
      // Predicated region
      $region25: #{residual_block_forward.4} parent=5 // pred_check
        _
      $region26: #{residual_block_forward.4} parent=5 // pred_check_branch
        %223 = sbr.rel (%p220) target = $region28
      $region27: #{residual_block_forward.4} parent=5 // pred_region
        %s224 = ssub.s32 %s15, 1
        %s225 = sand.u32 %s40, 1
        %s226 = scalar_lea.sflag [#allocation3], %s225
        %s227 = sand.u32 %s40, 1
        %s228 = smul.addr %s227, 256
        %s229 = scalar_lea.vmem [#allocation2], %s228
        // Predicated region
        $region29: #{residual_block_forward.4} parent=27 // pred_check
          %p230 = pneg %p53
        $region30: #{residual_block_forward.4} parent=27 // pred_check_branch
          %232 = sbr.rel (%p230) target = $region32
        $region31: #{residual_block_forward.4} parent=27 // pred_region
          %233 = dma.done %s226, 4096
        $region32: #{residual_block_forward.4} parent=27 // pred_fallthru
          _
        // Predicated region
        $region33: #{residual_block_forward.4} parent=27 // pred_check
          %p234 = pneg %p79
        $region34: #{residual_block_forward.4} parent=27 // pred_check_branch
          %236 = sbr.rel (%p234) target = $region36
        $region35: #{residual_block_forward.4} parent=27 // pred_region
          %237 = dma.done [#allocation5], 512
        $region36: #{residual_block_forward.4} parent=27 // pred_fallthru
          _
        %s238 = sand.u32 %s40, 1
        %s239 = scalar_lea.sflag [#allocation3], %s238
        %s240 = sand.u32 %s40, 1
        %s241 = smul.addr %s240, 256
        %s242 = scalar_lea.vmem [#allocation2], %s241
        %p243 = pneg %p53
        %p244 = pneg %p50
        %p245 = pneg %p79
        %p246 = pneg %p76
        %p247 = pneg %p107
        %p248 = pneg %p104
        %s249 = smul.u32 32, %s24
        %p250 = scmp.lt.s32.totalorder %s249, 63
        %s251 = scalar_select %p250, %s249, 63
        %p252 = scmp.lt.s32.totalorder %s25, 0
        %s253 = scalar_select %p252, %s25, 0
        %s254 = sadd.s32 %s253, %s251
        %s255 = smul.addr %s254, 4
        %s256 = scalar_lea.vmem %s2, %s255
        %p257 = pneg %p135
        %p258 = pneg %p132
        %p259 = scmp.lt.s32.totalorder %s24, 1
        %s260 = scalar_select %p259, %s24, 1
        %p261 = scmp.lt.s32.totalorder %s25, 0
        %s262 = scalar_select %p261, %s25, 0
        %s263 = sadd.s32 %s262, %s260
        %s264 = scalar_lea.vmem %s3, %s263
        %p265 = pneg %p163
        %p266 = pneg %p160
        %p267 = scmp.lt.s32.totalorder %s24, 1
        %s268 = scalar_select %p267, %s24, 1
        %p269 = scmp.lt.s32.totalorder %s25, 0
        %s270 = scalar_select %p269, %s25, 0
        %s271 = sadd.s32 %s270, %s268
        %s272 = scalar_lea.vmem %s4, %s271
        %s273 = smul.u32 32, %s24
        %s274 = smul.u32 32, %s24
        %p275 = scmp.lt.s32.totalorder %s274, 63
        %s276 = scalar_select %p275, %s274, 63
        %p277 = scmp.lt.s32.totalorder %s25, 0
        %s278 = scalar_select %p277, %s25, 0
        %s279 = sadd.s32 %s278, %s276
        %s280 = smul.addr %s279, 4
        %s281 = scalar_lea.vmem %s2, %s280
        %s282 = smul.u32 32, %s24
        %p283 = scmp.lt.s32.totalorder %s24, 1
        %s284 = scalar_select %p283, %s24, 1
        %p285 = scmp.lt.s32.totalorder %s25, 0
        %s286 = scalar_select %p285, %s25, 0
        %s287 = sadd.s32 %s286, %s284
        %s288 = scalar_lea.vmem %s3, %s287
        %p289 = scmp.lt.s32.totalorder %s24, 1
        %s290 = scalar_select %p289, %s24, 1
        %p291 = scmp.lt.s32.totalorder %s25, 0
        %s292 = scalar_select %p291, %s25, 0
        %s293 = sadd.s32 %s292, %s290
        %s294 = scalar_lea.vmem %s4, %s293
        %v296 = vld [vmem:[%s229] sm:$0xff]
        %v297 = vld [vmem:[%s229 + $0x8] sm:$0xff]
        %v298 = vld [vmem:[%s229 + $0x10] sm:$0xff]
        %v299 = vld [vmem:[%s229 + $0x18] sm:$0xff]
        %v300 = vld [vmem:[%s229 + $0x20] sm:$0xff]
        %v301 = vld [vmem:[%s229 + $0x28] sm:$0xff]
        %v302 = vld [vmem:[%s229 + $0x30] sm:$0xff]
        %v303 = vld [vmem:[%s229 + $0x38] sm:$0xff]
        %v304 = vld [vmem:[%s229 + $0x40] sm:$0xff]
        %v305 = vld [vmem:[%s229 + $0x48] sm:$0xff]
        %v306 = vld [vmem:[%s229 + $0x50] sm:$0xff]
        %v307 = vld [vmem:[%s229 + $0x58] sm:$0xff]
        %v308 = vld [vmem:[%s229 + $0x60] sm:$0xff]
        %v309 = vld [vmem:[%s229 + $0x68] sm:$0xff]
        %v310 = vld [vmem:[%s229 + $0x70] sm:$0xff]
        %v311 = vld [vmem:[%s229 + $0x78] sm:$0xff]
        %v312 = vld [vmem:[%s229 + $0x80] sm:$0xff]
        %v313 = vld [vmem:[%s229 + $0x88] sm:$0xff]
        %v314 = vld [vmem:[%s229 + $0x90] sm:$0xff]
        %v315 = vld [vmem:[%s229 + $0x98] sm:$0xff]
        %v316 = vld [vmem:[%s229 + $0xa0] sm:$0xff]
        %v317 = vld [vmem:[%s229 + $0xa8] sm:$0xff]
        %v318 = vld [vmem:[%s229 + $0xb0] sm:$0xff]
        %v319 = vld [vmem:[%s229 + $0xb8] sm:$0xff]
        %v320 = vld [vmem:[%s229 + $0xc0] sm:$0xff]
        %v321 = vld [vmem:[%s229 + $0xc8] sm:$0xff]
        %v322 = vld [vmem:[%s229 + $0xd0] sm:$0xff]
        %v323 = vld [vmem:[%s229 + $0xd8] sm:$0xff]
        %v324 = vld [vmem:[%s229 + $0xe0] sm:$0xff]
        %v325 = vld [vmem:[%s229 + $0xe8] sm:$0xff]
        %v326 = vld [vmem:[%s229 + $0xf0] sm:$0xff]
        %v327 = vld [vmem:[%s229 + $0xf8] sm:$0xff]
        %v328 = vpack.c.bf16 %v297, %v296
        %v329 = vpack.c.bf16 %v299, %v298
        %v330 = vpack.c.bf16 %v301, %v300
        %v331 = vpack.c.bf16 %v303, %v302
        %v332 = vpack.c.bf16 %v305, %v304
        %v333 = vpack.c.bf16 %v307, %v306
        %v334 = vpack.c.bf16 %v309, %v308
        %v335 = vpack.c.bf16 %v311, %v310
        %v336 = vpack.c.bf16 %v313, %v312
        %v337 = vpack.c.bf16 %v315, %v314
        %v338 = vpack.c.bf16 %v317, %v316
        %v339 = vpack.c.bf16 %v319, %v318
        %v340 = vpack.c.bf16 %v321, %v320
        %v341 = vpack.c.bf16 %v323, %v322
        %v342 = vpack.c.bf16 %v325, %v324
        %v343 = vpack.c.bf16 %v327, %v326
        %v344 = vld [vmem:[#allocation4] sm:$0xf]
        %v345 = vld [vmem:[#allocation4 + $0x4] sm:$0xf]
        %v346 = vld [vmem:[#allocation4 + $0x8] sm:$0xf]
        %v347 = vld [vmem:[#allocation4 + $0xc] sm:$0xf]
        %v348 = vld [vmem:[#allocation4 + $0x10] sm:$0xf]
        %v349 = vld [vmem:[#allocation4 + $0x14] sm:$0xf]
        %v350 = vld [vmem:[#allocation4 + $0x18] sm:$0xf]
        %v351 = vld [vmem:[#allocation4 + $0x1c] sm:$0xf]
        %v360 = vunpack.c.l.b16 %v344
        %v361 = vunpack.c.l.b16 %v345
        %v362 = vunpack.c.l.b16 %v346
        %v363 = vunpack.c.l.b16 %v347
        %v364 = vunpack.c.l.b16 %v348
        %v365 = vunpack.c.l.b16 %v349
        %v366 = vunpack.c.l.b16 %v350
        %v367 = vunpack.c.l.b16 %v351
        %v368 = vpack.c.b16 %v361, %v360
        %v369 = vpack.c.b16 %v363, %v362
        %v370 = vpack.c.b16 %v365, %v364
        %v371 = vpack.c.b16 %v367, %v366
        %vm376 = vcmask 523264
        %v378 = vsel %vm376, %v328, 0
        %v381 = vsel %vm376, %v329, 0
        %v384 = vsel %vm376, %v330, 0
        %v387 = vsel %vm376, %v331, 0
        %v390 = vsel %vm376, %v332, 0
        %v393 = vsel %vm376, %v333, 0
        %v396 = vsel %vm376, %v334, 0
        %v399 = vsel %vm376, %v335, 0
        %v402 = vsel %vm376, %v336, 0
        %v405 = vsel %vm376, %v337, 0
        %v408 = vsel %vm376, %v338, 0
        %v411 = vsel %vm376, %v339, 0
        %v414 = vsel %vm376, %v340, 0
        %v417 = vsel %vm376, %v341, 0
        %v420 = vsel %vm376, %v342, 0
        %v423 = vsel %vm376, %v343, 0
        %425 = vmatprep.subr.bf16.mxu0 0
        %426 = vmatpush1.bf16.msra.mxu0 0
        %427 = vmatprep.subr.bf16.mxu0 0
        %428 = vmatpush1.bf16.msra.mxu0 0
        %429 = vmatprep.subr.bf16.mxu0 0
        %430 = vmatpush1.bf16.msra.mxu0 0
        %431 = vmatprep.subr.bf16.mxu0 0
        %432 = vmatpush1.bf16.msra.mxu0 0
        %433 = vmatprep.subr.bf16.mxu0 0
        %434 = vmatpush1.bf16.msra.mxu0 %v371
        %435 = vmatprep.subr.bf16.mxu0 0
        %436 = vmatpush1.bf16.msra.mxu0 %v370
        %437 = vmatprep.subr.bf16.mxu0 0
        %438 = vmatpush1.bf16.msra.mxu0 %v369
        %439 = vmatprep.subr.bf16.mxu0 0
        %440 = vmatpush1.bf16.msra.mxu0 %v368
        %441 = vmatprep.subr.bf16.mxu0 0
        %442 = vmatpush2.bf16.msra.mxu0 0
        %443 = vmatprep.subr.bf16.mxu0 0
        %444 = vmatpush2.bf16.msra.mxu0 0
        %445 = vmatprep.subr.bf16.mxu0 0
        %446 = vmatpush2.bf16.msra.mxu0 0
        %447 = vmatprep.subr.bf16.mxu0 0
        %448 = vmatpush2.bf16.msra.mxu0 0
        %449 = vmatprep.subr.bf16.mxu0 0
        %450 = vmatpush2.bf16.msra.mxu0 0
        %451 = vmatprep.subr.bf16.mxu0 0
        %452 = vmatpush2.bf16.msra.mxu0 0
        %453 = vmatprep.subr.bf16.mxu0 0
        %454 = vmatpush2.bf16.msra.mxu0 0
        %455 = vmatprep.subr.bf16.mxu0 0
        %456 = vmatpush2.bf16.msra.mxu0 0
        %457 = vmatprep.mubr.bf16.mxu0 0
        %458 = vmatmul.mubr.bf16.gmra.mxu0 %v378
        %v459 = vpop.f32.mrf.mxu0
        %v460 = vadd.f32 0.0, %v459
        %v461 = vpop.f32.mrf.mxu0
        %v462 = vpop.f32.mrf.mxu0
        %v463 = vadd.f32 0.0, %v462
        %v464 = vpop.f32.mrf.mxu0
        %465 = vmatprep.mubr.bf16.mxu0 0
        %466 = vmatmul.mubr.bf16.gmra.mxu0 %v381
        %v467 = vpop.f32.mrf.mxu0
        %v468 = vadd.f32 0.0, %v467
        %v469 = vpop.f32.mrf.mxu0
        %v470 = vpop.f32.mrf.mxu0
        %v471 = vadd.f32 0.0, %v470
        %v472 = vpop.f32.mrf.mxu0
        %473 = vmatprep.mubr.bf16.mxu0 0
        %474 = vmatmul.mubr.bf16.gmra.mxu0 %v384
        %v475 = vpop.f32.mrf.mxu0
        %v476 = vadd.f32 0.0, %v475
        %v477 = vpop.f32.mrf.mxu0
        %v478 = vpop.f32.mrf.mxu0
        %v479 = vadd.f32 0.0, %v478
        %v480 = vpop.f32.mrf.mxu0
        %481 = vmatprep.mubr.bf16.mxu0 0
        %482 = vmatmul.mubr.bf16.gmra.mxu0 %v387
        %v483 = vpop.f32.mrf.mxu0
        %v484 = vadd.f32 0.0, %v483
        %v485 = vpop.f32.mrf.mxu0
        %v486 = vpop.f32.mrf.mxu0
        %v487 = vadd.f32 0.0, %v486
        %v488 = vpop.f32.mrf.mxu0
        %489 = vmatprep.mubr.bf16.mxu0 0
        %490 = vmatmul.mubr.bf16.gmra.mxu0 %v390
        %v491 = vpop.f32.mrf.mxu0
        %v492 = vadd.f32 0.0, %v491
        %v493 = vpop.f32.mrf.mxu0
        %v494 = vpop.f32.mrf.mxu0
        %v495 = vadd.f32 0.0, %v494
        %v496 = vpop.f32.mrf.mxu0
        %497 = vmatprep.mubr.bf16.mxu0 0
        %498 = vmatmul.mubr.bf16.gmra.mxu0 %v393
        %v499 = vpop.f32.mrf.mxu0
        %v500 = vadd.f32 0.0, %v499
        %v501 = vpop.f32.mrf.mxu0
        %v502 = vpop.f32.mrf.mxu0
        %v503 = vadd.f32 0.0, %v502
        %v504 = vpop.f32.mrf.mxu0
        %505 = vmatprep.mubr.bf16.mxu0 0
        %506 = vmatmul.mubr.bf16.gmra.mxu0 %v396
        %v507 = vpop.f32.mrf.mxu0
        %v508 = vadd.f32 0.0, %v507
        %v509 = vpop.f32.mrf.mxu0
        %v510 = vpop.f32.mrf.mxu0
        %v511 = vadd.f32 0.0, %v510
        %v512 = vpop.f32.mrf.mxu0
        %513 = vmatprep.mubr.bf16.mxu0 0
        %514 = vmatmul.mubr.bf16.gmra.mxu0 %v399
        %v515 = vpop.f32.mrf.mxu0
        %v516 = vadd.f32 0.0, %v515
        %v517 = vpop.f32.mrf.mxu0
        %v518 = vpop.f32.mrf.mxu0
        %v519 = vadd.f32 0.0, %v518
        %v520 = vpop.f32.mrf.mxu0
        %521 = vmatprep.mubr.bf16.mxu0 0
        %522 = vmatmul.mubr.bf16.gmra.mxu0 %v402
        %v523 = vpop.f32.mrf.mxu0
        %v524 = vadd.f32 0.0, %v523
        %v525 = vpop.f32.mrf.mxu0
        %v526 = vpop.f32.mrf.mxu0
        %v527 = vadd.f32 0.0, %v526
        %v528 = vpop.f32.mrf.mxu0
        %529 = vmatprep.mubr.bf16.mxu0 0
        %530 = vmatmul.mubr.bf16.gmra.mxu0 %v405
        %v531 = vpop.f32.mrf.mxu0
        %v532 = vadd.f32 0.0, %v531
        %v533 = vpop.f32.mrf.mxu0
        %v534 = vpop.f32.mrf.mxu0
        %v535 = vadd.f32 0.0, %v534
        %v536 = vpop.f32.mrf.mxu0
        %537 = vmatprep.mubr.bf16.mxu0 0
        %538 = vmatmul.mubr.bf16.gmra.mxu0 %v408
        %v539 = vpop.f32.mrf.mxu0
        %v540 = vadd.f32 0.0, %v539
        %v541 = vpop.f32.mrf.mxu0
        %v542 = vpop.f32.mrf.mxu0
        %v543 = vadd.f32 0.0, %v542
        %v544 = vpop.f32.mrf.mxu0
        %545 = vmatprep.mubr.bf16.mxu0 0
        %546 = vmatmul.mubr.bf16.gmra.mxu0 %v411
        %v547 = vpop.f32.mrf.mxu0
        %v548 = vadd.f32 0.0, %v547
        %v549 = vpop.f32.mrf.mxu0
        %v550 = vpop.f32.mrf.mxu0
        %v551 = vadd.f32 0.0, %v550
        %v552 = vpop.f32.mrf.mxu0
        %553 = vmatprep.mubr.bf16.mxu0 0
        %554 = vmatmul.mubr.bf16.gmra.mxu0 %v414
        %v555 = vpop.f32.mrf.mxu0
        %v556 = vadd.f32 0.0, %v555
        %v557 = vpop.f32.mrf.mxu0
        %v558 = vpop.f32.mrf.mxu0
        %v559 = vadd.f32 0.0, %v558
        %v560 = vpop.f32.mrf.mxu0
        %561 = vmatprep.mubr.bf16.mxu0 0
        %562 = vmatmul.mubr.bf16.gmra.mxu0 %v417
        %v563 = vpop.f32.mrf.mxu0
        %v564 = vadd.f32 0.0, %v563
        %v565 = vpop.f32.mrf.mxu0
        %v566 = vpop.f32.mrf.mxu0
        %v567 = vadd.f32 0.0, %v566
        %v568 = vpop.f32.mrf.mxu0
        %569 = vmatprep.mubr.bf16.mxu0 0
        %570 = vmatmul.mubr.bf16.gmra.mxu0 %v420
        %v571 = vpop.f32.mrf.mxu0
        %v572 = vadd.f32 0.0, %v571
        %v573 = vpop.f32.mrf.mxu0
        %v574 = vpop.f32.mrf.mxu0
        %v575 = vadd.f32 0.0, %v574
        %v576 = vpop.f32.mrf.mxu0
        %577 = vmatprep.mubr.bf16.mxu0 0
        %578 = vmatmul.mubr.bf16.gmra.mxu0 %v423
        %v579 = vpop.f32.mrf.mxu0
        %v580 = vadd.f32 0.0, %v579
        %v581 = vpop.f32.mrf.mxu0
        %v582 = vpop.f32.mrf.mxu0
        %v583 = vadd.f32 0.0, %v582
        %v584 = vpop.f32.mrf.mxu0
        %585 = vdwg.mxu0
        %v586 = vpack.c.bf16 %v463, %v460
        %v587 = vpack.c.bf16 %v471, %v468
        %v588 = vpack.c.bf16 %v479, %v476
        %v589 = vpack.c.bf16 %v487, %v484
        %v590 = vpack.c.bf16 %v495, %v492
        %v591 = vpack.c.bf16 %v503, %v500
        %v592 = vpack.c.bf16 %v511, %v508
        %v593 = vpack.c.bf16 %v519, %v516
        %v594 = vpack.c.bf16 %v527, %v524
        %v595 = vpack.c.bf16 %v535, %v532
        %v596 = vpack.c.bf16 %v543, %v540
        %v597 = vpack.c.bf16 %v551, %v548
        %v598 = vpack.c.bf16 %v559, %v556
        %v599 = vpack.c.bf16 %v567, %v564
        %v600 = vpack.c.bf16 %v575, %v572
        %v601 = vpack.c.bf16 %v583, %v580
        %v618 = vunpack.c.l.b16 %v586
        %v619 = vunpack.c.h.b16 %v586
        %v620 = vunpack.c.l.b16 %v587
        %v621 = vunpack.c.h.b16 %v587
        %v622 = vunpack.c.l.b16 %v588
        %v623 = vunpack.c.h.b16 %v588
        %v624 = vunpack.c.l.b16 %v589
        %v625 = vunpack.c.h.b16 %v589
        %v626 = vunpack.c.l.b16 %v590
        %v627 = vunpack.c.h.b16 %v590
        %v628 = vunpack.c.l.b16 %v591
        %v629 = vunpack.c.h.b16 %v591
        %v630 = vunpack.c.l.b16 %v592
        %v631 = vunpack.c.h.b16 %v592
        %v632 = vunpack.c.l.b16 %v593
        %v633 = vunpack.c.h.b16 %v593
        %v634 = vunpack.c.l.b16 %v594
        %v635 = vunpack.c.h.b16 %v594
        %v636 = vunpack.c.l.b16 %v595
        %v637 = vunpack.c.h.b16 %v595
        %v638 = vunpack.c.l.b16 %v596
        %v639 = vunpack.c.h.b16 %v596
        %v640 = vunpack.c.l.b16 %v597
        %v641 = vunpack.c.h.b16 %v597
        %v642 = vunpack.c.l.b16 %v598
        %v643 = vunpack.c.h.b16 %v598
        %v644 = vunpack.c.l.b16 %v599
        %v645 = vunpack.c.h.b16 %v599
        %v646 = vunpack.c.l.b16 %v600
        %v647 = vunpack.c.h.b16 %v600
        %v648 = vunpack.c.l.b16 %v601
        %v649 = vunpack.c.h.b16 %v601
        %v650 = vpack.c.b16 %v618, %v618
        %v651 = vpack.c.b16 %v619, %v619
        %v652 = vpack.c.b16 %v620, %v620
        %v653 = vpack.c.b16 %v621, %v621
        %v654 = vpack.c.b16 %v622, %v622
        %v655 = vpack.c.b16 %v623, %v623
        %v656 = vpack.c.b16 %v624, %v624
        %v657 = vpack.c.b16 %v625, %v625
        %v658 = vpack.c.b16 %v626, %v626
        %v659 = vpack.c.b16 %v627, %v627
        %v660 = vpack.c.b16 %v628, %v628
        %v661 = vpack.c.b16 %v629, %v629
        %v662 = vpack.c.b16 %v630, %v630
        %v663 = vpack.c.b16 %v631, %v631
        %v664 = vpack.c.b16 %v632, %v632
        %v665 = vpack.c.b16 %v633, %v633
        %v666 = vpack.c.b16 %v634, %v634
        %v667 = vpack.c.b16 %v635, %v635
        %v668 = vpack.c.b16 %v636, %v636
        %v669 = vpack.c.b16 %v637, %v637
        %v670 = vpack.c.b16 %v638, %v638
        %v671 = vpack.c.b16 %v639, %v639
        %v672 = vpack.c.b16 %v640, %v640
        %v673 = vpack.c.b16 %v641, %v641
        %v674 = vpack.c.b16 %v642, %v642
        %v675 = vpack.c.b16 %v643, %v643
        %v676 = vpack.c.b16 %v644, %v644
        %v677 = vpack.c.b16 %v645, %v645
        %v678 = vpack.c.b16 %v646, %v646
        %v679 = vpack.c.b16 %v647, %v647
        %v680 = vpack.c.b16 %v648, %v648
        %v681 = vpack.c.b16 %v649, %v649
        %714 = vst [vmem:[%s281] sm:$0xf] %v650
        %715 = vst [vmem:[%s281 + $0x4] sm:$0xf] %v651
        %716 = vst [vmem:[%s281 + $0x8] sm:$0xf] %v652
        %717 = vst [vmem:[%s281 + $0xc] sm:$0xf] %v653
        %718 = vst [vmem:[%s281 + $0x10] sm:$0xf] %v654
        %719 = vst [vmem:[%s281 + $0x14] sm:$0xf] %v655
        %720 = vst [vmem:[%s281 + $0x18] sm:$0xf] %v656
        %721 = vst [vmem:[%s281 + $0x1c] sm:$0xf] %v657
        %722 = vst [vmem:[%s281 + $0x20] sm:$0xf] %v658
        %723 = vst [vmem:[%s281 + $0x24] sm:$0xf] %v659
        %724 = vst [vmem:[%s281 + $0x28] sm:$0xf] %v660
        %725 = vst [vmem:[%s281 + $0x2c] sm:$0xf] %v661
        %726 = vst [vmem:[%s281 + $0x30] sm:$0xf] %v662
        %727 = vst [vmem:[%s281 + $0x34] sm:$0xf] %v663
        %728 = vst [vmem:[%s281 + $0x38] sm:$0xf] %v664
        %729 = vst [vmem:[%s281 + $0x3c] sm:$0xf] %v665
        %730 = vst [vmem:[%s281 + $0x40] sm:$0xf] %v666
        %731 = vst [vmem:[%s281 + $0x44] sm:$0xf] %v667
        %732 = vst [vmem:[%s281 + $0x48] sm:$0xf] %v668
        %733 = vst [vmem:[%s281 + $0x4c] sm:$0xf] %v669
        %734 = vst [vmem:[%s281 + $0x50] sm:$0xf] %v670
        %735 = vst [vmem:[%s281 + $0x54] sm:$0xf] %v671
        %736 = vst [vmem:[%s281 + $0x58] sm:$0xf] %v672
        %737 = vst [vmem:[%s281 + $0x5c] sm:$0xf] %v673
        %738 = vst [vmem:[%s281 + $0x60] sm:$0xf] %v674
        %739 = vst [vmem:[%s281 + $0x64] sm:$0xf] %v675
        %740 = vst [vmem:[%s281 + $0x68] sm:$0xf] %v676
        %741 = vst [vmem:[%s281 + $0x6c] sm:$0xf] %v677
        %742 = vst [vmem:[%s281 + $0x70] sm:$0xf] %v678
        %743 = vst [vmem:[%s281 + $0x74] sm:$0xf] %v679
        %744 = vst [vmem:[%s281 + $0x78] sm:$0xf] %v680
        %745 = vst [vmem:[%s281 + $0x7c] sm:$0xf] %v681
        %v746 = vadd.f32 %v460, %v463
        %v747 = vadd.f32 %v746, %v468
        %v748 = vadd.f32 %v747, %v471
        %v749 = vadd.f32 %v748, %v476
        %v750 = vadd.f32 %v749, %v479
        %v751 = vadd.f32 %v750, %v484
        %v752 = vadd.f32 %v751, %v487
        %v753 = vadd.f32 %v752, %v492
        %v754 = vadd.f32 %v753, %v495
        %v755 = vadd.f32 %v754, %v500
        %v756 = vadd.f32 %v755, %v503
        %v757 = vadd.f32 %v756, %v508
        %v758 = vadd.f32 %v757, %v511
        %v759 = vadd.f32 %v758, %v516
        %v760 = vadd.f32 %v759, %v519
        %v761 = vadd.f32 %v760, %v524
        %v762 = vadd.f32 %v761, %v527
        %v763 = vadd.f32 %v762, %v532
        %v764 = vadd.f32 %v763, %v535
        %v765 = vadd.f32 %v764, %v540
        %v766 = vadd.f32 %v765, %v543
        %v767 = vadd.f32 %v766, %v548
        %v768 = vadd.f32 %v767, %v551
        %v769 = vadd.f32 %v768, %v556
        %v770 = vadd.f32 %v769, %v559
        %v771 = vadd.f32 %v770, %v564
        %v772 = vadd.f32 %v771, %v567
        %v773 = vadd.f32 %v772, %v572
        %v774 = vadd.f32 %v773, %v575
        %v775 = vadd.f32 %v774, %v580
        %v776 = vadd.f32 %v775, %v583
        %v777 = vrot.slane %v776, 4
        %v778 = vadd.f32 %v776, %v777
        %v779 = vrot.slane %v778, 2
        %v780 = vadd.f32 %v778, %v779
        %v781 = vrot.slane %v780, 1
        %v782 = vadd.f32 %v780, %v781
        %783 = vst [vmem:[%s288] sm:$0x1] %v782
        %v784 = vmul.f32 %v460, %v460
        %v785 = vmul.f32 %v463, %v463
        %v786 = vmul.f32 %v468, %v468
        %v787 = vmul.f32 %v471, %v471
        %v788 = vmul.f32 %v476, %v476
        %v789 = vmul.f32 %v479, %v479
        %v790 = vmul.f32 %v484, %v484
        %v791 = vmul.f32 %v487, %v487
        %v792 = vmul.f32 %v492, %v492
        %v793 = vmul.f32 %v495, %v495
        %v794 = vmul.f32 %v500, %v500
        %v795 = vmul.f32 %v503, %v503
        %v796 = vmul.f32 %v508, %v508
        %v797 = vmul.f32 %v511, %v511
        %v798 = vmul.f32 %v516, %v516
        %v799 = vmul.f32 %v519, %v519
        %v800 = vmul.f32 %v524, %v524
        %v801 = vmul.f32 %v527, %v527
        %v802 = vmul.f32 %v532, %v532
        %v803 = vmul.f32 %v535, %v535
        %v804 = vmul.f32 %v540, %v540
        %v805 = vmul.f32 %v543, %v543
        %v806 = vmul.f32 %v548, %v548
        %v807 = vmul.f32 %v551, %v551
        %v808 = vmul.f32 %v556, %v556
        %v809 = vmul.f32 %v559, %v559
        %v810 = vmul.f32 %v564, %v564
        %v811 = vmul.f32 %v567, %v567
        %v812 = vmul.f32 %v572, %v572
        %v813 = vmul.f32 %v575, %v575
        %v814 = vmul.f32 %v580, %v580
        %v815 = vmul.f32 %v583, %v583
        %v816 = vadd.f32 %v784, %v785
        %v817 = vadd.f32 %v816, %v786
        %v818 = vadd.f32 %v817, %v787
        %v819 = vadd.f32 %v818, %v788
        %v820 = vadd.f32 %v819, %v789
        %v821 = vadd.f32 %v820, %v790
        %v822 = vadd.f32 %v821, %v791
        %v823 = vadd.f32 %v822, %v792
        %v824 = vadd.f32 %v823, %v793
        %v825 = vadd.f32 %v824, %v794
        %v826 = vadd.f32 %v825, %v795
        %v827 = vadd.f32 %v826, %v796
        %v828 = vadd.f32 %v827, %v797
        %v829 = vadd.f32 %v828, %v798
        %v830 = vadd.f32 %v829, %v799
        %v831 = vadd.f32 %v830, %v800
        %v832 = vadd.f32 %v831, %v801
        %v833 = vadd.f32 %v832, %v802
        %v834 = vadd.f32 %v833, %v803
        %v835 = vadd.f32 %v834, %v804
        %v836 = vadd.f32 %v835, %v805
        %v837 = vadd.f32 %v836, %v806
        %v838 = vadd.f32 %v837, %v807
        %v839 = vadd.f32 %v838, %v808
        %v840 = vadd.f32 %v839, %v809
        %v841 = vadd.f32 %v840, %v810
        %v842 = vadd.f32 %v841, %v811
        %v843 = vadd.f32 %v842, %v812
        %v844 = vadd.f32 %v843, %v813
        %v845 = vadd.f32 %v844, %v814
        %v846 = vadd.f32 %v845, %v815
        %v847 = vrot.slane %v846, 4
        %v848 = vadd.f32 %v846, %v847
        %v849 = vrot.slane %v848, 2
        %v850 = vadd.f32 %v848, %v849
        %v851 = vrot.slane %v850, 1
        %v852 = vadd.f32 %v850, %v851
        %853 = vst [vmem:[%s294] sm:$0x1] %v852
        %s854 = smul.u32 32, %s24
        %p855 = scmp.lt.s32.totalorder %s854, 63
        %s856 = scalar_select %p855, %s854, 63
        %p857 = scmp.lt.s32.totalorder %s25, 0
        %s858 = scalar_select %p857, %s25, 0
        %s859 = sadd.s32 %s858, %s856
        %s860 = smul.addr %s859, 4
        %s861 = scalar_lea.vmem %s2, %s860
        %p862 = scmp.lt.s32.totalorder %s24, 1
        %s863 = scalar_select %p862, %s24, 1
        %p864 = scmp.lt.s32.totalorder %s25, 0
        %s865 = scalar_select %p864, %s25, 0
        %s866 = sadd.s32 %s865, %s863
        %s867 = scalar_lea.vmem %s3, %s866
        %p868 = scmp.lt.s32.totalorder %s24, 1
        %s869 = scalar_select %p868, %s24, 1
        %p870 = scmp.lt.s32.totalorder %s25, 0
        %s871 = scalar_select %p870, %s25, 0
        %s872 = sadd.s32 %s871, %s869
        %s873 = scalar_lea.vmem %s4, %s872
        // Predicated region
        $region37: #{residual_block_forward.4} parent=27 // pred_check
          %p874 = pneg %p104
        $region38: #{residual_block_forward.4} parent=27 // pred_check_branch
          %876 = sbr.rel (%p874) target = $region40
        $region39: #{residual_block_forward.4} parent=27 // pred_region
          %s877 = smul.u32 32, %s24
        $region40: #{residual_block_forward.4} parent=27 // pred_fallthru
          _
        // Predicated region
        $region41: #{residual_block_forward.4} parent=27 // pred_check
          %p878 = pneg %p132
        $region42: #{residual_block_forward.4} parent=27 // pred_check_branch
          %880 = sbr.rel (%p878) target = $region44
        $region43: #{residual_block_forward.4} parent=27 // pred_region
          _
        $region44: #{residual_block_forward.4} parent=27 // pred_fallthru
          _
        // Predicated region
        $region45: #{residual_block_forward.4} parent=27 // pred_check
          %p881 = pneg %p160
        $region46: #{residual_block_forward.4} parent=27 // pred_check_branch
          %883 = sbr.rel (%p881) target = $region48
        $region47: #{residual_block_forward.4} parent=27 // pred_region
          _
        $region48: #{residual_block_forward.4} parent=27 // pred_fallthru
          _
      $region28: #{residual_block_forward.4} parent=5 // pred_fallthru
        _
      %p884 = scmp.le.s32.totalorder 2, %s15
      // Predicated region
      $region49: #{residual_block_forward.4} parent=5 // pred_check
        %p885 = pneg %p884
      $region50: #{residual_block_forward.4} parent=5 // pred_check_branch
        %887 = sbr.rel (%p885) target = $region52
      $region51: #{residual_block_forward.4} parent=5 // pred_region
        %s888 = ssub.s32 %s15, 2
        // Predicated region
        $region53: #{residual_block_forward.4} parent=51 // pred_check
          %p889 = pneg %p110
        $region54: #{residual_block_forward.4} parent=51 // pred_check_branch
          %891 = sbr.rel (%p889) target = $region56
        $region55: #{residual_block_forward.4} parent=51 // pred_region
          %s892 = smul.u32 32, %s26
          %p893 = scmp.lt.s32.totalorder %s892, 63
          %s894 = scalar_select %p893, %s892, 63
          %p895 = scmp.lt.s32.totalorder %s27, 0
          %s896 = scalar_select %p895, %s27, 0
          %s897 = sadd.s32 %s896, %s894
          %s898 = smul.addr %s897, 4
          %s899 = scalar_lea.vmem %s2, %s898
        $region56: #{residual_block_forward.4} parent=51 // pred_fallthru
          _
        // Predicated region
        $region57: #{residual_block_forward.4} parent=51 // pred_check
          %p900 = pneg %p138
        $region58: #{residual_block_forward.4} parent=51 // pred_check_branch
          %902 = sbr.rel (%p900) target = $region60
        $region59: #{residual_block_forward.4} parent=51 // pred_region
          %p903 = scmp.lt.s32.totalorder %s26, 1
          %s904 = scalar_select %p903, %s26, 1
          %p905 = scmp.lt.s32.totalorder %s27, 0
          %s906 = scalar_select %p905, %s27, 0
          %s907 = sadd.s32 %s906, %s904
          %s908 = scalar_lea.vmem %s3, %s907
        $region60: #{residual_block_forward.4} parent=51 // pred_fallthru
          _
        // Predicated region
        $region61: #{residual_block_forward.4} parent=51 // pred_check
          %p909 = pneg %p166
        $region62: #{residual_block_forward.4} parent=51 // pred_check_branch
          %911 = sbr.rel (%p909) target = $region64
        $region63: #{residual_block_forward.4} parent=51 // pred_region
          %p912 = scmp.lt.s32.totalorder %s26, 1
          %s913 = scalar_select %p912, %s26, 1
          %p914 = scmp.lt.s32.totalorder %s27, 0
          %s915 = scalar_select %p914, %s27, 0
          %s916 = sadd.s32 %s915, %s913
          %s917 = scalar_lea.vmem %s4, %s916
        $region64: #{residual_block_forward.4} parent=51 // pred_fallthru
          _
      $region52: #{residual_block_forward.4} parent=5 // pred_fallthru
        _
    $region6: #{residual_block_forward.4} parent=1 // loop_footer
      %s19 = sadd.s32 1, %s15
    $region7: #{residual_block_forward.4} parent=1 // loop_footer_branch
      %14 = sbr.rel target = $region3
    $region8: #{residual_block_forward.4} parent=1 // loop_exit
      _
    %918 = vsyncpa [#allocation3], 1
    %s919 = scalar_lea.sflag [#allocation3], 1
    %920 = vsyncpa %s919, 1
    %921 = vsyncpa [#allocation5], 1

// kernel: residual_block_forward.7
$region0: #{residual_block_forward.7}
  #allocation0 [shape = 'u32[]', space=smem, size = 0x4, offset = 0x4, fixed_abs, tag = 'smem constant byte address 0x4 - core index']
  #allocation1 [shape = 'u32[144,128]{1,0:T(1,128)}', space=vmem, size = 0x12000, scoped, tag = 'internal scratch']
  %s0 = inlined_call_operand.vmem [shape: bf16[512,128], index: 0, kind: input, shape index: {}]
  %s1 = inlined_call_operand.vmem [shape: f32[1,128], index: 1, kind: input, shape index: {}]
  %s2 = inlined_call_operand.vmem [shape: f32[1,128], index: 2, kind: input, shape index: {}]
  %s3 = inlined_call_operand.vmem [shape: f32[512,64], index: 3, kind: input, shape index: {}]
  %s4 = inlined_call_operand.hbm [shape: f32[512,128], index: 4, kind: output, shape index: {0}]
  %s5 = inlined_call_operand.vmem [shape: f32[512,128], index: 5, kind: output, shape index: {1}]
  %6 = xla_tuple %s4, %s5
  %s7 = sld [smem:[#allocation0]]
  $region57: #{residual_block_forward.7} parent=0
    _
  %s9 = ssub.s32 1, %s7
  %s10 = scalar_select 0, %s9, %s7
  $region1: #{residual_block_forward.7} parent=0
    #allocation2 [shape = 'u8[262144]{0}', space=vmem, size = 0x40000, scoped, tag = 'output window, operand 0']
    #allocation3 [shape = 's32[2]{0}', space=sflag, size = 0x8, scoped, tag = 'scoped memory for residual_block_forward.7']
    %11 = vsyncpa [#allocation3], 0
    %s12 = scalar_lea.sflag [#allocation3], 1
    %13 = vsyncpa %s12, 0
    loop: start=0, step=1, limit=4
    $region2: #{residual_block_forward.7} parent=1 // loop_pre_header
      _
    $region3: #{residual_block_forward.7} parent=1 // loop_header
      %s15 = sphi 0, %s19
      %p16 = scmp.ge.s32.totalorder %s15, 4
      %s25 = sphi 0, %s27
      %s28 = sphi 0, %s25
      %s29 = sphi 0, %s28
      %s45 = sphi 0, %s29
      %s49 = sphi 0, %s49
      %s51 = sphi 0, %s49
      %s52 = sphi 0, %s51
      %s66 = sphi 0, %s52
      %s70 = sphi 0, %s70
      %s72 = sphi 0, %s70
      %s73 = sphi 0, %s72
      %s87 = sphi 0, %s73
      %s93 = sphi 0, %s95
      %s96 = sphi 0, %s93
      %s97 = sphi 0, %s96
      %s113 = sphi 0, %s97
      %s119 = sphi 0, %s121
      %s122 = sphi 0, %s119
      %s123 = sphi 0, %s122
      %s139 = sphi 0, %s123
      %s145 = sphi 0, %s147
      %s148 = sphi 0, %s145
      %s149 = sphi 0, %s148
      %s165 = sphi 0, %s149
    $region4: #{residual_block_forward.7} parent=1 // loop_header_branch
      %18 = sbr.rel (%p16) target = $region8
    $region5: #{residual_block_forward.7} parent=1 // loop_body
      %s20 = ssub.s32 %s15, 1
      %s21 = ssub.s32 %s15, 2
      %s22 = sadd.s32 %s15, 1
      %s23 = ssub.s32 %s15, %s22
      %p24 = scmp.eq.s32.totalorder %s23, 0
      %s26 = sadd.s32 %s25, 1
      %s27 = scalar_select %p24, %s25, %s26
      %p30 = pneg %p24
      %p31 = scmp.eq.s32.totalorder %s15, 1
      %p32 = por %p30, %p31
      %p33 = scmp.ne.s32.totalorder %s25, %s28
      %p34 = scmp.eq.s32.totalorder %s15, 0
      %p35 = por %p33, %p34
      %p36 = scmp.ne.s32.totalorder %s25, %s28
      %p37 = scmp.eq.s32.totalorder %s20, 1
      %p38 = por %p36, %p37
      %p39 = scmp.ne.s32.totalorder %s28, %s29
      %p40 = scmp.eq.s32.totalorder %s20, 0
      %p41 = por %p39, %p40
      %p42 = scmp.ne.s32.totalorder %s28, %s29
      %p43 = scmp.eq.s32.totalorder %s21, 1
      %p44 = por %p42, %p43
      %p46 = scmp.ne.s32.totalorder %s29, %s45
      %p47 = scmp.eq.s32.totalorder %s21, 0
      %p48 = por %p46, %p47
      %s50 = sadd.s32 %s49, 1
      %p53 = scmp.eq.s32.totalorder %s15, 1
      %p54 = scmp.ne.s32.totalorder %s49, %s51
      %p55 = scmp.eq.s32.totalorder %s15, 0
      %p56 = por %p54, %p55
      %p57 = scmp.ne.s32.totalorder %s49, %s51
      %p58 = scmp.eq.s32.totalorder %s20, 1
      %p59 = por %p57, %p58
      %p60 = scmp.ne.s32.totalorder %s51, %s52
      %p61 = scmp.eq.s32.totalorder %s20, 0
      %p62 = por %p60, %p61
      %p63 = scmp.ne.s32.totalorder %s51, %s52
      %p64 = scmp.eq.s32.totalorder %s21, 1
      %p65 = por %p63, %p64
      %p67 = scmp.ne.s32.totalorder %s52, %s66
      %p68 = scmp.eq.s32.totalorder %s21, 0
      %p69 = por %p67, %p68
      %s71 = sadd.s32 %s70, 1
      %p74 = scmp.eq.s32.totalorder %s15, 1
      %p75 = scmp.ne.s32.totalorder %s70, %s72
      %p76 = scmp.eq.s32.totalorder %s15, 0
      %p77 = por %p75, %p76
      %p78 = scmp.ne.s32.totalorder %s70, %s72
      %p79 = scmp.eq.s32.totalorder %s20, 1
      %p80 = por %p78, %p79
      %p81 = scmp.ne.s32.totalorder %s72, %s73
      %p82 = scmp.eq.s32.totalorder %s20, 0
      %p83 = por %p81, %p82
      %p84 = scmp.ne.s32.totalorder %s72, %s73
      %p85 = scmp.eq.s32.totalorder %s21, 1
      %p86 = por %p84, %p85
      %p88 = scmp.ne.s32.totalorder %s73, %s87
      %p89 = scmp.eq.s32.totalorder %s21, 0
      %p90 = por %p88, %p89
      %s91 = ssub.s32 %s15, %s22
      %p92 = scmp.eq.s32.totalorder %s91, 0
      %s94 = sadd.s32 %s93, 1
      %s95 = scalar_select %p92, %s93, %s94
      %p98 = pneg %p92
      %p99 = scmp.eq.s32.totalorder %s15, 1
      %p100 = por %p98, %p99
      %p101 = scmp.ne.s32.totalorder %s93, %s96
      %p102 = scmp.eq.s32.totalorder %s15, 0
      %p103 = por %p101, %p102
      %p104 = scmp.ne.s32.totalorder %s93, %s96
      %p105 = scmp.eq.s32.totalorder %s20, 1
      %p106 = por %p104, %p105
      %p107 = scmp.ne.s32.totalorder %s96, %s97
      %p108 = scmp.eq.s32.totalorder %s20, 0
      %p109 = por %p107, %p108
      %p110 = scmp.ne.s32.totalorder %s96, %s97
      %p111 = scmp.eq.s32.totalorder %s21, 1
      %p112 = por %p110, %p111
      %p114 = scmp.ne.s32.totalorder %s97, %s113
      %p115 = scmp.eq.s32.totalorder %s21, 0
      %p116 = por %p114, %p115
      %s117 = ssub.s32 %s15, %s22
      %p118 = scmp.eq.s32.totalorder %s117, 0
      %s120 = sadd.s32 %s119, 1
      %s121 = scalar_select %p118, %s119, %s120
      %p124 = pneg %p118
      %p125 = scmp.eq.s32.totalorder %s15, 1
      %p126 = por %p124, %p125
      %p127 = scmp.ne.s32.totalorder %s119, %s122
      %p128 = scmp.eq.s32.totalorder %s15, 0
      %p129 = por %p127, %p128
      %p130 = scmp.ne.s32.totalorder %s119, %s122
      %p131 = scmp.eq.s32.totalorder %s20, 1
      %p132 = por %p130, %p131
      %p133 = scmp.ne.s32.totalorder %s122, %s123
      %p134 = scmp.eq.s32.totalorder %s20, 0
      %p135 = por %p133, %p134
      %p136 = scmp.ne.s32.totalorder %s122, %s123
      %p137 = scmp.eq.s32.totalorder %s21, 1
      %p138 = por %p136, %p137
      %p140 = scmp.ne.s32.totalorder %s123, %s139
      %p141 = scmp.eq.s32.totalorder %s21, 0
      %p142 = por %p140, %p141
      %s143 = ssub.s32 %s15, %s22
      %p144 = scmp.eq.s32.totalorder %s143, 0
      %s146 = sadd.s32 %s145, 1
      %s147 = scalar_select %p144, %s145, %s146
      %p150 = pneg %p144
      %p151 = scmp.eq.s32.totalorder %s15, 1
      %p152 = por %p150, %p151
      %p153 = scmp.ne.s32.totalorder %s145, %s148
      %p154 = scmp.eq.s32.totalorder %s15, 0
      %p155 = por %p153, %p154
      %p156 = scmp.ne.s32.totalorder %s145, %s148
      %p157 = scmp.eq.s32.totalorder %s20, 1
      %p158 = por %p156, %p157
      %p159 = scmp.ne.s32.totalorder %s148, %s149
      %p160 = scmp.eq.s32.totalorder %s20, 0
      %p161 = por %p159, %p160
      %p162 = scmp.ne.s32.totalorder %s148, %s149
      %p163 = scmp.eq.s32.totalorder %s21, 1
      %p164 = por %p162, %p163
      %p166 = scmp.ne.s32.totalorder %s149, %s165
      %p167 = scmp.eq.s32.totalorder %s21, 0
      %p168 = por %p166, %p167
      %p169 = scmp.le.s32.totalorder 1, %s15
      %p170 = scmp.lt.s32.totalorder %s15, 3
      %p171 = pnand %p169, %p170
      %p172 = pneg %p171
      // Predicated region
      $region9: #{residual_block_forward.7} parent=5 // pred_check
        _
      $region10: #{residual_block_forward.7} parent=5 // pred_check_branch
        %174 = sbr.rel (%p171) target = $region12
      $region11: #{residual_block_forward.7} parent=5 // pred_region
        %s175 = ssub.s32 %s15, 1
        // Predicated region
        $region13: #{residual_block_forward.7} parent=11 // pred_check
          %p176 = pneg %p62
        $region14: #{residual_block_forward.7} parent=11 // pred_check_branch
          %178 = sbr.rel (%p176) target = $region16
        $region15: #{residual_block_forward.7} parent=11 // pred_region
          _
        $region16: #{residual_block_forward.7} parent=11 // pred_fallthru
          _
        // Predicated region
        $region17: #{residual_block_forward.7} parent=11 // pred_check
          %p179 = pneg %p83
        $region18: #{residual_block_forward.7} parent=11 // pred_check_branch
          %181 = sbr.rel (%p179) target = $region20
        $region19: #{residual_block_forward.7} parent=11 // pred_region
          _
        $region20: #{residual_block_forward.7} parent=11 // pred_fallthru
          _
      $region12: #{residual_block_forward.7} parent=5 // pred_fallthru
        _
      %p182 = scmp.lt.s32.totalorder %s15, 2
      // Predicated region
      $region21: #{residual_block_forward.7} parent=5 // pred_check
        %p183 = pneg %p182
      $region22: #{residual_block_forward.7} parent=5 // pred_check_branch
        %185 = sbr.rel (%p183) target = $region24
      $region23: #{residual_block_forward.7} parent=5 // pred_region
        // Predicated region
        $region25: #{residual_block_forward.7} parent=23 // pred_check
          %p186 = pneg %p35
        $region26: #{residual_block_forward.7} parent=23 // pred_check_branch
          %188 = sbr.rel (%p186) target = $region28
        $region27: #{residual_block_forward.7} parent=23 // pred_region
          %s189 = smul.u32 32, %s15
          %p190 = scmp.lt.s32.totalorder %s189, 63
          %s191 = scalar_select %p190, %s189, 63
          %s192 = smul.addr %s191, 4
          %s193 = scalar_lea.vmem %s0, %s192
          %s194 = smul.u32 32, %s15
        $region28: #{residual_block_forward.7} parent=23 // pred_fallthru
          _
        // Predicated region
        $region29: #{residual_block_forward.7} parent=23 // pred_check
          %p195 = pneg %p103
        $region30: #{residual_block_forward.7} parent=23 // pred_check_branch
          %197 = sbr.rel (%p195) target = $region32
        $region31: #{residual_block_forward.7} parent=23 // pred_region
          %s198 = smul.u32 32, %s15
          %p199 = scmp.lt.s32.totalorder %s198, 63
          %s200 = scalar_select %p199, %s198, 63
          %s201 = smul.addr %s200, 8
          %s202 = scalar_lea.vmem %s3, %s201
          %s203 = smul.u32 32, %s15
        $region32: #{residual_block_forward.7} parent=23 // pred_fallthru
          _
      $region24: #{residual_block_forward.7} parent=5 // pred_fallthru
        _
      %p204 = scmp.le.s32.totalorder 1, %s15
      %p205 = scmp.lt.s32.totalorder %s15, 3
      %p206 = pnand %p204, %p205
      %p207 = pneg %p206
      // Predicated region
      $region33: #{residual_block_forward.7} parent=5 // pred_check
        _
      $region34: #{residual_block_forward.7} parent=5 // pred_check_branch
        %209 = sbr.rel (%p206) target = $region36
      $region35: #{residual_block_forward.7} parent=5 // pred_region
        %s210 = ssub.s32 %s15, 1
        %s211 = smul.u32 32, %s20
        %p212 = scmp.lt.s32.totalorder %s211, 63
        %s213 = scalar_select %p212, %s211, 63
        %s214 = smul.addr %s213, 4
        %s215 = scalar_lea.vmem %s0, %s214
        %p216 = pneg %p41
        %p217 = pneg %p38
        %p218 = pneg %p62
        %p219 = pneg %p59
        %p220 = pneg %p83
        %p221 = pneg %p80
        %s222 = smul.u32 32, %s20
        %p223 = scmp.lt.s32.totalorder %s222, 63
        %s224 = scalar_select %p223, %s222, 63
        %s225 = smul.addr %s224, 8
        %s226 = scalar_lea.vmem %s3, %s225
        %p227 = pneg %p109
        %p228 = pneg %p106
        %p229 = pneg %p135
        %p230 = pneg %p132
        %s231 = sand.u32 %s122, 1
        %s232 = scalar_lea.sflag [#allocation3], %s231
        %s233 = sand.u32 %s122, 1
        %s234 = smul.addr %s233, 256
        %s235 = scalar_lea.vmem [#allocation2], %s234
        %p236 = pneg %p161
        %p237 = pneg %p158
        %s238 = smul.u32 32, %s20
        %p239 = scmp.lt.s32.totalorder %s238, 63
        %s240 = scalar_select %p239, %s238, 63
        %s241 = smul.addr %s240, 8
        %s242 = scalar_lea.vmem %s5, %s241
        %s243 = smul.u32 32, %s20
        %p244 = scmp.lt.s32.totalorder %s243, 63
        %s245 = scalar_select %p244, %s243, 63
        %s246 = smul.addr %s245, 4
        %s247 = scalar_lea.vmem %s0, %s246
        %s248 = smul.u32 32, %s20
        %s249 = smul.u32 32, %s20
        %p250 = scmp.lt.s32.totalorder %s249, 63
        %s251 = scalar_select %p250, %s249, 63
        %s252 = smul.addr %s251, 8
        %s253 = scalar_lea.vmem %s3, %s252
        %s254 = smul.u32 32, %s20
        %s255 = smul.u32 32, %s20
        %s256 = smul.u32 32, %s20
        %p257 = scmp.lt.s32.totalorder %s256, 63
        %s258 = scalar_select %p257, %s256, 63
        %s259 = smul.addr %s258, 8
        %s260 = scalar_lea.vmem %s5, %s259
        %s261 = smul.u32 32, %s20
        %v262 = vld [vmem:[%s247] sm:$0xf]
        %v263 = vld [vmem:[%s247 + $0x4] sm:$0xf]
        %v264 = vld [vmem:[%s247 + $0x8] sm:$0xf]
        %v265 = vld [vmem:[%s247 + $0xc] sm:$0xf]
        %v266 = vld [vmem:[%s247 + $0x10] sm:$0xf]
        %v267 = vld [vmem:[%s247 + $0x14] sm:$0xf]
        %v268 = vld [vmem:[%s247 + $0x18] sm:$0xf]
        %v269 = vld [vmem:[%s247 + $0x1c] sm:$0xf]
        %v270 = vld [vmem:[%s247 + $0x20] sm:$0xf]
        %v271 = vld [vmem:[%s247 + $0x24] sm:$0xf]
        %v272 = vld [vmem:[%s247 + $0x28] sm:$0xf]
        %v273 = vld [vmem:[%s247 + $0x2c] sm:$0xf]
        %v274 = vld [vmem:[%s247 + $0x30] sm:$0xf]
        %v275 = vld [vmem:[%s247 + $0x34] sm:$0xf]
        %v276 = vld [vmem:[%s247 + $0x38] sm:$0xf]
        %v277 = vld [vmem:[%s247 + $0x3c] sm:$0xf]
        %v278 = vld [vmem:[%s247 + $0x40] sm:$0xf]
        %v279 = vld [vmem:[%s247 + $0x44] sm:$0xf]
        %v280 = vld [vmem:[%s247 + $0x48] sm:$0xf]
        %v281 = vld [vmem:[%s247 + $0x4c] sm:$0xf]
        %v282 = vld [vmem:[%s247 + $0x50] sm:$0xf]
        %v283 = vld [vmem:[%s247 + $0x54] sm:$0xf]
        %v284 = vld [vmem:[%s247 + $0x58] sm:$0xf]
        %v285 = vld [vmem:[%s247 + $0x5c] sm:$0xf]
        %v286 = vld [vmem:[%s247 + $0x60] sm:$0xf]
        %v287 = vld [vmem:[%s247 + $0x64] sm:$0xf]
        %v288 = vld [vmem:[%s247 + $0x68] sm:$0xf]
        %v289 = vld [vmem:[%s247 + $0x6c] sm:$0xf]
        %v290 = vld [vmem:[%s247 + $0x70] sm:$0xf]
        %v291 = vld [vmem:[%s247 + $0x74] sm:$0xf]
        %v292 = vld [vmem:[%s247 + $0x78] sm:$0xf]
        %v293 = vld [vmem:[%s247 + $0x7c] sm:$0xf]
        %v294 = vunpack.c.l.bf16 %v262
        %v295 = vunpack.c.l.bf16 %v263
        %v296 = vunpack.c.l.bf16 %v264
        %v297 = vunpack.c.l.bf16 %v265
        %v298 = vunpack.c.l.bf16 %v266
        %v299 = vunpack.c.l.bf16 %v267
        %v300 = vunpack.c.l.bf16 %v268
        %v301 = vunpack.c.l.bf16 %v269
        %v302 = vunpack.c.l.bf16 %v270
        %v303 = vunpack.c.l.bf16 %v271
        %v304 = vunpack.c.l.bf16 %v272
        %v305 = vunpack.c.l.bf16 %v273
        %v306 = vunpack.c.l.bf16 %v274
        %v307 = vunpack.c.l.bf16 %v275
        %v308 = vunpack.c.l.bf16 %v276
        %v309 = vunpack.c.l.bf16 %v277
        %v310 = vunpack.c.l.bf16 %v278
        %v311 = vunpack.c.l.bf16 %v279
        %v312 = vunpack.c.l.bf16 %v280
        %v313 = vunpack.c.l.bf16 %v281
        %v314 = vunpack.c.l.bf16 %v282
        %v315 = vunpack.c.l.bf16 %v283
        %v316 = vunpack.c.l.bf16 %v284
        %v317 = vunpack.c.l.bf16 %v285
        %v318 = vunpack.c.l.bf16 %v286
        %v319 = vunpack.c.l.bf16 %v287
        %v320 = vunpack.c.l.bf16 %v288
        %v321 = vunpack.c.l.bf16 %v289
        %v322 = vunpack.c.l.bf16 %v290
        %v323 = vunpack.c.l.bf16 %v291
        %v324 = vunpack.c.l.bf16 %v292
        %v325 = vunpack.c.l.bf16 %v293
        %v326 = vld [vmem:[%s1] sm:$0x1]
        %v328 = vlaneseq
        %v329 = vshrl.u32 %v328, 7
        %v330 = vsub.s32 0, %v329
        %v331 = vrot.slane %v326, %v330
        %v333 = vmul.f32 %v294, %v331
        %v334 = vmul.f32 %v295, %v331
        %v335 = vmul.f32 %v296, %v331
        %v336 = vmul.f32 %v297, %v331
        %v337 = vmul.f32 %v298, %v331
        %v338 = vmul.f32 %v299, %v331
        %v339 = vmul.f32 %v300, %v331
        %v340 = vmul.f32 %v301, %v331
        %v341 = vmul.f32 %v302, %v331
        %v342 = vmul.f32 %v303, %v331
        %v343 = vmul.f32 %v304, %v331
        %v344 = vmul.f32 %v305, %v331
        %v345 = vmul.f32 %v306, %v331
        %v346 = vmul.f32 %v307, %v331
        %v347 = vmul.f32 %v308, %v331
        %v348 = vmul.f32 %v309, %v331
        %v349 = vmul.f32 %v310, %v331
        %v350 = vmul.f32 %v311, %v331
        %v351 = vmul.f32 %v312, %v331
        %v352 = vmul.f32 %v313, %v331
        %v353 = vmul.f32 %v314, %v331
        %v354 = vmul.f32 %v315, %v331
        %v355 = vmul.f32 %v316, %v331
        %v356 = vmul.f32 %v317, %v331
        %v357 = vmul.f32 %v318, %v331
        %v358 = vmul.f32 %v319, %v331
        %v359 = vmul.f32 %v320, %v331
        %v360 = vmul.f32 %v321, %v331
        %v361 = vmul.f32 %v322, %v331
        %v362 = vmul.f32 %v323, %v331
        %v363 = vmul.f32 %v324, %v331
        %v364 = vmul.f32 %v325, %v331
        %v365 = vld [vmem:[%s2] sm:$0x1]
        %v367 = vlaneseq
        %v368 = vshrl.u32 %v367, 7
        %v369 = vsub.s32 0, %v368
        %v370 = vrot.slane %v365, %v369
        %v372 = vadd.f32 %v333, %v370
        %v373 = vadd.f32 %v334, %v370
        %v374 = vadd.f32 %v335, %v370
        %v375 = vadd.f32 %v336, %v370
        %v376 = vadd.f32 %v337, %v370
        %v377 = vadd.f32 %v338, %v370
        %v378 = vadd.f32 %v339, %v370
        %v379 = vadd.f32 %v340, %v370
        %v380 = vadd.f32 %v341, %v370
        %v381 = vadd.f32 %v342, %v370
        %v382 = vadd.f32 %v343, %v370
        %v383 = vadd.f32 %v344, %v370
        %v384 = vadd.f32 %v345, %v370
        %v385 = vadd.f32 %v346, %v370
        %v386 = vadd.f32 %v347, %v370
        %v387 = vadd.f32 %v348, %v370
        %v388 = vadd.f32 %v349, %v370
        %v389 = vadd.f32 %v350, %v370
        %v390 = vadd.f32 %v351, %v370
        %v391 = vadd.f32 %v352, %v370
        %v392 = vadd.f32 %v353, %v370
        %v393 = vadd.f32 %v354, %v370
        %v394 = vadd.f32 %v355, %v370
        %v395 = vadd.f32 %v356, %v370
        %v396 = vadd.f32 %v357, %v370
        %v397 = vadd.f32 %v358, %v370
        %v398 = vadd.f32 %v359, %v370
        %v399 = vadd.f32 %v360, %v370
        %v400 = vadd.f32 %v361, %v370
        %v401 = vadd.f32 %v362, %v370
        %v402 = vadd.f32 %v363, %v370
        %v403 = vadd.f32 %v364, %v370
        %vm404 = vcmp.ge.f32.partialorder %v372, 0.0
        %vm405 = vcmp.ge.f32.partialorder %v373, 0.0
        %vm406 = vcmp.ge.f32.partialorder %v374, 0.0
        %vm407 = vcmp.ge.f32.partialorder %v375, 0.0
        %vm408 = vcmp.ge.f32.partialorder %v376, 0.0
        %vm409 = vcmp.ge.f32.partialorder %v377, 0.0
        %vm410 = vcmp.ge.f32.partialorder %v378, 0.0
        %vm411 = vcmp.ge.f32.partialorder %v379, 0.0
        %vm412 = vcmp.ge.f32.partialorder %v380, 0.0
        %vm413 = vcmp.ge.f32.partialorder %v381, 0.0
        %vm414 = vcmp.ge.f32.partialorder %v382, 0.0
        %vm415 = vcmp.ge.f32.partialorder %v383, 0.0
        %vm416 = vcmp.ge.f32.partialorder %v384, 0.0
        %vm417 = vcmp.ge.f32.partialorder %v385, 0.0
        %vm418 = vcmp.ge.f32.partialorder %v386, 0.0
        %vm419 = vcmp.ge.f32.partialorder %v387, 0.0
        %vm420 = vcmp.ge.f32.partialorder %v388, 0.0
        %vm421 = vcmp.ge.f32.partialorder %v389, 0.0
        %vm422 = vcmp.ge.f32.partialorder %v390, 0.0
        %vm423 = vcmp.ge.f32.partialorder %v391, 0.0
        %vm424 = vcmp.ge.f32.partialorder %v392, 0.0
        %vm425 = vcmp.ge.f32.partialorder %v393, 0.0
        %vm426 = vcmp.ge.f32.partialorder %v394, 0.0
        %vm427 = vcmp.ge.f32.partialorder %v395, 0.0
        %vm428 = vcmp.ge.f32.partialorder %v396, 0.0
        %vm429 = vcmp.ge.f32.partialorder %v397, 0.0
        %vm430 = vcmp.ge.f32.partialorder %v398, 0.0
        %vm431 = vcmp.ge.f32.partialorder %v399, 0.0
        %vm432 = vcmp.ge.f32.partialorder %v400, 0.0
        %vm433 = vcmp.ge.f32.partialorder %v401, 0.0
        %vm434 = vcmp.ge.f32.partialorder %v402, 0.0
        %vm435 = vcmp.ge.f32.partialorder %v403, 0.0
        %v436 = vmul.f32 %v372, 0.1
        %v437 = vmul.f32 %v373, 0.1
        %v438 = vmul.f32 %v374, 0.1
        %v439 = vmul.f32 %v375, 0.1
        %v440 = vmul.f32 %v376, 0.1
        %v441 = vmul.f32 %v377, 0.1
        %v442 = vmul.f32 %v378, 0.1
        %v443 = vmul.f32 %v379, 0.1
        %v444 = vmul.f32 %v380, 0.1
        %v445 = vmul.f32 %v381, 0.1
        %v446 = vmul.f32 %v382, 0.1
        %v447 = vmul.f32 %v383, 0.1
        %v448 = vmul.f32 %v384, 0.1
        %v449 = vmul.f32 %v385, 0.1
        %v450 = vmul.f32 %v386, 0.1
        %v451 = vmul.f32 %v387, 0.1
        %v452 = vmul.f32 %v388, 0.1
        %v453 = vmul.f32 %v389, 0.1
        %v454 = vmul.f32 %v390, 0.1
        %v455 = vmul.f32 %v391, 0.1
        %v456 = vmul.f32 %v392, 0.1
        %v457 = vmul.f32 %v393, 0.1
        %v458 = vmul.f32 %v394, 0.1
        %v459 = vmul.f32 %v395, 0.1
        %v460 = vmul.f32 %v396, 0.1
        %v461 = vmul.f32 %v397, 0.1
        %v462 = vmul.f32 %v398, 0.1
        %v463 = vmul.f32 %v399, 0.1
        %v464 = vmul.f32 %v400, 0.1
        %v465 = vmul.f32 %v401, 0.1
        %v466 = vmul.f32 %v402, 0.1
        %v467 = vmul.f32 %v403, 0.1
        %v468 = vsel %vm404, %v372, %v436
        %v469 = vsel %vm405, %v373, %v437
        %v470 = vsel %vm406, %v374, %v438
        %v471 = vsel %vm407, %v375, %v439
        %v472 = vsel %vm408, %v376, %v440
        %v473 = vsel %vm409, %v377, %v441
        %v474 = vsel %vm410, %v378, %v442
        %v475 = vsel %vm411, %v379, %v443
        %v476 = vsel %vm412, %v380, %v444
        %v477 = vsel %vm413, %v381, %v445
        %v478 = vsel %vm414, %v382, %v446
        %v479 = vsel %vm415, %v383, %v447
        %v480 = vsel %vm416, %v384, %v448
        %v481 = vsel %vm417, %v385, %v449
        %v482 = vsel %vm418, %v386, %v450
        %v483 = vsel %vm419, %v387, %v451
        %v484 = vsel %vm420, %v388, %v452
        %v485 = vsel %vm421, %v389, %v453
        %v486 = vsel %vm422, %v390, %v454
        %v487 = vsel %vm423, %v391, %v455
        %v488 = vsel %vm424, %v392, %v456
        %v489 = vsel %vm425, %v393, %v457
        %v490 = vsel %vm426, %v394, %v458
        %v491 = vsel %vm427, %v395, %v459
        %v492 = vsel %vm428, %v396, %v460
        %v493 = vsel %vm429, %v397, %v461
        %v494 = vsel %vm430, %v398, %v462
        %v495 = vsel %vm431, %v399, %v463
        %v496 = vsel %vm432, %v400, %v464
        %v497 = vsel %vm433, %v401, %v465
        %v498 = vsel %vm434, %v402, %v466
        %v499 = vsel %vm435, %v403, %v467
        %500 = vst [vmem:[%s235] sm:$0xff] %v468
        %501 = vst [vmem:[%s235 + $0x8] sm:$0xff] %v469
        %502 = vst [vmem:[%s235 + $0x10] sm:$0xff] %v470
        %503 = vst [vmem:[%s235 + $0x18] sm:$0xff] %v471
        %504 = vst [vmem:[%s235 + $0x20] sm:$0xff] %v472
        %505 = vst [vmem:[%s235 + $0x28] sm:$0xff] %v473
        %506 = vst [vmem:[%s235 + $0x30] sm:$0xff] %v474
        %507 = vst [vmem:[%s235 + $0x38] sm:$0xff] %v475
        %508 = vst [vmem:[%s235 + $0x40] sm:$0xff] %v476
        %509 = vst [vmem:[%s235 + $0x48] sm:$0xff] %v477
        %510 = vst [vmem:[%s235 + $0x50] sm:$0xff] %v478
        %511 = vst [vmem:[%s235 + $0x58] sm:$0xff] %v479
        %512 = vst [vmem:[%s235 + $0x60] sm:$0xff] %v480
        %513 = vst [vmem:[%s235 + $0x68] sm:$0xff] %v481
        %514 = vst [vmem:[%s235 + $0x70] sm:$0xff] %v482
        %515 = vst [vmem:[%s235 + $0x78] sm:$0xff] %v483
        %516 = vst [vmem:[%s235 + $0x80] sm:$0xff] %v484
        %517 = vst [vmem:[%s235 + $0x88] sm:$0xff] %v485
        %518 = vst [vmem:[%s235 + $0x90] sm:$0xff] %v486
        %519 = vst [vmem:[%s235 + $0x98] sm:$0xff] %v487
        %520 = vst [vmem:[%s235 + $0xa0] sm:$0xff] %v488
        %521 = vst [vmem:[%s235 + $0xa8] sm:$0xff] %v489
        %522 = vst [vmem:[%s235 + $0xb0] sm:$0xff] %v490
        %523 = vst [vmem:[%s235 + $0xb8] sm:$0xff] %v491
        %524 = vst [vmem:[%s235 + $0xc0] sm:$0xff] %v492
        %525 = vst [vmem:[%s235 + $0xc8] sm:$0xff] %v493
        %526 = vst [vmem:[%s235 + $0xd0] sm:$0xff] %v494
        %527 = vst [vmem:[%s235 + $0xd8] sm:$0xff] %v495
        %528 = vst [vmem:[%s235 + $0xe0] sm:$0xff] %v496
        %529 = vst [vmem:[%s235 + $0xe8] sm:$0xff] %v497
        %530 = vst [vmem:[%s235 + $0xf0] sm:$0xff] %v498
        %531 = vst [vmem:[%s235 + $0xf8] sm:$0xff] %v499
        %v532 = vld [vmem:[%s253] sm:$0xff]
        %v533 = vld [vmem:[%s253 + $0x8] sm:$0xff]
        %v534 = vld [vmem:[%s253 + $0x10] sm:$0xff]
        %v535 = vld [vmem:[%s253 + $0x18] sm:$0xff]
        %v536 = vld [vmem:[%s253 + $0x20] sm:$0xff]
        %v537 = vld [vmem:[%s253 + $0x28] sm:$0xff]
        %v538 = vld [vmem:[%s253 + $0x30] sm:$0xff]
        %v539 = vld [vmem:[%s253 + $0x38] sm:$0xff]
        %v540 = vld [vmem:[%s253 + $0x40] sm:$0xff]
        %v541 = vld [vmem:[%s253 + $0x48] sm:$0xff]
        %v542 = vld [vmem:[%s253 + $0x50] sm:$0xff]
        %v543 = vld [vmem:[%s253 + $0x58] sm:$0xff]
        %v544 = vld [vmem:[%s253 + $0x60] sm:$0xff]
        %v545 = vld [vmem:[%s253 + $0x68] sm:$0xff]
        %v546 = vld [vmem:[%s253 + $0x70] sm:$0xff]
        %v547 = vld [vmem:[%s253 + $0x78] sm:$0xff]
        %v548 = vld [vmem:[%s253 + $0x80] sm:$0xff]
        %v549 = vld [vmem:[%s253 + $0x88] sm:$0xff]
        %v550 = vld [vmem:[%s253 + $0x90] sm:$0xff]
        %v551 = vld [vmem:[%s253 + $0x98] sm:$0xff]
        %v552 = vld [vmem:[%s253 + $0xa0] sm:$0xff]
        %v553 = vld [vmem:[%s253 + $0xa8] sm:$0xff]
        %v554 = vld [vmem:[%s253 + $0xb0] sm:$0xff]
        %v555 = vld [vmem:[%s253 + $0xb8] sm:$0xff]
        %v556 = vld [vmem:[%s253 + $0xc0] sm:$0xff]
        %v557 = vld [vmem:[%s253 + $0xc8] sm:$0xff]
        %v558 = vld [vmem:[%s253 + $0xd0] sm:$0xff]
        %v559 = vld [vmem:[%s253 + $0xd8] sm:$0xff]
        %v560 = vld [vmem:[%s253 + $0xe0] sm:$0xff]
        %v561 = vld [vmem:[%s253 + $0xe8] sm:$0xff]
        %v562 = vld [vmem:[%s253 + $0xf0] sm:$0xff]
        %v563 = vld [vmem:[%s253 + $0xf8] sm:$0xff]
        %vm564 = vcmask 523264
        %v565 = vsel %vm564, %v532, 0.0
        %v566 = vsel %vm564, %v533, 0.0
        %v567 = vsel %vm564, %v534, 0.0
        %v568 = vsel %vm564, %v535, 0.0
        %v569 = vsel %vm564, %v536, 0.0
        %v570 = vsel %vm564, %v537, 0.0
        %v571 = vsel %vm564, %v538, 0.0
        %v572 = vsel %vm564, %v539, 0.0
        %v573 = vsel %vm564, %v540, 0.0
        %v574 = vsel %vm564, %v541, 0.0
        %v575 = vsel %vm564, %v542, 0.0
        %v576 = vsel %vm564, %v543, 0.0
        %v577 = vsel %vm564, %v544, 0.0
        %v578 = vsel %vm564, %v545, 0.0
        %v579 = vsel %vm564, %v546, 0.0
        %v580 = vsel %vm564, %v547, 0.0
        %v581 = vsel %vm564, %v548, 0.0
        %v582 = vsel %vm564, %v549, 0.0
        %v583 = vsel %vm564, %v550, 0.0
        %v584 = vsel %vm564, %v551, 0.0
        %v585 = vsel %vm564, %v552, 0.0
        %v586 = vsel %vm564, %v553, 0.0
        %v587 = vsel %vm564, %v554, 0.0
        %v588 = vsel %vm564, %v555, 0.0
        %v589 = vsel %vm564, %v556, 0.0
        %v590 = vsel %vm564, %v557, 0.0
        %v591 = vsel %vm564, %v558, 0.0
        %v592 = vsel %vm564, %v559, 0.0
        %v593 = vsel %vm564, %v560, 0.0
        %v594 = vsel %vm564, %v561, 0.0
        %v595 = vsel %vm564, %v562, 0.0
        %v596 = vsel %vm564, %v563, 0.0
        %v597 = vadd.f32 %v468, %v565
        %v598 = vadd.f32 %v469, %v566
        %v599 = vadd.f32 %v470, %v567
        %v600 = vadd.f32 %v471, %v568
        %v601 = vadd.f32 %v472, %v569
        %v602 = vadd.f32 %v473, %v570
        %v603 = vadd.f32 %v474, %v571
        %v604 = vadd.f32 %v475, %v572
        %v605 = vadd.f32 %v476, %v573
        %v606 = vadd.f32 %v477, %v574
        %v607 = vadd.f32 %v478, %v575
        %v608 = vadd.f32 %v479, %v576
        %v609 = vadd.f32 %v480, %v577
        %v610 = vadd.f32 %v481, %v578
        %v611 = vadd.f32 %v482, %v579
        %v612 = vadd.f32 %v483, %v580
        %v613 = vadd.f32 %v484, %v581
        %v614 = vadd.f32 %v485, %v582
        %v615 = vadd.f32 %v486, %v583
        %v616 = vadd.f32 %v487, %v584
        %v617 = vadd.f32 %v488, %v585
        %v618 = vadd.f32 %v489, %v586
        %v619 = vadd.f32 %v490, %v587
        %v620 = vadd.f32 %v491, %v588
        %v621 = vadd.f32 %v492, %v589
        %v622 = vadd.f32 %v493, %v590
        %v623 = vadd.f32 %v494, %v591
        %v624 = vadd.f32 %v495, %v592
        %v625 = vadd.f32 %v496, %v593
        %v626 = vadd.f32 %v497, %v594
        %v627 = vadd.f32 %v498, %v595
        %v628 = vadd.f32 %v499, %v596
        %629 = vst [vmem:[%s260] sm:$0xff] %v597
        %630 = vst [vmem:[%s260 + $0x8] sm:$0xff] %v598
        %631 = vst [vmem:[%s260 + $0x10] sm:$0xff] %v599
        %632 = vst [vmem:[%s260 + $0x18] sm:$0xff] %v600
        %633 = vst [vmem:[%s260 + $0x20] sm:$0xff] %v601
        %634 = vst [vmem:[%s260 + $0x28] sm:$0xff] %v602
        %635 = vst [vmem:[%s260 + $0x30] sm:$0xff] %v603
        %636 = vst [vmem:[%s260 + $0x38] sm:$0xff] %v604
        %637 = vst [vmem:[%s260 + $0x40] sm:$0xff] %v605
        %638 = vst [vmem:[%s260 + $0x48] sm:$0xff] %v606
        %639 = vst [vmem:[%s260 + $0x50] sm:$0xff] %v607
        %640 = vst [vmem:[%s260 + $0x58] sm:$0xff] %v608
        %641 = vst [vmem:[%s260 + $0x60] sm:$0xff] %v609
        %642 = vst [vmem:[%s260 + $0x68] sm:$0xff] %v610
        %643 = vst [vmem:[%s260 + $0x70] sm:$0xff] %v611
        %644 = vst [vmem:[%s260 + $0x78] sm:$0xff] %v612
        %645 = vst [vmem:[%s260 + $0x80] sm:$0xff] %v613
        %646 = vst [vmem:[%s260 + $0x88] sm:$0xff] %v614
        %647 = vst [vmem:[%s260 + $0x90] sm:$0xff] %v615
        %648 = vst [vmem:[%s260 + $0x98] sm:$0xff] %v616
        %649 = vst [vmem:[%s260 + $0xa0] sm:$0xff] %v617
        %650 = vst [vmem:[%s260 + $0xa8] sm:$0xff] %v618
        %651 = vst [vmem:[%s260 + $0xb0] sm:$0xff] %v619
        %652 = vst [vmem:[%s260 + $0xb8] sm:$0xff] %v620
        %653 = vst [vmem:[%s260 + $0xc0] sm:$0xff] %v621
        %654 = vst [vmem:[%s260 + $0xc8] sm:$0xff] %v622
        %655 = vst [vmem:[%s260 + $0xd0] sm:$0xff] %v623
        %656 = vst [vmem:[%s260 + $0xd8] sm:$0xff] %v624
        %657 = vst [vmem:[%s260 + $0xe0] sm:$0xff] %v625
        %658 = vst [vmem:[%s260 + $0xe8] sm:$0xff] %v626
        %659 = vst [vmem:[%s260 + $0xf0] sm:$0xff] %v627
        %660 = vst [vmem:[%s260 + $0xf8] sm:$0xff] %v628
        %s661 = sand.u32 %s122, 1
        %s662 = scalar_lea.sflag [#allocation3], %s661
        %s663 = sand.u32 %s122, 1
        %s664 = smul.addr %s663, 256
        %s665 = scalar_lea.vmem [#allocation2], %s664
        %s666 = smul.u32 32, %s20
        %p667 = scmp.lt.s32.totalorder %s666, 63
        %s668 = scalar_select %p667, %s666, 63
        %s669 = smul.addr %s668, 8
        %s670 = scalar_lea.vmem %s5, %s669
        // Predicated region
        $region37: #{residual_block_forward.7} parent=35 // pred_check
          %p671 = pneg %p132
        $region38: #{residual_block_forward.7} parent=35 // pred_check_branch
          %673 = sbr.rel (%p671) target = $region40
        $region39: #{residual_block_forward.7} parent=35 // pred_region
          %s674 = smul.u32 32, %s20
          %s676 = ssub.s32 4096, 4096
          %677 = vsyncadd %s662, %s676
          %s678 = smul.addr %s674, 128
          %s679 = scalar_lea.hbm %s4, %s678
          %s680 = sshll.u32 %s665, 4
          %s681 = int_to_ptr.vmem [resolvable:$true] %s680
          %686 = dma.vmem_to_hbm [thread:$0]  %s681, 4096, %s679, %s662, 128, 128, 8
        $region40: #{residual_block_forward.7} parent=35 // pred_fallthru
          _
        // Predicated region
        $region41: #{residual_block_forward.7} parent=35 // pred_check
          %p687 = pneg %p158
        $region42: #{residual_block_forward.7} parent=35 // pred_check_branch
          %689 = sbr.rel (%p687) target = $region44
        $region43: #{residual_block_forward.7} parent=35 // pred_region
          %s690 = smul.u32 32, %s20
        $region44: #{residual_block_forward.7} parent=35 // pred_fallthru
          _
      $region36: #{residual_block_forward.7} parent=5 // pred_fallthru
        _
      %p691 = scmp.le.s32.totalorder 2, %s15
      // Predicated region
      $region45: #{residual_block_forward.7} parent=5 // pred_check
        %p692 = pneg %p691
      $region46: #{residual_block_forward.7} parent=5 // pred_check_branch
        %694 = sbr.rel (%p692) target = $region48
      $region47: #{residual_block_forward.7} parent=5 // pred_region
        %s695 = ssub.s32 %s15, 2
        // Predicated region
        $region49: #{residual_block_forward.7} parent=47 // pred_check
          %p696 = pneg %p138
        $region50: #{residual_block_forward.7} parent=47 // pred_check_branch
          %698 = sbr.rel (%p696) target = $region52
        $region51: #{residual_block_forward.7} parent=47 // pred_region
          %s699 = sand.u32 %s123, 1
          %s700 = scalar_lea.sflag [#allocation3], %s699
          %s701 = sand.u32 %s123, 1
          %s702 = smul.addr %s701, 256
          %s703 = scalar_lea.vmem [#allocation2], %s702
          %704 = dma.done %s700, 4096
        $region52: #{residual_block_forward.7} parent=47 // pred_fallthru
          _
        // Predicated region
        $region53: #{residual_block_forward.7} parent=47 // pred_check
          %p705 = pneg %p164
        $region54: #{residual_block_forward.7} parent=47 // pred_check_branch
          %707 = sbr.rel (%p705) target = $region56
        $region55: #{residual_block_forward.7} parent=47 // pred_region
          %s708 = smul.u32 32, %s21
          %p709 = scmp.lt.s32.totalorder %s708, 63
          %s710 = scalar_select %p709, %s708, 63
          %s711 = smul.addr %s710, 8
          %s712 = scalar_lea.vmem %s5, %s711
        $region56: #{residual_block_forward.7} parent=47 // pred_fallthru
          _
      $region48: #{residual_block_forward.7} parent=5 // pred_fallthru
        _
    $region6: #{residual_block_forward.7} parent=1 // loop_footer
      %s19 = sadd.s32 1, %s15
    $region7: #{residual_block_forward.7} parent=1 // loop_footer_branch
      %14 = sbr.rel target = $region3
    $region8: #{residual_block_forward.7} parent=1 // loop_exit
      _
    %713 = vsyncpa [#allocation3], 1
    %s714 = scalar_lea.sflag [#allocation3], 1
    %715 = vsyncpa %s714, 1

// kernel: residual_block_forward.6
$region0: #{residual_block_forward.6}
  #allocation0 [shape = 'u32[]', space=smem, size = 0x4, offset = 0x4, fixed_abs, tag = 'smem constant byte address 0x4 - core index']
  #allocation1 [shape = 'u32[144,128]{1,0:T(1,128)}', space=vmem, size = 0x12000, scoped, tag = 'internal scratch']
  #allocation2 [shape = 'bf16[160,384]{1,0:T(8,128)(2,1)}', space=vmem, size = 0x1e000, scoped, tag = 'scratch operand']
  %s0 = inlined_call_operand.vmem [shape: bf16[2,18,18,128], index: 0, kind: input, shape index: {}]
  %s1 = inlined_call_operand.vmem [shape: bf16[3,384,128], index: 1, kind: input, shape index: {}]
  %s2 = inlined_call_operand.vmem [shape: bf16[2,256,128], index: 2, kind: output, shape index: {0}]
  %s3 = inlined_call_operand.vmem [shape: f32[4,1,128], index: 3, kind: output, shape index: {1}]
  %s4 = inlined_call_operand.vmem [shape: f32[4,1,128], index: 4, kind: output, shape index: {2}]
  %5 = xla_tuple %s2, %s3, %s4
  %s6 = sld [smem:[#allocation0]]
  $region57: #{residual_block_forward.6} parent=0
    _
  %s8 = ssub.s32 1, %s6
  %s9 = scalar_select 0, %s8, %s6
  loop: start=0, step=1, limit=6
  $region2: #{residual_block_forward.6} parent=0 // loop_pre_header
    _
  $region3: #{residual_block_forward.6} parent=0 // loop_header
    %s11 = sphi 0, %s15
    %p12 = scmp.ge.s32.totalorder %s11, 6
    %s18 = sphi 0, %s37
    %s19 = sphi 0, %s33
    %s20 = sphi 0, %s29
    %s21 = sphi 0, %s18
    %s22 = sphi 0, %s19
    %s23 = sphi 0, %s20
    %s24 = sphi 0, %s21
    %s25 = sphi 0, %s22
    %s26 = sphi 0, %s23
    %s40 = sphi 0, %s42
    %s43 = sphi 0, %s40
    %s44 = sphi 0, %s43
    %s60 = sphi 0, %s44
    %s66 = sphi 0, %s68
    %s69 = sphi 0, %s66
    %s70 = sphi 0, %s69
    %s86 = sphi 0, %s70
    %s96 = sphi 0, %s98
    %s99 = sphi 0, %s96
    %s100 = sphi 0, %s99
    %s116 = sphi 0, %s100
    %s128 = sphi 0, %s130
    %s131 = sphi 0, %s128
    %s132 = sphi 0, %s131
    %s148 = sphi 0, %s132
    %s160 = sphi 0, %s162
    %s163 = sphi 0, %s160
    %s164 = sphi 0, %s163
    %s180 = sphi 0, %s164
  $region4: #{residual_block_forward.6} parent=0 // loop_header_branch
    %14 = sbr.rel (%p12) target = $region8
  $region5: #{residual_block_forward.6} parent=0 // loop_body
    %s16 = ssub.s32 %s11, 1
    %s17 = ssub.s32 %s11, 2
    %s27 = sadd.s32 1, %s20
    %p28 = scmp.ge.s32.totalorder %s27, 2
    %s29 = scalar_select %p28, 0, %s27
    %s30 = sadd.s32 1, %s19
    %s31 = scalar_select %p28, %s30, %s19
    %p32 = scmp.ge.s32.totalorder %s31, 1
    %s33 = scalar_select %p32, 0, %s31
    %s34 = sadd.s32 1, %s18
    %s35 = scalar_select %p32, %s34, %s18
    %p36 = scmp.ge.s32.totalorder %s35, 2
    %s37 = scalar_select %p36, 0, %s35
    %s38 = ssub.s32 %s18, %s37
    %p39 = scmp.eq.s32.totalorder %s38, 0
    %s41 = sadd.s32 %s40, 1
    %s42 = scalar_select %p39, %s40, %s41
    %p45 = pneg %p39
    %p46 = scmp.eq.s32.totalorder %s11, 3
    %p47 = por %p45, %p46
    %p48 = scmp.ne.s32.totalorder %s40, %s43
    %p49 = scmp.eq.s32.totalorder %s11, 0
    %p50 = por %p48, %p49
    %p51 = scmp.ne.s32.totalorder %s40, %s43
    %p52 = scmp.eq.s32.totalorder %s16, 3
    %p53 = por %p51, %p52
    %p54 = scmp.ne.s32.totalorder %s43, %s44
    %p55 = scmp.eq.s32.totalorder %s16, 0
    %p56 = por %p54, %p55
    %p57 = scmp.ne.s32.totalorder %s43, %s44
    %p58 = scmp.eq.s32.totalorder %s17, 3
    %p59 = por %p57, %p58
    %p61 = scmp.ne.s32.totalorder %s44, %s60
    %p62 = scmp.eq.s32.totalorder %s17, 0
    %p63 = por %p61, %p62
    %s64 = ssub.s32 %s19, %s33
    %p65 = scmp.eq.s32.totalorder %s64, 0
    %s67 = sadd.s32 %s66, 1
    %s68 = scalar_select %p65, %s66, %s67
    %p71 = pneg %p65
    %p72 = scmp.eq.s32.totalorder %s11, 3
    %p73 = por %p71, %p72
    %p74 = scmp.ne.s32.totalorder %s66, %s69
    %p75 = scmp.eq.s32.totalorder %s11, 0
    %p76 = por %p74, %p75
    %p77 = scmp.ne.s32.totalorder %s66, %s69
    %p78 = scmp.eq.s32.totalorder %s16, 3
    %p79 = por %p77, %p78
    %p80 = scmp.ne.s32.totalorder %s69, %s70
    %p81 = scmp.eq.s32.totalorder %s16, 0
    %p82 = por %p80, %p81
    %p83 = scmp.ne.s32.totalorder %s69, %s70
    %p84 = scmp.eq.s32.totalorder %s17, 3
    %p85 = por %p83, %p84
    %p87 = scmp.ne.s32.totalorder %s70, %s86
    %p88 = scmp.eq.s32.totalorder %s17, 0
    %p89 = por %p87, %p88
    %s90 = ssub.s32 %s18, %s37
    %s91 = ssub.s32 %s20, %s29
    %s92 = sor.u32 %s90, %s91
    %s93 = ssub.s32 %s19, %s33
    %s94 = sor.u32 %s92, %s93
    %p95 = scmp.eq.s32.totalorder %s94, 0
    %s97 = sadd.s32 %s96, 1
    %s98 = scalar_select %p95, %s96, %s97
    %p101 = pneg %p95
    %p102 = scmp.eq.s32.totalorder %s11, 3
    %p103 = por %p101, %p102
    %p104 = scmp.ne.s32.totalorder %s96, %s99
    %p105 = scmp.eq.s32.totalorder %s11, 0
    %p106 = por %p104, %p105
    %p107 = scmp.ne.s32.totalorder %s96, %s99
    %p108 = scmp.eq.s32.totalorder %s16, 3
    %p109 = por %p107, %p108
    %p110 = scmp.ne.s32.totalorder %s99, %s100
    %p111 = scmp.eq.s32.totalorder %s16, 0
    %p112 = por %p110, %p111
    %p113 = scmp.ne.s32.totalorder %s99, %s100
    %p114 = scmp.eq.s32.totalorder %s17, 3
    %p115 = por %p113, %p114
    %p117 = scmp.ne.s32.totalorder %s100, %s116
    %p118 = scmp.eq.s32.totalorder %s17, 0
    %p119 = por %p117, %p118
    %s120 = smul.u32 %s18, 2
    %s121 = sadd.s32 %s120, %s20
    %s122 = smul.u32 %s37, 2
    %s123 = sadd.s32 %s122, %s29
    %s124 = ssub.s32 %s121, %s123
    %s125 = ssub.s32 %s19, %s33
    %s126 = sor.u32 %s124, %s125
    %p127 = scmp.eq.s32.totalorder %s126, 0
    %s129 = sadd.s32 %s128, 1
    %s130 = scalar_select %p127, %s128, %s129
    %p133 = pneg %p127
    %p134 = scmp.eq.s32.totalorder %s11, 3
    %p135 = por %p133, %p134
    %p136 = scmp.ne.s32.totalorder %s128, %s131
    %p137 = scmp.eq.s32.totalorder %s11, 0
    %p138 = por %p136, %p137
    %p139 = scmp.ne.s32.totalorder %s128, %s131
    %p140 = scmp.eq.s32.totalorder %s16, 3
    %p141 = por %p139, %p140
    %p142 = scmp.ne.s32.totalorder %s131, %s132
    %p143 = scmp.eq.s32.totalorder %s16, 0
    %p144 = por %p142, %p143
    %p145 = scmp.ne.s32.totalorder %s131, %s132
    %p146 = scmp.eq.s32.totalorder %s17, 3
    %p147 = por %p145, %p146
    %p149 = scmp.ne.s32.totalorder %s132, %s148
    %p150 = scmp.eq.s32.totalorder %s17, 0
    %p151 = por %p149, %p150
    %s152 = smul.u32 %s18, 2
    %s153 = sadd.s32 %s152, %s20
    %s154 = smul.u32 %s37, 2
    %s155 = sadd.s32 %s154, %s29
    %s156 = ssub.s32 %s153, %s155
    %s157 = ssub.s32 %s19, %s33
    %s158 = sor.u32 %s156, %s157
    %p159 = scmp.eq.s32.totalorder %s158, 0
    %s161 = sadd.s32 %s160, 1
    %s162 = scalar_select %p159, %s160, %s161
    %p165 = pneg %p159
    %p166 = scmp.eq.s32.totalorder %s11, 3
    %p167 = por %p165, %p166
    %p168 = scmp.ne.s32.totalorder %s160, %s163
    %p169 = scmp.eq.s32.totalorder %s11, 0
    %p170 = por %p168, %p169
    %p171 = scmp.ne.s32.totalorder %s160, %s163
    %p172 = scmp.eq.s32.totalorder %s16, 3
    %p173 = por %p171, %p172
    %p174 = scmp.ne.s32.totalorder %s163, %s164
    %p175 = scmp.eq.s32.totalorder %s16, 0
    %p176 = por %p174, %p175
    %p177 = scmp.ne.s32.totalorder %s163, %s164
    %p178 = scmp.eq.s32.totalorder %s17, 3
    %p179 = por %p177, %p178
    %p181 = scmp.ne.s32.totalorder %s164, %s180
    %p182 = scmp.eq.s32.totalorder %s17, 0
    %p183 = por %p181, %p182
    %p184 = scmp.le.s32.totalorder 1, %s11
    %p185 = scmp.lt.s32.totalorder %s11, 5
    %p186 = pnand %p184, %p185
    %p187 = pneg %p186
    // Predicated region
    $region9: #{residual_block_forward.6} parent=5 // pred_check
      _
    $region10: #{residual_block_forward.6} parent=5 // pred_check_branch
      %189 = sbr.rel (%p186) target = $region12
    $region11: #{residual_block_forward.6} parent=5 // pred_region
      %s190 = ssub.s32 %s11, 1
      // Predicated region
      $region13: #{residual_block_forward.6} parent=11 // pred_check
        %p191 = pneg %p82
      $region14: #{residual_block_forward.6} parent=11 // pred_check_branch
        %193 = sbr.rel (%p191) target = $region16
      $region15: #{residual_block_forward.6} parent=11 // pred_region
        %p194 = scmp.lt.s32.totalorder %s22, 0
        %s195 = scalar_select %p194, %s22, 0
        %s196 = smul.addr %s195, 4
        %s197 = scalar_lea.vmem %s1, %s196
      $region16: #{residual_block_forward.6} parent=11 // pred_fallthru
        _
    $region12: #{residual_block_forward.6} parent=5 // pred_fallthru
      _
    %p198 = scmp.lt.s32.totalorder %s11, 4
    // Predicated region
    $region17: #{residual_block_forward.6} parent=5 // pred_check
      %p199 = pneg %p198
    $region18: #{residual_block_forward.6} parent=5 // pred_check_branch
      %201 = sbr.rel (%p199) target = $region20
    $region19: #{residual_block_forward.6} parent=5 // pred_region
      // Predicated region
      $region21: #{residual_block_forward.6} parent=19 // pred_check
        %p202 = pneg %p50
      $region22: #{residual_block_forward.6} parent=19 // pred_check_branch
        %204 = sbr.rel (%p202) target = $region24
      $region23: #{residual_block_forward.6} parent=19 // pred_region
        %p205 = scmp.lt.s32.totalorder %s18, 1
        %s206 = scalar_select %p205, %s18, 1
        %s207 = smul.addr %s206, 54
        %s208 = smul.addr %s207, 4
        %s209 = scalar_lea.vmem %s0, %s208
      $region24: #{residual_block_forward.6} parent=19 // pred_fallthru
        _
    $region20: #{residual_block_forward.6} parent=5 // pred_fallthru
      _
    %p210 = scmp.le.s32.totalorder 1, %s11
    %p211 = scmp.lt.s32.totalorder %s11, 5
    %p212 = pnand %p210, %p211
    %p213 = pneg %p212
    // Predicated region
    $region25: #{residual_block_forward.6} parent=5 // pred_check
      _
    $region26: #{residual_block_forward.6} parent=5 // pred_check_branch
      %215 = sbr.rel (%p212) target = $region28
    $region27: #{residual_block_forward.6} parent=5 // pred_region
      %s216 = ssub.s32 %s11, 1
      %p217 = scmp.lt.s32.totalorder %s21, 1
      %s218 = scalar_select %p217, %s21, 1
      %s219 = smul.addr %s218, 54
      %s220 = smul.addr %s219, 4
      %s221 = scalar_lea.vmem %s0, %s220
      %p222 = pneg %p56
      %p223 = pneg %p53
      %p224 = scmp.lt.s32.totalorder %s22, 0
      %s225 = scalar_select %p224, %s22, 0
      %s226 = smul.addr %s225, 4
      %s227 = scalar_lea.vmem %s1, %s226
      %p228 = pneg %p82
      %p229 = pneg %p79
      %p230 = pneg %p112
      %p231 = pneg %p109
      %s232 = smul.u32 16, %s23
      %p233 = scmp.lt.s32.totalorder %s21, 1
      %s234 = scalar_select %p233, %s21, 1
      %p235 = scmp.lt.s32.totalorder %s232, 31
      %s236 = scalar_select %p235, %s232, 31
      %p237 = scmp.lt.s32.totalorder %s22, 0
      %s238 = scalar_select %p237, %s22, 0
      %s239 = sadd.s32 %s238, %s236
      %s240 = smul.addr %s234, 32
      %s241 = sadd.s32 %s239, %s240
      %s242 = smul.addr %s241, 4
      %s243 = scalar_lea.vmem %s2, %s242
      %p244 = pneg %p144
      %p245 = pneg %p141
      %s246 = smul.u32 %s21, 2
      %s247 = sadd.s32 %s246, %s23
      %p248 = scmp.lt.s32.totalorder %s247, 3
      %s249 = scalar_select %p248, %s247, 3
      %p250 = scmp.lt.s32.totalorder %s22, 0
      %s251 = scalar_select %p250, %s22, 0
      %s252 = sadd.s32 %s251, %s249
      %s253 = scalar_lea.vmem %s3, %s252
      %p254 = pneg %p176
      %p255 = pneg %p173
      %s256 = smul.u32 %s21, 2
      %s257 = sadd.s32 %s256, %s23
      %p258 = scmp.lt.s32.totalorder %s257, 3
      %s259 = scalar_select %p258, %s257, 3
      %p260 = scmp.lt.s32.totalorder %s22, 0
      %s261 = scalar_select %p260, %s22, 0
      %s262 = sadd.s32 %s261, %s259
      %s263 = scalar_lea.vmem %s4, %s262
      %p264 = scmp.lt.s32.totalorder %s21, 1
      %s265 = scalar_select %p264, %s21, 1
      %s266 = smul.addr %s265, 54
      %s267 = smul.addr %s266, 4
      %s268 = scalar_lea.vmem %s0, %s267
      %p269 = scmp.lt.s32.totalorder %s22, 0
      %s270 = scalar_select %p269, %s22, 0
      %s271 = smul.addr %s270, 4
      %s272 = scalar_lea.vmem %s1, %s271
      %s273 = smul.u32 16, %s23
      %p274 = scmp.lt.s32.totalorder %s21, 1
      %s275 = scalar_select %p274, %s21, 1
      %p276 = scmp.lt.s32.totalorder %s273, 31
      %s277 = scalar_select %p276, %s273, 31
      %p278 = scmp.lt.s32.totalorder %s22, 0
      %s279 = scalar_select %p278, %s22, 0
      %s280 = sadd.s32 %s279, %s277
      %s281 = smul.addr %s275, 32
      %s282 = sadd.s32 %s280, %s281
      %s283 = smul.addr %s282, 4
      %s284 = scalar_lea.vmem %s2, %s283
      %s285 = smul.u32 16, %s23
      %s286 = smul.u32 %s21, 2
      %s287 = sadd.s32 %s286, %s23
      %p288 = scmp.lt.s32.totalorder %s287, 3
      %s289 = scalar_select %p288, %s287, 3
      %p290 = scmp.lt.s32.totalorder %s22, 0
      %s291 = scalar_select %p290, %s22, 0
      %s292 = sadd.s32 %s291, %s289
      %s293 = scalar_lea.vmem %s3, %s292
      %s294 = smul.u32 %s21, 2
      %s295 = sadd.s32 %s294, %s23
      %s296 = smul.u32 %s21, 2
      %s297 = sadd.s32 %s296, %s23
      %p298 = scmp.lt.s32.totalorder %s297, 3
      %s299 = scalar_select %p298, %s297, 3
      %p300 = scmp.lt.s32.totalorder %s22, 0
      %s301 = scalar_select %p300, %s22, 0
      %s302 = sadd.s32 %s301, %s299
      %s303 = scalar_lea.vmem %s4, %s302
      %s304 = smul.u32 %s21, 2
      %s305 = sadd.s32 %s304, %s23
      %s307 = smul.u32 %s23, 8
      %s308 = smul.u32 %s307, 3
      %s309 = smul.addr %s308, 4
      %s310 = scalar_lea.vmem %s268, %s309
      %v311 = vld [vmem:[%s310] sm:$0xf]
      %v312 = vld [vmem:[%s310 + $0x4] sm:$0xf]
      %313 = vst [vmem:[#allocation2] sm:$0xf] %v311
      %314 = vst [vmem:[#allocation2 + $0xc] sm:$0xf] %v312
      %v315 = vld [vmem:[%s310] sm:$0xf]
      %v316 = vld [vmem:[%s310 + $0x4] sm:$0xf]
      %v317 = vld [vmem:[%s310 + $0x8] sm:$0x1]
      %vm318 = vsmask.f32 3328
      %vm319 = vsmask.f32 7440
      %vm320 = vmor %vm318, %vm319
      %v322 = vshrl.u32 %v315, 16
      %v324 = vrot.slane %v322, 4
      %v325 = vshll.u32 %v315, 16
      %v327 = vrot.slane %v325, 5
      %v328 = vor.u32 %v324, %v327
      %v329 = vrot.slane %v328, 4
      %v331 = vshll.u32 %v316, 16
      %v333 = vrot.slane %v331, 5
      %v334 = vsel %vm320, %v329, %v333
      %v335 = vshrl.u32 %v316, 16
      %v337 = vrot.slane %v335, 4
      %v338 = vor.u32 %v337, %v333
      %v339 = vrot.slane %v338, 4
      %v341 = vshll.u32 %v317, 16
      %v343 = vrot.slane %v341, 5
      %v344 = vsel %vm320, %v339, %v343
      %347 = vst [vmem:[#allocation2 + $0x4] sm:$0xf] %v334
      %348 = vst [vmem:[#allocation2 + $0x10] sm:$0xf] %v344
      %v349 = vld [vmem:[%s310] sm:$0xe]
      %v350 = vld [vmem:[%s310 + $0x4] sm:$0xf]
      %v351 = vld [vmem:[%s310 + $0x8] sm:$0x1]
      %vm355 = vcmask 1042432
      %vm356 = vcmask 1046532
      %vm357 = vmor %vm355, %vm356
      %v358 = vrot.slane %v349, 5
      %v359 = vrot.slane %v358, 4
      %v360 = vrot.slane %v350, 5
      %v361 = vsel %vm357, %v359, %v360
      %v362 = vrot.slane %v360, 4
      %v363 = vrot.slane %v351, 5
      %v364 = vsel %vm357, %v362, %v363
      %367 = vst [vmem:[#allocation2 + $0x8] sm:$0xf] %v361
      %368 = vst [vmem:[#allocation2 + $0x14] sm:$0xf] %v364
      %s369 = sadd.s32 %s307, 1
      %s370 = smul.u32 %s369, 3
      %s371 = smul.addr %s370, 4
      %s372 = scalar_lea.vmem %s268, %s371
      %v373 = vld [vmem:[%s372] sm:$0xf]
      %v374 = vld [vmem:[%s372 + $0x4] sm:$0xf]
      %375 = vst [vmem:[#allocation2 + $0x18] sm:$0xf] %v373
      %376 = vst [vmem:[#allocation2 + $0x24] sm:$0xf] %v374
      %v377 = vld [vmem:[%s372] sm:$0xf]
      %v378 = vld [vmem:[%s372 + $0x4] sm:$0xf]
      %v379 = vld [vmem:[%s372 + $0x8] sm:$0x1]
      %v381 = vshrl.u32 %v377, 16
      %v383 = vrot.slane %v381, 4
      %v384 = vshll.u32 %v377, 16
      %v386 = vrot.slane %v384, 5
      %v387 = vor.u32 %v383, %v386
      %v388 = vrot.slane %v387, 4
      %v390 = vshll.u32 %v378, 16
      %v392 = vrot.slane %v390, 5
      %v393 = vsel %vm320, %v388, %v392
      %v394 = vshrl.u32 %v378, 16
      %v396 = vrot.slane %v394, 4
      %v397 = vor.u32 %v396, %v392
      %v398 = vrot.slane %v397, 4
      %v400 = vshll.u32 %v379, 16
      %v402 = vrot.slane %v400, 5
      %v403 = vsel %vm320, %v398, %v402
      %406 = vst [vmem:[#allocation2 + $0x1c] sm:$0xf] %v393
      %407 = vst [vmem:[#allocation2 + $0x28] sm:$0xf] %v403
      %v408 = vld [vmem:[%s372] sm:$0xe]
      %v409 = vld [vmem:[%s372 + $0x4] sm:$0xf]
      %v410 = vld [vmem:[%s372 + $0x8] sm:$0x1]
      %v414 = vrot.slane %v408, 5
      %v415 = vrot.slane %v414, 4
      %v416 = vrot.slane %v409, 5
      %v417 = vsel %vm357, %v415, %v416
      %v418 = vrot.slane %v416, 4
      %v419 = vrot.slane %v410, 5
      %v420 = vsel %vm357, %v418, %v419
      %423 = vst [vmem:[#allocation2 + $0x20] sm:$0xf] %v417
      %424 = vst [vmem:[#allocation2 + $0x2c] sm:$0xf] %v420
      %s425 = sadd.s32 %s307, 2
      %s426 = smul.u32 %s425, 3
      %s427 = smul.addr %s426, 4
      %s428 = scalar_lea.vmem %s268, %s427
      %v429 = vld [vmem:[%s428] sm:$0xf]
      %v430 = vld [vmem:[%s428 + $0x4] sm:$0xf]
      %431 = vst [vmem:[#allocation2 + $0x30] sm:$0xf] %v429
      %432 = vst [vmem:[#allocation2 + $0x3c] sm:$0xf] %v430
      %v433 = vld [vmem:[%s428] sm:$0xf]
      %v434 = vld [vmem:[%s428 + $0x4] sm:$0xf]
      %v435 = vld [vmem:[%s428 + $0x8] sm:$0x1]
      %v437 = vshrl.u32 %v433, 16
      %v439 = vrot.slane %v437, 4
      %v440 = vshll.u32 %v433, 16
      %v442 = vrot.slane %v440, 5
      %v443 = vor.u32 %v439, %v442
      %v444 = vrot.slane %v443, 4
      %v446 = vshll.u32 %v434, 16
      %v448 = vrot.slane %v446, 5
      %v449 = vsel %vm320, %v444, %v448
      %v450 = vshrl.u32 %v434, 16
      %v452 = vrot.slane %v450, 4
      %v453 = vor.u32 %v452, %v448
      %v454 = vrot.slane %v453, 4
      %v456 = vshll.u32 %v435, 16
      %v458 = vrot.slane %v456, 5
      %v459 = vsel %vm320, %v454, %v458
      %462 = vst [vmem:[#allocation2 + $0x34] sm:$0xf] %v449
      %463 = vst [vmem:[#allocation2 + $0x40] sm:$0xf] %v459
      %v464 = vld [vmem:[%s428] sm:$0xe]
      %v465 = vld [vmem:[%s428 + $0x4] sm:$0xf]
      %v466 = vld [vmem:[%s428 + $0x8] sm:$0x1]
      %v470 = vrot.slane %v464, 5
      %v471 = vrot.slane %v470, 4
      %v472 = vrot.slane %v465, 5
      %v473 = vsel %vm357, %v471, %v472
      %v474 = vrot.slane %v472, 4
      %v475 = vrot.slane %v466, 5
      %v476 = vsel %vm357, %v474, %v475
      %479 = vst [vmem:[#allocation2 + $0x38] sm:$0xf] %v473
      %480 = vst [vmem:[#allocation2 + $0x44] sm:$0xf] %v476
      %s481 = sadd.s32 %s307, 3
      %s482 = smul.u32 %s481, 3
      %s483 = smul.addr %s482, 4
      %s484 = scalar_lea.vmem %s268, %s483
      %v485 = vld [vmem:[%s484] sm:$0xf]
      %v486 = vld [vmem:[%s484 + $0x4] sm:$0xf]
      %487 = vst [vmem:[#allocation2 + $0x48] sm:$0xf] %v485
      %488 = vst [vmem:[#allocation2 + $0x54] sm:$0xf] %v486
      %v489 = vld [vmem:[%s484] sm:$0xf]
      %v490 = vld [vmem:[%s484 + $0x4] sm:$0xf]
      %v491 = vld [vmem:[%s484 + $0x8] sm:$0x1]
      %v493 = vshrl.u32 %v489, 16
      %v495 = vrot.slane %v493, 4
      %v496 = vshll.u32 %v489, 16
      %v498 = vrot.slane %v496, 5
      %v499 = vor.u32 %v495, %v498
      %v500 = vrot.slane %v499, 4
      %v502 = vshll.u32 %v490, 16
      %v504 = vrot.slane %v502, 5
      %v505 = vsel %vm320, %v500, %v504
      %v506 = vshrl.u32 %v490, 16
      %v508 = vrot.slane %v506, 4
      %v509 = vor.u32 %v508, %v504
      %v510 = vrot.slane %v509, 4
      %v512 = vshll.u32 %v491, 16
      %v514 = vrot.slane %v512, 5
      %v515 = vsel %vm320, %v510, %v514
      %518 = vst [vmem:[#allocation2 + $0x4c] sm:$0xf] %v505
      %519 = vst [vmem:[#allocation2 + $0x58] sm:$0xf] %v515
      %v520 = vld [vmem:[%s484] sm:$0xe]
      %v521 = vld [vmem:[%s484 + $0x4] sm:$0xf]
      %v522 = vld [vmem:[%s484 + $0x8] sm:$0x1]
      %v526 = vrot.slane %v520, 5
      %v527 = vrot.slane %v526, 4
      %v528 = vrot.slane %v521, 5
      %v529 = vsel %vm357, %v527, %v528
      %v530 = vrot.slane %v528, 4
      %v531 = vrot.slane %v522, 5
      %v532 = vsel %vm357, %v530, %v531
      %535 = vst [vmem:[#allocation2 + $0x50] sm:$0xf] %v529
      %536 = vst [vmem:[#allocation2 + $0x5c] sm:$0xf] %v532
      %s537 = sadd.s32 %s307, 4
      %s538 = smul.u32 %s537, 3
      %s539 = smul.addr %s538, 4
      %s540 = scalar_lea.vmem %s268, %s539
      %v541 = vld [vmem:[%s540] sm:$0xf]
      %v542 = vld [vmem:[%s540 + $0x4] sm:$0xf]
      %543 = vst [vmem:[#allocation2 + $0x60] sm:$0xf] %v541
      %544 = vst [vmem:[#allocation2 + $0x6c] sm:$0xf] %v542
      %v545 = vld [vmem:[%s540] sm:$0xf]
      %v546 = vld [vmem:[%s540 + $0x4] sm:$0xf]
      %v547 = vld [vmem:[%s540 + $0x8] sm:$0x1]
      %v549 = vshrl.u32 %v545, 16
      %v551 = vrot.slane %v549, 4
      %v552 = vshll.u32 %v545, 16
      %v554 = vrot.slane %v552, 5
      %v555 = vor.u32 %v551, %v554
      %v556 = vrot.slane %v555, 4
      %v558 = vshll.u32 %v546, 16
      %v560 = vrot.slane %v558, 5
      %v561 = vsel %vm320, %v556, %v560
      %v562 = vshrl.u32 %v546, 16
      %v564 = vrot.slane %v562, 4
      %v565 = vor.u32 %v564, %v560
      %v566 = vrot.slane %v565, 4
      %v568 = vshll.u32 %v547, 16
      %v570 = vrot.slane %v568, 5
      %v571 = vsel %vm320, %v566, %v570
      %574 = vst [vmem:[#allocation2 + $0x64] sm:$0xf] %v561
      %575 = vst [vmem:[#allocation2 + $0x70] sm:$0xf] %v571
      %v576 = vld [vmem:[%s540] sm:$0xe]
      %v577 = vld [vmem:[%s540 + $0x4] sm:$0xf]
      %v578 = vld [vmem:[%s540 + $0x8] sm:$0x1]
      %v582 = vrot.slane %v576, 5
      %v583 = vrot.slane %v582, 4
      %v584 = vrot.slane %v577, 5
      %v585 = vsel %vm357, %v583, %v584
      %v586 = vrot.slane %v584, 4
      %v587 = vrot.slane %v578, 5
      %v588 = vsel %vm357, %v586, %v587
      %591 = vst [vmem:[#allocation2 + $0x68] sm:$0xf] %v585
      %592 = vst [vmem:[#allocation2 + $0x74] sm:$0xf] %v588
      %s593 = sadd.s32 %s307, 5
      %s594 = smul.u32 %s593, 3
      %s595 = smul.addr %s594, 4
      %s596 = scalar_lea.vmem %s268, %s595
      %v597 = vld [vmem:[%s596] sm:$0xf]
      %v598 = vld [vmem:[%s596 + $0x4] sm:$0xf]
      %599 = vst [vmem:[#allocation2 + $0x78] sm:$0xf] %v597
      %600 = vst [vmem:[#allocation2 + $0x84] sm:$0xf] %v598
      %v601 = vld [vmem:[%s596] sm:$0xf]
      %v602 = vld [vmem:[%s596 + $0x4] sm:$0xf]
      %v603 = vld [vmem:[%s596 + $0x8] sm:$0x1]
      %v605 = vshrl.u32 %v601, 16
      %v607 = vrot.slane %v605, 4
      %v608 = vshll.u32 %v601, 16
      %v610 = vrot.slane %v608, 5
      %v611 = vor.u32 %v607, %v610
      %v612 = vrot.slane %v611, 4
      %v614 = vshll.u32 %v602, 16
      %v616 = vrot.slane %v614, 5
      %v617 = vsel %vm320, %v612, %v616
      %v618 = vshrl.u32 %v602, 16
      %v620 = vrot.slane %v618, 4
      %v621 = vor.u32 %v620, %v616
      %v622 = vrot.slane %v621, 4
      %v624 = vshll.u32 %v603, 16
      %v626 = vrot.slane %v624, 5
      %v627 = vsel %vm320, %v622, %v626
      %630 = vst [vmem:[#allocation2 + $0x7c] sm:$0xf] %v617
      %631 = vst [vmem:[#allocation2 + $0x88] sm:$0xf] %v627
      %v632 = vld [vmem:[%s596] sm:$0xe]
      %v633 = vld [vmem:[%s596 + $0x4] sm:$0xf]
      %v634 = vld [vmem:[%s596 + $0x8] sm:$0x1]
      %v638 = vrot.slane %v632, 5
      %v639 = vrot.slane %v638, 4
      %v640 = vrot.slane %v633, 5
      %v641 = vsel %vm357, %v639, %v640
      %v642 = vrot.slane %v640, 4
      %v643 = vrot.slane %v634, 5
      %v644 = vsel %vm357, %v642, %v643
      %647 = vst [vmem:[#allocation2 + $0x80] sm:$0xf] %v641
      %648 = vst [vmem:[#allocation2 + $0x8c] sm:$0xf] %v644
      %s649 = sadd.s32 %s307, 6
      %s650 = smul.u32 %s649, 3
      %s651 = smul.addr %s650, 4
      %s652 = scalar_lea.vmem %s268, %s651
      %v653 = vld [vmem:[%s652] sm:$0xf]
      %v654 = vld [vmem:[%s652 + $0x4] sm:$0xf]
      %655 = vst [vmem:[#allocation2 + $0x90] sm:$0xf] %v653
      %656 = vst [vmem:[#allocation2 + $0x9c] sm:$0xf] %v654
      %v657 = vld [vmem:[%s652] sm:$0xf]
      %v658 = vld [vmem:[%s652 + $0x4] sm:$0xf]
      %v659 = vld [vmem:[%s652 + $0x8] sm:$0x1]
      %v661 = vshrl.u32 %v657, 16
      %v663 = vrot.slane %v661, 4
      %v664 = vshll.u32 %v657, 16
      %v666 = vrot.slane %v664, 5
      %v667 = vor.u32 %v663, %v666
      %v668 = vrot.slane %v667, 4
      %v670 = vshll.u32 %v658, 16
      %v672 = vrot.slane %v670, 5
      %v673 = vsel %vm320, %v668, %v672
      %v674 = vshrl.u32 %v658, 16
      %v676 = vrot.slane %v674, 4
      %v677 = vor.u32 %v676, %v672
      %v678 = vrot.slane %v677, 4
      %v680 = vshll.u32 %v659, 16
      %v682 = vrot.slane %v680, 5
      %v683 = vsel %vm320, %v678, %v682
      %686 = vst [vmem:[#allocation2 + $0x94] sm:$0xf] %v673
      %687 = vst [vmem:[#allocation2 + $0xa0] sm:$0xf] %v683
      %v688 = vld [vmem:[%s652] sm:$0xe]
      %v689 = vld [vmem:[%s652 + $0x4] sm:$0xf]
      %v690 = vld [vmem:[%s652 + $0x8] sm:$0x1]
      %v694 = vrot.slane %v688, 5
      %v695 = vrot.slane %v694, 4
      %v696 = vrot.slane %v689, 5
      %v697 = vsel %vm357, %v695, %v696
      %v698 = vrot.slane %v696, 4
      %v699 = vrot.slane %v690, 5
      %v700 = vsel %vm357, %v698, %v699
      %703 = vst [vmem:[#allocation2 + $0x98] sm:$0xf] %v697
      %704 = vst [vmem:[#allocation2 + $0xa4] sm:$0xf] %v700
      %s705 = sadd.s32 %s307, 7
      %s706 = smul.u32 %s705, 3
      %s707 = smul.addr %s706, 4
      %s708 = scalar_lea.vmem %s268, %s707
      %v709 = vld [vmem:[%s708] sm:$0xf]
      %v710 = vld [vmem:[%s708 + $0x4] sm:$0xf]
      %711 = vst [vmem:[#allocation2 + $0xa8] sm:$0xf] %v709
      %712 = vst [vmem:[#allocation2 + $0xb4] sm:$0xf] %v710
      %v713 = vld [vmem:[%s708] sm:$0xf]
      %v714 = vld [vmem:[%s708 + $0x4] sm:$0xf]
      %v715 = vld [vmem:[%s708 + $0x8] sm:$0x1]
      %v717 = vshrl.u32 %v713, 16
      %v719 = vrot.slane %v717, 4
      %v720 = vshll.u32 %v713, 16
      %v722 = vrot.slane %v720, 5
      %v723 = vor.u32 %v719, %v722
      %v724 = vrot.slane %v723, 4
      %v726 = vshll.u32 %v714, 16
      %v728 = vrot.slane %v726, 5
      %v729 = vsel %vm320, %v724, %v728
      %v730 = vshrl.u32 %v714, 16
      %v732 = vrot.slane %v730, 4
      %v733 = vor.u32 %v732, %v728
      %v734 = vrot.slane %v733, 4
      %v736 = vshll.u32 %v715, 16
      %v738 = vrot.slane %v736, 5
      %v739 = vsel %vm320, %v734, %v738
      %742 = vst [vmem:[#allocation2 + $0xac] sm:$0xf] %v729
      %743 = vst [vmem:[#allocation2 + $0xb8] sm:$0xf] %v739
      %v744 = vld [vmem:[%s708] sm:$0xe]
      %v745 = vld [vmem:[%s708 + $0x4] sm:$0xf]
      %v746 = vld [vmem:[%s708 + $0x8] sm:$0x1]
      %v750 = vrot.slane %v744, 5
      %v751 = vrot.slane %v750, 4
      %v752 = vrot.slane %v745, 5
      %v753 = vsel %vm357, %v751, %v752
      %v754 = vrot.slane %v752, 4
      %v755 = vrot.slane %v746, 5
      %v756 = vsel %vm357, %v754, %v755
      %759 = vst [vmem:[#allocation2 + $0xb0] sm:$0xf] %v753
      %760 = vst [vmem:[#allocation2 + $0xbc] sm:$0xf] %v756
      %s761 = sadd.s32 %s307, 8
      %s762 = smul.u32 %s761, 3
      %s763 = smul.addr %s762, 4
      %s764 = scalar_lea.vmem %s268, %s763
      %v765 = vld [vmem:[%s764] sm:$0xf]
      %v766 = vld [vmem:[%s764 + $0x4] sm:$0xf]
      %767 = vst [vmem:[#allocation2 + $0xc0] sm:$0xf] %v765
      %768 = vst [vmem:[#allocation2 + $0xcc] sm:$0xf] %v766
      %v769 = vld [vmem:[%s764] sm:$0xf]
      %v770 = vld [vmem:[%s764 + $0x4] sm:$0xf]
      %v771 = vld [vmem:[%s764 + $0x8] sm:$0x1]
      %v773 = vshrl.u32 %v769, 16
      %v775 = vrot.slane %v773, 4
      %v776 = vshll.u32 %v769, 16
      %v778 = vrot.slane %v776, 5
      %v779 = vor.u32 %v775, %v778
      %v780 = vrot.slane %v779, 4
      %v782 = vshll.u32 %v770, 16
      %v784 = vrot.slane %v782, 5
      %v785 = vsel %vm320, %v780, %v784
      %v786 = vshrl.u32 %v770, 16
      %v788 = vrot.slane %v786, 4
      %v789 = vor.u32 %v788, %v784
      %v790 = vrot.slane %v789, 4
      %v792 = vshll.u32 %v771, 16
      %v794 = vrot.slane %v792, 5
      %v795 = vsel %vm320, %v790, %v794
      %798 = vst [vmem:[#allocation2 + $0xc4] sm:$0xf] %v785
      %799 = vst [vmem:[#allocation2 + $0xd0] sm:$0xf] %v795
      %v800 = vld [vmem:[%s764] sm:$0xe]
      %v801 = vld [vmem:[%s764 + $0x4] sm:$0xf]
      %v802 = vld [vmem:[%s764 + $0x8] sm:$0x1]
      %v806 = vrot.slane %v800, 5
      %v807 = vrot.slane %v806, 4
      %v808 = vrot.slane %v801, 5
      %v809 = vsel %vm357, %v807, %v808
      %v810 = vrot.slane %v808, 4
      %v811 = vrot.slane %v802, 5
      %v812 = vsel %vm357, %v810, %v811
      %815 = vst [vmem:[#allocation2 + $0xc8] sm:$0xf] %v809
      %816 = vst [vmem:[#allocation2 + $0xd4] sm:$0xf] %v812
      %s817 = sadd.s32 %s307, 9
      %s818 = smul.u32 %s817, 3
      %s819 = smul.addr %s818, 4
      %s820 = scalar_lea.vmem %s268, %s819
      %v821 = vld [vmem:[%s820] sm:$0xf]
      %v822 = vld [vmem:[%s820 + $0x4] sm:$0xf]
      %823 = vst [vmem:[#allocation2 + $0xd8] sm:$0xf] %v821
      %824 = vst [vmem:[#allocation2 + $0xe4] sm:$0xf] %v822
      %v825 = vld [vmem:[%s820] sm:$0xf]
      %v826 = vld [vmem:[%s820 + $0x4] sm:$0xf]
      %v827 = vld [vmem:[%s820 + $0x8] sm:$0x1]
      %v829 = vshrl.u32 %v825, 16
      %v831 = vrot.slane %v829, 4
      %v832 = vshll.u32 %v825, 16
      %v834 = vrot.slane %v832, 5
      %v835 = vor.u32 %v831, %v834
      %v836 = vrot.slane %v835, 4
      %v838 = vshll.u32 %v826, 16
      %v840 = vrot.slane %v838, 5
      %v841 = vsel %vm320, %v836, %v840
      %v842 = vshrl.u32 %v826, 16
      %v844 = vrot.slane %v842, 4
      %v845 = vor.u32 %v844, %v840
      %v846 = vrot.slane %v845, 4
      %v848 = vshll.u32 %v827, 16
      %v850 = vrot.slane %v848, 5
      %v851 = vsel %vm320, %v846, %v850
      %854 = vst [vmem:[#allocation2 + $0xdc] sm:$0xf] %v841
      %855 = vst [vmem:[#allocation2 + $0xe8] sm:$0xf] %v851
      %v856 = vld [vmem:[%s820] sm:$0xe]
      %v857 = vld [vmem:[%s820 + $0x4] sm:$0xf]
      %v858 = vld [vmem:[%s820 + $0x8] sm:$0x1]
      %v862 = vrot.slane %v856, 5
      %v863 = vrot.slane %v862, 4
      %v864 = vrot.slane %v857, 5
      %v865 = vsel %vm357, %v863, %v864
      %v866 = vrot.slane %v864, 4
      %v867 = vrot.slane %v858, 5
      %v868 = vsel %vm357, %v866, %v867
      %871 = vst [vmem:[#allocation2 + $0xe0] sm:$0xf] %v865
      %872 = vst [vmem:[#allocation2 + $0xec] sm:$0xf] %v868
      %v873 = vld [vmem:[#allocation2] sm:$0xff]
      %v874 = vld [vmem:[#allocation2 + $0x8] sm:$0xf]
      %v875 = vld [vmem:[#allocation2 + $0xc] sm:$0xff]
      %v876 = vld [vmem:[#allocation2 + $0x14] sm:$0xf]
      %v877 = vld [vmem:[#allocation2 + $0x18] sm:$0xff]
      %v878 = vld [vmem:[#allocation2 + $0x20] sm:$0xf]
      %v879 = vld [vmem:[#allocation2 + $0x24] sm:$0xff]
      %v880 = vld [vmem:[#allocation2 + $0x2c] sm:$0xf]
      %v881 = vld [vmem:[#allocation2 + $0x30] sm:$0xff]
      %v882 = vld [vmem:[#allocation2 + $0x38] sm:$0xf]
      %v883 = vld [vmem:[#allocation2 + $0x3c] sm:$0xff]
      %v884 = vld [vmem:[#allocation2 + $0x44] sm:$0xf]
      %v885 = vld [vmem:[#allocation2 + $0x48] sm:$0xff]
      %v886 = vld [vmem:[#allocation2 + $0x50] sm:$0xf]
      %v887 = vld [vmem:[#allocation2 + $0x54] sm:$0xff]
      %v888 = vld [vmem:[#allocation2 + $0x5c] sm:$0xf]
      %v889 = vld [vmem:[#allocation2 + $0x60] sm:$0xff]
      %v890 = vld [vmem:[#allocation2 + $0x68] sm:$0xf]
      %v891 = vld [vmem:[#allocation2 + $0x6c] sm:$0xff]
      %v892 = vld [vmem:[#allocation2 + $0x74] sm:$0xf]
      %v893 = vld [vmem:[#allocation2 + $0x78] sm:$0xff]
      %v894 = vld [vmem:[#allocation2 + $0x80] sm:$0xf]
      %v895 = vld [vmem:[#allocation2 + $0x84] sm:$0xff]
      %v896 = vld [vmem:[#allocation2 + $0x8c] sm:$0xf]
      %v897 = vld [vmem:[#allocation2 + $0x90] sm:$0xff]
      %v898 = vld [vmem:[#allocation2 + $0x98] sm:$0xf]
      %v899 = vld [vmem:[#allocation2 + $0x9c] sm:$0xff]
      %v900 = vld [vmem:[#allocation2 + $0xa4] sm:$0xf]
      %v901 = vld [vmem:[#allocation2 + $0xa8] sm:$0xff]
      %v902 = vld [vmem:[#allocation2 + $0xb0] sm:$0xf]
      %v903 = vld [vmem:[#allocation2 + $0xb4] sm:$0xff]
      %v904 = vld [vmem:[#allocation2 + $0xbc] sm:$0xf]
      %v905 = vld [vmem:[%s272] sm:$0xf]
      %v906 = vld [vmem:[%s272 + $0x4] sm:$0xf]
      %v907 = vld [vmem:[%s272 + $0x8] sm:$0xf]
      %v908 = vld [vmem:[%s272 + $0xc] sm:$0xf]
      %v909 = vld [vmem:[%s272 + $0x10] sm:$0xf]
      %v910 = vld [vmem:[%s272 + $0x14] sm:$0xf]
      %v911 = vld [vmem:[%s272 + $0x18] sm:$0xf]
      %v912 = vld [vmem:[%s272 + $0x1c] sm:$0xf]
      %v913 = vld [vmem:[%s272 + $0x20] sm:$0xf]
      %v914 = vld [vmem:[%s272 + $0x24] sm:$0xf]
      %v915 = vld [vmem:[%s272 + $0x28] sm:$0xf]
      %v916 = vld [vmem:[%s272 + $0x2c] sm:$0xf]
      %v917 = vld [vmem:[%s272 + $0x30] sm:$0xf]
      %v918 = vld [vmem:[%s272 + $0x34] sm:$0xf]
      %v919 = vld [vmem:[%s272 + $0x38] sm:$0xf]
      %v920 = vld [vmem:[%s272 + $0x3c] sm:$0xf]
      %v921 = vld [vmem:[%s272 + $0x40] sm:$0xf]
      %v922 = vld [vmem:[%s272 + $0x44] sm:$0xf]
      %v923 = vld [vmem:[%s272 + $0x48] sm:$0xf]
      %v924 = vld [vmem:[%s272 + $0x4c] sm:$0xf]
      %v925 = vld [vmem:[%s272 + $0x50] sm:$0xf]
      %v926 = vld [vmem:[%s272 + $0x54] sm:$0xf]
      %v927 = vld [vmem:[%s272 + $0x58] sm:$0xf]
      %v928 = vld [vmem:[%s272 + $0x5c] sm:$0xf]
      %v929 = vld [vmem:[%s272 + $0x60] sm:$0xf]
      %v930 = vld [vmem:[%s272 + $0x64] sm:$0xf]
      %v931 = vld [vmem:[%s272 + $0x68] sm:$0xf]
      %v932 = vld [vmem:[%s272 + $0x6c] sm:$0xf]
      %v933 = vld [vmem:[%s272 + $0x70] sm:$0xf]
      %v934 = vld [vmem:[%s272 + $0x74] sm:$0xf]
      %v935 = vld [vmem:[%s272 + $0x78] sm:$0xf]
      %v936 = vld [vmem:[%s272 + $0x7c] sm:$0xf]
      %v937 = vld [vmem:[%s272 + $0x80] sm:$0xf]
      %v938 = vld [vmem:[%s272 + $0x84] sm:$0xf]
      %v939 = vld [vmem:[%s272 + $0x88] sm:$0xf]
      %v940 = vld [vmem:[%s272 + $0x8c] sm:$0xf]
      %v941 = vld [vmem:[%s272 + $0x90] sm:$0xf]
      %v942 = vld [vmem:[%s272 + $0x94] sm:$0xf]
      %v943 = vld [vmem:[%s272 + $0x98] sm:$0xf]
      %v944 = vld [vmem:[%s272 + $0x9c] sm:$0xf]
      %v945 = vld [vmem:[%s272 + $0xa0] sm:$0xf]
      %v946 = vld [vmem:[%s272 + $0xa4] sm:$0xf]
      %v947 = vld [vmem:[%s272 + $0xa8] sm:$0xf]
      %v948 = vld [vmem:[%s272 + $0xac] sm:$0xf]
      %v949 = vld [vmem:[%s272 + $0xb0] sm:$0xf]
      %v950 = vld [vmem:[%s272 + $0xb4] sm:$0xf]
      %v951 = vld [vmem:[%s272 + $0xb8] sm:$0xf]
      %v952 = vld [vmem:[%s272 + $0xbc] sm:$0xf]
      %v953 = vld [vmem:[#allocation2 + $0xc0] sm:$0xff]
      %v954 = vld [vmem:[#allocation2 + $0xc8] sm:$0xf]
      %v955 = vld [vmem:[#allocation2 + $0xcc] sm:$0xff]
      %v956 = vld [vmem:[#allocation2 + $0xd4] sm:$0xf]
      %s957 = scalar_lea.vmem %s272, 192
      %v958 = vld [vmem:[%s957] sm:$0xf]
      %v959 = vld [vmem:[%s957 + $0x4] sm:$0xf]
      %v960 = vld [vmem:[%s957 + $0x8] sm:$0xf]
      %v961 = vld [vmem:[%s957 + $0xc] sm:$0xf]
      %v962 = vld [vmem:[%s957 + $0x10] sm:$0xf]
      %v963 = vld [vmem:[%s957 + $0x14] sm:$0xf]
      %v964 = vld [vmem:[%s957 + $0x18] sm:$0xf]
      %v965 = vld [vmem:[%s957 + $0x1c] sm:$0xf]
      %v966 = vld [vmem:[%s957 + $0x20] sm:$0xf]
      %v967 = vld [vmem:[%s957 + $0x24] sm:$0xf]
      %v968 = vld [vmem:[%s957 + $0x28] sm:$0xf]
      %v969 = vld [vmem:[%s957 + $0x2c] sm:$0xf]
      %v970 = vld [vmem:[%s957 + $0x30] sm:$0xf]
      %v971 = vld [vmem:[%s957 + $0x34] sm:$0xf]
      %v972 = vld [vmem:[%s957 + $0x38] sm:$0xf]
      %v973 = vld [vmem:[%s957 + $0x3c] sm:$0xf]
      %v974 = vld [vmem:[%s957 + $0x40] sm:$0xf]
      %v975 = vld [vmem:[%s957 + $0x44] sm:$0xf]
      %v976 = vld [vmem:[%s957 + $0x48] sm:$0xf]
      %v977 = vld [vmem:[%s957 + $0x4c] sm:$0xf]
      %v978 = vld [vmem:[%s957 + $0x50] sm:$0xf]
      %v979 = vld [vmem:[%s957 + $0x54] sm:$0xf]
      %v980 = vld [vmem:[%s957 + $0x58] sm:$0xf]
      %v981 = vld [vmem:[%s957 + $0x5c] sm:$0xf]
      %v982 = vld [vmem:[%s957 + $0x60] sm:$0xf]
      %v983 = vld [vmem:[%s957 + $0x64] sm:$0xf]
      %v984 = vld [vmem:[%s957 + $0x68] sm:$0xf]
      %v985 = vld [vmem:[%s957 + $0x6c] sm:$0xf]
      %v986 = vld [vmem:[%s957 + $0x70] sm:$0xf]
      %v987 = vld [vmem:[%s957 + $0x74] sm:$0xf]
      %v988 = vld [vmem:[%s957 + $0x78] sm:$0xf]
      %v989 = vld [vmem:[%s957 + $0x7c] sm:$0xf]
      %v990 = vld [vmem:[%s957 + $0x80] sm:$0xf]
      %v991 = vld [vmem:[%s957 + $0x84] sm:$0xf]
      %v992 = vld [vmem:[%s957 + $0x88] sm:$0xf]
      %v993 = vld [vmem:[%s957 + $0x8c] sm:$0xf]
      %v994 = vld [vmem:[%s957 + $0x90] sm:$0xf]
      %v995 = vld [vmem:[%s957 + $0x94] sm:$0xf]
      %v996 = vld [vmem:[%s957 + $0x98] sm:$0xf]
      %v997 = vld [vmem:[%s957 + $0x9c] sm:$0xf]
      %v998 = vld [vmem:[%s957 + $0xa0] sm:$0xf]
      %v999 = vld [vmem:[%s957 + $0xa4] sm:$0xf]
      %v1000 = vld [vmem:[%s957 + $0xa8] sm:$0xf]
      %v1001 = vld [vmem:[%s957 + $0xac] sm:$0xf]
      %v1002 = vld [vmem:[%s957 + $0xb0] sm:$0xf]
      %v1003 = vld [vmem:[%s957 + $0xb4] sm:$0xf]
      %v1004 = vld [vmem:[%s957 + $0xb8] sm:$0xf]
      %v1005 = vld [vmem:[%s957 + $0xbc] sm:$0xf]
      %v1038 = vunpack.c.l.b16 %v877
      %v1039 = vunpack.c.h.b16 %v877
      %v1040 = vunpack.c.l.b16 %v878
      %v1041 = vunpack.c.l.b16 %v879
      %v1042 = vunpack.c.h.b16 %v879
      %v1043 = vunpack.c.l.b16 %v880
      %v1044 = vunpack.c.l.b16 %v881
      %v1045 = vunpack.c.h.b16 %v881
      %v1046 = vunpack.c.l.b16 %v882
      %v1047 = vunpack.c.l.b16 %v883
      %v1048 = vunpack.c.h.b16 %v883
      %v1049 = vunpack.c.l.b16 %v884
      %v1050 = vunpack.c.l.b16 %v885
      %v1051 = vunpack.c.h.b16 %v885
      %v1052 = vunpack.c.l.b16 %v886
      %v1053 = vunpack.c.l.b16 %v887
      %v1054 = vunpack.c.h.b16 %v887
      %v1055 = vunpack.c.l.b16 %v888
      %v1056 = vunpack.c.l.b16 %v889
      %v1057 = vunpack.c.h.b16 %v889
      %v1058 = vunpack.c.l.b16 %v890
      %v1059 = vunpack.c.l.b16 %v891
      %v1060 = vunpack.c.h.b16 %v891
      %v1061 = vunpack.c.l.b16 %v892
      %v1062 = vunpack.c.l.b16 %v893
      %v1063 = vunpack.c.h.b16 %v893
      %v1064 = vunpack.c.l.b16 %v894
      %v1065 = vunpack.c.l.b16 %v895
      %v1066 = vunpack.c.h.b16 %v895
      %v1067 = vunpack.c.l.b16 %v896
      %v1068 = vunpack.c.l.b16 %v897
      %v1069 = vunpack.c.h.b16 %v897
      %v1070 = vunpack.c.l.b16 %v898
      %v1071 = vunpack.c.l.b16 %v899
      %v1072 = vunpack.c.h.b16 %v899
      %v1073 = vunpack.c.l.b16 %v900
      %v1074 = vunpack.c.l.b16 %v901
      %v1075 = vunpack.c.h.b16 %v901
      %v1076 = vunpack.c.l.b16 %v902
      %v1077 = vunpack.c.l.b16 %v903
      %v1078 = vunpack.c.h.b16 %v903
      %v1079 = vunpack.c.l.b16 %v904
      %v1080 = vunpack.c.l.b16 %v953
      %v1081 = vunpack.c.h.b16 %v953
      %v1082 = vunpack.c.l.b16 %v954
      %v1083 = vunpack.c.l.b16 %v955
      %v1084 = vunpack.c.h.b16 %v955
      %v1085 = vunpack.c.l.b16 %v956
      %v1086 = vpack.c.b16 %v1041, %v1038
      %v1087 = vpack.c.b16 %v1042, %v1039
      %v1088 = vpack.c.b16 %v1043, %v1040
      %v1089 = vpack.c.b16 %v1047, %v1044
      %v1090 = vpack.c.b16 %v1048, %v1045
      %v1091 = vpack.c.b16 %v1049, %v1046
      %v1092 = vpack.c.b16 %v1053, %v1050
      %v1093 = vpack.c.b16 %v1054, %v1051
      %v1094 = vpack.c.b16 %v1055, %v1052
      %v1095 = vpack.c.b16 %v1059, %v1056
      %v1096 = vpack.c.b16 %v1060, %v1057
      %v1097 = vpack.c.b16 %v1061, %v1058
      %v1098 = vpack.c.b16 %v1065, %v1062
      %v1099 = vpack.c.b16 %v1066, %v1063
      %v1100 = vpack.c.b16 %v1067, %v1064
      %v1101 = vpack.c.b16 %v1071, %v1068
      %v1102 = vpack.c.b16 %v1072, %v1069
      %v1103 = vpack.c.b16 %v1073, %v1070
      %v1104 = vpack.c.b16 %v1077, %v1074
      %v1105 = vpack.c.b16 %v1078, %v1075
      %v1106 = vpack.c.b16 %v1079, %v1076
      %v1107 = vpack.c.b16 %v1083, %v1080
      %v1108 = vpack.c.b16 %v1084, %v1081
      %v1109 = vpack.c.b16 %v1085, %v1082
      %v1182 = vunpack.c.l.b16 %v958
      %v1183 = vunpack.c.l.b16 %v959
      %v1184 = vunpack.c.l.b16 %v960
      %v1185 = vunpack.c.l.b16 %v961
      %v1186 = vunpack.c.l.b16 %v962
      %v1187 = vunpack.c.l.b16 %v963
      %v1188 = vunpack.c.l.b16 %v964
      %v1189 = vunpack.c.l.b16 %v965
      %v1190 = vunpack.c.l.b16 %v966
      %v1191 = vunpack.c.l.b16 %v967
      %v1192 = vunpack.c.l.b16 %v968
      %v1193 = vunpack.c.l.b16 %v969
      %v1194 = vunpack.c.l.b16 %v970
      %v1195 = vunpack.c.l.b16 %v971
      %v1196 = vunpack.c.l.b16 %v972
      %v1197 = vunpack.c.l.b16 %v973
      %v1198 = vunpack.c.l.b16 %v974
      %v1199 = vunpack.c.l.b16 %v975
      %v1200 = vunpack.c.l.b16 %v976
      %v1201 = vunpack.c.l.b16 %v977
      %v1202 = vunpack.c.l.b16 %v978
      %v1203 = vunpack.c.l.b16 %v979
      %v1204 = vunpack.c.l.b16 %v980
      %v1205 = vunpack.c.l.b16 %v981
      %v1206 = vunpack.c.l.b16 %v982
      %v1207 = vunpack.c.l.b16 %v983
      %v1208 = vunpack.c.l.b16 %v984
      %v1209 = vunpack.c.l.b16 %v985
      %v1210 = vunpack.c.l.b16 %v986
      %v1211 = vunpack.c.l.b16 %v987
      %v1212 = vunpack.c.l.b16 %v988
      %v1213 = vunpack.c.l.b16 %v989
      %v1214 = vunpack.c.l.b16 %v990
      %v1215 = vunpack.c.l.b16 %v991
      %v1216 = vunpack.c.l.b16 %v992
      %v1217 = vunpack.c.l.b16 %v993
      %v1218 = vunpack.c.l.b16 %v994
      %v1219 = vunpack.c.l.b16 %v995
      %v1220 = vunpack.c.l.b16 %v996
      %v1221 = vunpack.c.l.b16 %v997
      %v1222 = vunpack.c.l.b16 %v998
      %v1223 = vunpack.c.l.b16 %v999
      %v1224 = vunpack.c.l.b16 %v1000
      %v1225 = vunpack.c.l.b16 %v1001
      %v1226 = vunpack.c.l.b16 %v1002
      %v1227 = vunpack.c.l.b16 %v1003
      %v1228 = vunpack.c.l.b16 %v1004
      %v1229 = vunpack.c.l.b16 %v1005
      %v1230 = vpack.c.b16 %v1183, %v1182
      %v1231 = vpack.c.b16 %v1185, %v1184
      %v1232 = vpack.c.b16 %v1187, %v1186
      %v1233 = vpack.c.b16 %v1189, %v1188
      %v1234 = vpack.c.b16 %v1191, %v1190
      %v1235 = vpack.c.b16 %v1193, %v1192
      %v1236 = vpack.c.b16 %v1195, %v1194
      %v1237 = vpack.c.b16 %v1197, %v1196
      %v1238 = vpack.c.b16 %v1199, %v1198
      %v1239 = vpack.c.b16 %v1201, %v1200
      %v1240 = vpack.c.b16 %v1203, %v1202
      %v1241 = vpack.c.b16 %v1205, %v1204
      %v1242 = vpack.c.b16 %v1207, %v1206
      %v1243 = vpack.c.b16 %v1209, %v1208
      %v1244 = vpack.c.b16 %v1211, %v1210
      %v1245 = vpack.c.b16 %v1213, %v1212
      %v1246 = vpack.c.b16 %v1215, %v1214
      %v1247 = vpack.c.b16 %v1217, %v1216
      %v1248 = vpack.c.b16 %v1219, %v1218
      %v1249 = vpack.c.b16 %v1221, %v1220
      %v1250 = vpack.c.b16 %v1223, %v1222
      %v1251 = vpack.c.b16 %v1225, %v1224
      %v1252 = vpack.c.b16 %v1227, %v1226
      %v1253 = vpack.c.b16 %v1229, %v1228
      %1278 = vmatprep.subr.bf16.mxu0 0
      %1279 = vmatpush1.bf16.msra.mxu0 %v1237
      %1280 = vmatprep.subr.bf16.mxu0 0
      %1281 = vmatpush1.bf16.msra.mxu0 %v1236
      %1282 = vmatprep.subr.bf16.mxu0 0
      %1283 = vmatpush1.bf16.msra.mxu0 %v1235
      %1284 = vmatprep.subr.bf16.mxu0 0
      %1285 = vmatpush1.bf16.msra.mxu0 %v1234
      %1286 = vmatprep.subr.bf16.mxu0 0
      %1287 = vmatpush1.bf16.msra.mxu0 %v1233
      %1288 = vmatprep.subr.bf16.mxu0 0
      %1289 = vmatpush1.bf16.msra.mxu0 %v1232
      %1290 = vmatprep.subr.bf16.mxu0 0
      %1291 = vmatpush1.bf16.msra.mxu0 %v1231
      %1292 = vmatprep.subr.bf16.mxu0 0
      %1293 = vmatpush1.bf16.msra.mxu0 %v1230
      %1294 = vmatprep.subr.bf16.mxu0 0
      %1295 = vmatpush2.bf16.msra.mxu0 %v1245
      %1296 = vmatprep.subr.bf16.mxu0 0
      %1297 = vmatpush2.bf16.msra.mxu0 %v1244
      %1298 = vmatprep.subr.bf16.mxu0 0
      %1299 = vmatpush2.bf16.msra.mxu0 %v1243
      %1300 = vmatprep.subr.bf16.mxu0 0
      %1301 = vmatpush2.bf16.msra.mxu0 %v1242
      %1302 = vmatprep.subr.bf16.mxu0 0
      %1303 = vmatpush2.bf16.msra.mxu0 %v1241
      %1304 = vmatprep.subr.bf16.mxu0 0
      %1305 = vmatpush2.bf16.msra.mxu0 %v1240
      %1306 = vmatprep.subr.bf16.mxu0 0
      %1307 = vmatpush2.bf16.msra.mxu0 %v1239
      %1308 = vmatprep.subr.bf16.mxu0 0
      %1309 = vmatpush2.bf16.msra.mxu0 %v1238
      %1310 = vmatprep.mubr.bf16.mxu0 %v1087
      %1311 = vmatmul.mubr.bf16.gmra.mxu0 %v1086
      %v1312 = vpop.f32.mrf.mxu0
      %v1313 = vadd.f32 0.0, %v1312
      %v1314 = vpop.f32.mrf.mxu0
      %v1315 = vpop.f32.mrf.mxu0
      %v1316 = vadd.f32 0.0, %v1315
      %v1317 = vpop.f32.mrf.mxu0
      %1318 = vmatprep.mubr.bf16.mxu0 %v1090
      %1319 = vmatmul.mubr.bf16.gmra.mxu0 %v1089
      %v1320 = vpop.f32.mrf.mxu0
      %v1321 = vadd.f32 0.0, %v1320
      %v1322 = vpop.f32.mrf.mxu0
      %v1323 = vpop.f32.mrf.mxu0
      %v1324 = vadd.f32 0.0, %v1323
      %v1325 = vpop.f32.mrf.mxu0
      %1326 = vmatprep.mubr.bf16.mxu0 %v1093
      %1327 = vmatmul.mubr.bf16.gmra.mxu0 %v1092
      %v1328 = vpop.f32.mrf.mxu0
      %v1329 = vadd.f32 0.0, %v1328
      %v1330 = vpop.f32.mrf.mxu0
      %v1331 = vpop.f32.mrf.mxu0
      %v1332 = vadd.f32 0.0, %v1331
      %v1333 = vpop.f32.mrf.mxu0
      %1334 = vmatprep.mubr.bf16.mxu0 %v1096
      %1335 = vmatmul.mubr.bf16.gmra.mxu0 %v1095
      %v1336 = vpop.f32.mrf.mxu0
      %v1337 = vadd.f32 0.0, %v1336
      %v1338 = vpop.f32.mrf.mxu0
      %v1339 = vpop.f32.mrf.mxu0
      %v1340 = vadd.f32 0.0, %v1339
      %v1341 = vpop.f32.mrf.mxu0
      %1342 = vmatprep.mubr.bf16.mxu0 %v1099
      %1343 = vmatmul.mubr.bf16.gmra.mxu0 %v1098
      %v1344 = vpop.f32.mrf.mxu0
      %v1345 = vadd.f32 0.0, %v1344
      %v1346 = vpop.f32.mrf.mxu0
      %v1347 = vpop.f32.mrf.mxu0
      %v1348 = vadd.f32 0.0, %v1347
      %v1349 = vpop.f32.mrf.mxu0
      %1350 = vmatprep.mubr.bf16.mxu0 %v1102
      %1351 = vmatmul.mubr.bf16.gmra.mxu0 %v1101
      %v1352 = vpop.f32.mrf.mxu0
      %v1353 = vadd.f32 0.0, %v1352
      %v1354 = vpop.f32.mrf.mxu0
      %v1355 = vpop.f32.mrf.mxu0
      %v1356 = vadd.f32 0.0, %v1355
      %v1357 = vpop.f32.mrf.mxu0
      %1358 = vmatprep.mubr.bf16.mxu0 %v1105
      %1359 = vmatmul.mubr.bf16.gmra.mxu0 %v1104
      %v1360 = vpop.f32.mrf.mxu0
      %v1361 = vadd.f32 0.0, %v1360
      %v1362 = vpop.f32.mrf.mxu0
      %v1363 = vpop.f32.mrf.mxu0
      %v1364 = vadd.f32 0.0, %v1363
      %v1365 = vpop.f32.mrf.mxu0
      %1366 = vmatprep.mubr.bf16.mxu0 %v1108
      %1367 = vmatmul.mubr.bf16.gmra.mxu0 %v1107
      %v1368 = vpop.f32.mrf.mxu0
      %v1369 = vadd.f32 0.0, %v1368
      %v1370 = vpop.f32.mrf.mxu0
      %v1371 = vpop.f32.mrf.mxu0
      %v1372 = vadd.f32 0.0, %v1371
      %v1373 = vpop.f32.mrf.mxu0
      %1374 = vdwg.mxu0
      %1375 = vmatprep.subr.bf16.mxu0 0
      %1376 = vmatpush1.bf16.msra.mxu0 %v1253
      %1377 = vmatprep.subr.bf16.mxu0 0
      %1378 = vmatpush1.bf16.msra.mxu0 %v1252
      %1379 = vmatprep.subr.bf16.mxu0 0
      %1380 = vmatpush1.bf16.msra.mxu0 %v1251
      %1381 = vmatprep.subr.bf16.mxu0 0
      %1382 = vmatpush1.bf16.msra.mxu0 %v1250
      %1383 = vmatprep.subr.bf16.mxu0 0
      %1384 = vmatpush1.bf16.msra.mxu0 %v1249
      %1385 = vmatprep.subr.bf16.mxu0 0
      %1386 = vmatpush1.bf16.msra.mxu0 %v1248
      %1387 = vmatprep.subr.bf16.mxu0 0
      %1388 = vmatpush1.bf16.msra.mxu0 %v1247
      %1389 = vmatprep.subr.bf16.mxu0 0
      %1390 = vmatpush1.bf16.msra.mxu0 %v1246
      %1391 = vmatprep.subr.bf16.mxu0 0
      %1392 = vmatpush2.bf16.msra.mxu0 0
      %1393 = vmatprep.subr.bf16.mxu0 0
      %1394 = vmatpush2.bf16.msra.mxu0 0
      %1395 = vmatprep.subr.bf16.mxu0 0
      %1396 = vmatpush2.bf16.msra.mxu0 0
      %1397 = vmatprep.subr.bf16.mxu0 0
      %1398 = vmatpush2.bf16.msra.mxu0 0
      %1399 = vmatprep.subr.bf16.mxu0 0
      %1400 = vmatpush2.bf16.msra.mxu0 0
      %1401 = vmatprep.subr.bf16.mxu0 0
      %1402 = vmatpush2.bf16.msra.mxu0 0
      %1403 = vmatprep.subr.bf16.mxu0 0
      %1404 = vmatpush2.bf16.msra.mxu0 0
      %1405 = vmatprep.subr.bf16.mxu0 0
      %1406 = vmatpush2.bf16.msra.mxu0 0
      %1407 = vmatprep.mubr.bf16.mxu0 0
      %1408 = vmatmul.mubr.bf16.gmra.mxu0 %v1088
      %v1409 = vpop.f32.mrf.mxu0
      %v1410 = vadd.f32 %v1313, %v1409
      %v1411 = vpop.f32.mrf.mxu0
      %v1412 = vpop.f32.mrf.mxu0
      %v1413 = vadd.f32 %v1316, %v1412
      %v1414 = vpop.f32.mrf.mxu0
      %1415 = vmatprep.mubr.bf16.mxu0 0
      %1416 = vmatmul.mubr.bf16.gmra.mxu0 %v1091
      %v1417 = vpop.f32.mrf.mxu0
      %v1418 = vadd.f32 %v1321, %v1417
      %v1419 = vpop.f32.mrf.mxu0
      %v1420 = vpop.f32.mrf.mxu0
      %v1421 = vadd.f32 %v1324, %v1420
      %v1422 = vpop.f32.mrf.mxu0
      %1423 = vmatprep.mubr.bf16.mxu0 0
      %1424 = vmatmul.mubr.bf16.gmra.mxu0 %v1094
      %v1425 = vpop.f32.mrf.mxu0
      %v1426 = vadd.f32 %v1329, %v1425
      %v1427 = vpop.f32.mrf.mxu0
      %v1428 = vpop.f32.mrf.mxu0
      %v1429 = vadd.f32 %v1332, %v1428
      %v1430 = vpop.f32.mrf.mxu0
      %1431 = vmatprep.mubr.bf16.mxu0 0
      %1432 = vmatmul.mubr.bf16.gmra.mxu0 %v1097
      %v1433 = vpop.f32.mrf.mxu0
      %v1434 = vadd.f32 %v1337, %v1433
      %v1435 = vpop.f32.mrf.mxu0
      %v1436 = vpop.f32.mrf.mxu0
      %v1437 = vadd.f32 %v1340, %v1436
      %v1438 = vpop.f32.mrf.mxu0
      %1439 = vmatprep.mubr.bf16.mxu0 0
      %1440 = vmatmul.mubr.bf16.gmra.mxu0 %v1100
      %v1441 = vpop.f32.mrf.mxu0
      %v1442 = vadd.f32 %v1345, %v1441
      %v1443 = vpop.f32.mrf.mxu0
      %v1444 = vpop.f32.mrf.mxu0
      %v1445 = vadd.f32 %v1348, %v1444
      %v1446 = vpop.f32.mrf.mxu0
      %1447 = vmatprep.mubr.bf16.mxu0 0
      %1448 = vmatmul.mubr.bf16.gmra.mxu0 %v1103
      %v1449 = vpop.f32.mrf.mxu0
      %v1450 = vadd.f32 %v1353, %v1449
      %v1451 = vpop.f32.mrf.mxu0
      %v1452 = vpop.f32.mrf.mxu0
      %v1453 = vadd.f32 %v1356, %v1452
      %v1454 = vpop.f32.mrf.mxu0
      %1455 = vmatprep.mubr.bf16.mxu0 0
      %1456 = vmatmul.mubr.bf16.gmra.mxu0 %v1106
      %v1457 = vpop.f32.mrf.mxu0
      %v1458 = vadd.f32 %v1361, %v1457
      %v1459 = vpop.f32.mrf.mxu0
      %v1460 = vpop.f32.mrf.mxu0
      %v1461 = vadd.f32 %v1364, %v1460
      %v1462 = vpop.f32.mrf.mxu0
      %1463 = vmatprep.mubr.bf16.mxu0 0
      %1464 = vmatmul.mubr.bf16.gmra.mxu0 %v1109
      %v1465 = vpop.f32.mrf.mxu0
      %v1466 = vadd.f32 %v1369, %v1465
      %v1467 = vpop.f32.mrf.mxu0
      %v1468 = vpop.f32.mrf.mxu0
      %v1469 = vadd.f32 %v1372, %v1468
      %v1470 = vpop.f32.mrf.mxu0
      %1471 = vdwg.mxu0
      %v1476 = vunpack.c.l.b16 %v873
      %v1477 = vunpack.c.h.b16 %v873
      %v1478 = vunpack.c.l.b16 %v874
      %v1479 = vunpack.c.l.b16 %v875
      %v1480 = vunpack.c.h.b16 %v875
      %v1481 = vunpack.c.l.b16 %v876
      %v1482 = vpack.c.b16 %v1479, %v1476
      %v1483 = vpack.c.b16 %v1480, %v1477
      %v1484 = vpack.c.b16 %v1481, %v1478
      %v1536 = vunpack.c.l.b16 %v905
      %v1537 = vunpack.c.l.b16 %v906
      %v1538 = vunpack.c.l.b16 %v907
      %v1539 = vunpack.c.l.b16 %v908
      %v1540 = vunpack.c.l.b16 %v909
      %v1541 = vunpack.c.l.b16 %v910
      %v1542 = vunpack.c.l.b16 %v911
      %v1543 = vunpack.c.l.b16 %v912
      %v1544 = vunpack.c.l.b16 %v913
      %v1545 = vunpack.c.l.b16 %v914
      %v1546 = vunpack.c.l.b16 %v915
      %v1547 = vunpack.c.l.b16 %v916
      %v1548 = vunpack.c.l.b16 %v917
      %v1549 = vunpack.c.l.b16 %v918
      %v1550 = vunpack.c.l.b16 %v919
      %v1551 = vunpack.c.l.b16 %v920
      %v1552 = vunpack.c.l.b16 %v921
      %v1553 = vunpack.c.l.b16 %v922
      %v1554 = vunpack.c.l.b16 %v923
      %v1555 = vunpack.c.l.b16 %v924
      %v1556 = vunpack.c.l.b16 %v925
      %v1557 = vunpack.c.l.b16 %v926
      %v1558 = vunpack.c.l.b16 %v927
      %v1559 = vunpack.c.l.b16 %v928
      %v1560 = vunpack.c.l.b16 %v929
      %v1561 = vunpack.c.l.b16 %v930
      %v1562 = vunpack.c.l.b16 %v931
      %v1563 = vunpack.c.l.b16 %v932
      %v1564 = vunpack.c.l.b16 %v933
      %v1565 = vunpack.c.l.b16 %v934
      %v1566 = vunpack.c.l.b16 %v935
      %v1567 = vunpack.c.l.b16 %v936
      %v1568 = vunpack.c.l.b16 %v937
      %v1569 = vunpack.c.l.b16 %v938
      %v1570 = vunpack.c.l.b16 %v939
      %v1571 = vunpack.c.l.b16 %v940
      %v1572 = vunpack.c.l.b16 %v941
      %v1573 = vunpack.c.l.b16 %v942
      %v1574 = vunpack.c.l.b16 %v943
      %v1575 = vunpack.c.l.b16 %v944
      %v1576 = vunpack.c.l.b16 %v945
      %v1577 = vunpack.c.l.b16 %v946
      %v1578 = vunpack.c.l.b16 %v947
      %v1579 = vunpack.c.l.b16 %v948
      %v1580 = vunpack.c.l.b16 %v949
      %v1581 = vunpack.c.l.b16 %v950
      %v1582 = vunpack.c.l.b16 %v951
      %v1583 = vunpack.c.l.b16 %v952
      %v1584 = vpack.c.b16 %v1537, %v1536
      %v1585 = vpack.c.b16 %v1539, %v1538
      %v1586 = vpack.c.b16 %v1541, %v1540
      %v1587 = vpack.c.b16 %v1543, %v1542
      %v1588 = vpack.c.b16 %v1545, %v1544
      %v1589 = vpack.c.b16 %v1547, %v1546
      %v1590 = vpack.c.b16 %v1549, %v1548
      %v1591 = vpack.c.b16 %v1551, %v1550
      %v1592 = vpack.c.b16 %v1553, %v1552
      %v1593 = vpack.c.b16 %v1555, %v1554
      %v1594 = vpack.c.b16 %v1557, %v1556
      %v1595 = vpack.c.b16 %v1559, %v1558
      %v1596 = vpack.c.b16 %v1561, %v1560
      %v1597 = vpack.c.b16 %v1563, %v1562
      %v1598 = vpack.c.b16 %v1565, %v1564
      %v1599 = vpack.c.b16 %v1567, %v1566
      %v1600 = vpack.c.b16 %v1569, %v1568
      %v1601 = vpack.c.b16 %v1571, %v1570
      %v1602 = vpack.c.b16 %v1573, %v1572
      %v1603 = vpack.c.b16 %v1575, %v1574
      %v1604 = vpack.c.b16 %v1577, %v1576
      %v1605 = vpack.c.b16 %v1579, %v1578
      %v1606 = vpack.c.b16 %v1581, %v1580
      %v1607 = vpack.c.b16 %v1583, %v1582
      %1632 = vmatprep.subr.bf16.mxu0 0
      %1633 = vmatpush1.bf16.msra.mxu0 %v1591
      %1634 = vmatprep.subr.bf16.mxu0 0
      %1635 = vmatpush1.bf16.msra.mxu0 %v1590
      %1636 = vmatprep.subr.bf16.mxu0 0
      %1637 = vmatpush1.bf16.msra.mxu0 %v1589
      %1638 = vmatprep.subr.bf16.mxu0 0
      %1639 = vmatpush1.bf16.msra.mxu0 %v1588
      %1640 = vmatprep.subr.bf16.mxu0 0
      %1641 = vmatpush1.bf16.msra.mxu0 %v1587
      %1642 = vmatprep.subr.bf16.mxu0 0
      %1643 = vmatpush1.bf16.msra.mxu0 %v1586
      %1644 = vmatprep.subr.bf16.mxu0 0
      %1645 = vmatpush1.bf16.msra.mxu0 %v1585
      %1646 = vmatprep.subr.bf16.mxu0 0
      %1647 = vmatpush1.bf16.msra.mxu0 %v1584
      %1648 = vmatprep.subr.bf16.mxu0 0
      %1649 = vmatpush2.bf16.msra.mxu0 %v1599
      %1650 = vmatprep.subr.bf16.mxu0 0
      %1651 = vmatpush2.bf16.msra.mxu0 %v1598
      %1652 = vmatprep.subr.bf16.mxu0 0
      %1653 = vmatpush2.bf16.msra.mxu0 %v1597
      %1654 = vmatprep.subr.bf16.mxu0 0
      %1655 = vmatpush2.bf16.msra.mxu0 %v1596
      %1656 = vmatprep.subr.bf16.mxu0 0
      %1657 = vmatpush2.bf16.msra.mxu0 %v1595
      %1658 = vmatprep.subr.bf16.mxu0 0
      %1659 = vmatpush2.bf16.msra.mxu0 %v1594
      %1660 = vmatprep.subr.bf16.mxu0 0
      %1661 = vmatpush2.bf16.msra.mxu0 %v1593
      %1662 = vmatprep.subr.bf16.mxu0 0
      %1663 = vmatpush2.bf16.msra.mxu0 %v1592
      %1664 = vmatprep.mubr.bf16.mxu0 %v1483
      %1665 = vmatmul.mubr.bf16.gmra.mxu0 %v1482
      %v1666 = vpop.f32.mrf.mxu0
      %v1667 = vadd.f32 %v1410, %v1666
      %v1668 = vpop.f32.mrf.mxu0
      %v1669 = vpop.f32.mrf.mxu0
      %v1670 = vadd.f32 %v1413, %v1669
      %v1671 = vpop.f32.mrf.mxu0
      %1672 = vmatprep.mubr.bf16.mxu0 %v1087
      %1673 = vmatmul.mubr.bf16.gmra.mxu0 %v1086
      %v1674 = vpop.f32.mrf.mxu0
      %v1675 = vadd.f32 %v1418, %v1674
      %v1676 = vpop.f32.mrf.mxu0
      %v1677 = vpop.f32.mrf.mxu0
      %v1678 = vadd.f32 %v1421, %v1677
      %v1679 = vpop.f32.mrf.mxu0
      %1680 = vmatprep.mubr.bf16.mxu0 %v1090
      %1681 = vmatmul.mubr.bf16.gmra.mxu0 %v1089
      %v1682 = vpop.f32.mrf.mxu0
      %v1683 = vadd.f32 %v1426, %v1682
      %v1684 = vpop.f32.mrf.mxu0
      %v1685 = vpop.f32.mrf.mxu0
      %v1686 = vadd.f32 %v1429, %v1685
      %v1687 = vpop.f32.mrf.mxu0
      %1688 = vmatprep.mubr.bf16.mxu0 %v1093
      %1689 = vmatmul.mubr.bf16.gmra.mxu0 %v1092
      %v1690 = vpop.f32.mrf.mxu0
      %v1691 = vadd.f32 %v1434, %v1690
      %v1692 = vpop.f32.mrf.mxu0
      %v1693 = vpop.f32.mrf.mxu0
      %v1694 = vadd.f32 %v1437, %v1693
      %v1695 = vpop.f32.mrf.mxu0
      %1696 = vmatprep.mubr.bf16.mxu0 %v1096
      %1697 = vmatmul.mubr.bf16.gmra.mxu0 %v1095
      %v1698 = vpop.f32.mrf.mxu0
      %v1699 = vadd.f32 %v1442, %v1698
      %v1700 = vpop.f32.mrf.mxu0
      %v1701 = vpop.f32.mrf.mxu0
      %v1702 = vadd.f32 %v1445, %v1701
      %v1703 = vpop.f32.mrf.mxu0
      %1704 = vmatprep.mubr.bf16.mxu0 %v1099
      %1705 = vmatmul.mubr.bf16.gmra.mxu0 %v1098
      %v1706 = vpop.f32.mrf.mxu0
      %v1707 = vadd.f32 %v1450, %v1706
      %v1708 = vpop.f32.mrf.mxu0
      %v1709 = vpop.f32.mrf.mxu0
      %v1710 = vadd.f32 %v1453, %v1709
      %v1711 = vpop.f32.mrf.mxu0
      %1712 = vmatprep.mubr.bf16.mxu0 %v1102
      %1713 = vmatmul.mubr.bf16.gmra.mxu0 %v1101
      %v1714 = vpop.f32.mrf.mxu0
      %v1715 = vadd.f32 %v1458, %v1714
      %v1716 = vpop.f32.mrf.mxu0
      %v1717 = vpop.f32.mrf.mxu0
      %v1718 = vadd.f32 %v1461, %v1717
      %v1719 = vpop.f32.mrf.mxu0
      %1720 = vmatprep.mubr.bf16.mxu0 %v1105
      %1721 = vmatmul.mubr.bf16.gmra.mxu0 %v1104
      %v1722 = vpop.f32.mrf.mxu0
      %v1723 = vadd.f32 %v1466, %v1722
      %v1724 = vpop.f32.mrf.mxu0
      %v1725 = vpop.f32.mrf.mxu0
      %v1726 = vadd.f32 %v1469, %v1725
      %v1727 = vpop.f32.mrf.mxu0
      %1728 = vdwg.mxu0
      %1729 = vmatprep.subr.bf16.mxu0 0
      %1730 = vmatpush1.bf16.msra.mxu0 %v1607
      %1731 = vmatprep.subr.bf16.mxu0 0
      %1732 = vmatpush1.bf16.msra.mxu0 %v1606
      %1733 = vmatprep.subr.bf16.mxu0 0
      %1734 = vmatpush1.bf16.msra.mxu0 %v1605
      %1735 = vmatprep.subr.bf16.mxu0 0
      %1736 = vmatpush1.bf16.msra.mxu0 %v1604
      %1737 = vmatprep.subr.bf16.mxu0 0
      %1738 = vmatpush1.bf16.msra.mxu0 %v1603
      %1739 = vmatprep.subr.bf16.mxu0 0
      %1740 = vmatpush1.bf16.msra.mxu0 %v1602
      %1741 = vmatprep.subr.bf16.mxu0 0
      %1742 = vmatpush1.bf16.msra.mxu0 %v1601
      %1743 = vmatprep.subr.bf16.mxu0 0
      %1744 = vmatpush1.bf16.msra.mxu0 %v1600
      %1745 = vmatprep.subr.bf16.mxu0 0
      %1746 = vmatpush2.bf16.msra.mxu0 0
      %1747 = vmatprep.subr.bf16.mxu0 0
      %1748 = vmatpush2.bf16.msra.mxu0 0
      %1749 = vmatprep.subr.bf16.mxu0 0
      %1750 = vmatpush2.bf16.msra.mxu0 0
      %1751 = vmatprep.subr.bf16.mxu0 0
      %1752 = vmatpush2.bf16.msra.mxu0 0
      %1753 = vmatprep.subr.bf16.mxu0 0
      %1754 = vmatpush2.bf16.msra.mxu0 0
      %1755 = vmatprep.subr.bf16.mxu0 0
      %1756 = vmatpush2.bf16.msra.mxu0 0
      %1757 = vmatprep.subr.bf16.mxu0 0
      %1758 = vmatpush2.bf16.msra.mxu0 0
      %1759 = vmatprep.subr.bf16.mxu0 0
      %1760 = vmatpush2.bf16.msra.mxu0 0
      %1761 = vmatprep.mubr.bf16.mxu0 0
      %1762 = vmatmul.mubr.bf16.gmra.mxu0 %v1484
      %v1763 = vpop.f32.mrf.mxu0
      %v1764 = vadd.f32 %v1667, %v1763
      %v1765 = vpop.f32.mrf.mxu0
      %v1766 = vpop.f32.mrf.mxu0
      %v1767 = vadd.f32 %v1670, %v1766
      %v1768 = vpop.f32.mrf.mxu0
      %1769 = vmatprep.mubr.bf16.mxu0 0
      %1770 = vmatmul.mubr.bf16.gmra.mxu0 %v1088
      %v1771 = vpop.f32.mrf.mxu0
      %v1772 = vadd.f32 %v1675, %v1771
      %v1773 = vpop.f32.mrf.mxu0
      %v1774 = vpop.f32.mrf.mxu0
      %v1775 = vadd.f32 %v1678, %v1774
      %v1776 = vpop.f32.mrf.mxu0
      %1777 = vmatprep.mubr.bf16.mxu0 0
      %1778 = vmatmul.mubr.bf16.gmra.mxu0 %v1091
      %v1779 = vpop.f32.mrf.mxu0
      %v1780 = vadd.f32 %v1683, %v1779
      %v1781 = vpop.f32.mrf.mxu0
      %v1782 = vpop.f32.mrf.mxu0
      %v1783 = vadd.f32 %v1686, %v1782
      %v1784 = vpop.f32.mrf.mxu0
      %1785 = vmatprep.mubr.bf16.mxu0 0
      %1786 = vmatmul.mubr.bf16.gmra.mxu0 %v1094
      %v1787 = vpop.f32.mrf.mxu0
      %v1788 = vadd.f32 %v1691, %v1787
      %v1789 = vpop.f32.mrf.mxu0
      %v1790 = vpop.f32.mrf.mxu0
      %v1791 = vadd.f32 %v1694, %v1790
      %v1792 = vpop.f32.mrf.mxu0
      %1793 = vmatprep.mubr.bf16.mxu0 0
      %1794 = vmatmul.mubr.bf16.gmra.mxu0 %v1097
      %v1795 = vpop.f32.mrf.mxu0
      %v1796 = vadd.f32 %v1699, %v1795
      %v1797 = vpop.f32.mrf.mxu0
      %v1798 = vpop.f32.mrf.mxu0
      %v1799 = vadd.f32 %v1702, %v1798
      %v1800 = vpop.f32.mrf.mxu0
      %1801 = vmatprep.mubr.bf16.mxu0 0
      %1802 = vmatmul.mubr.bf16.gmra.mxu0 %v1100
      %v1803 = vpop.f32.mrf.mxu0
      %v1804 = vadd.f32 %v1707, %v1803
      %v1805 = vpop.f32.mrf.mxu0
      %v1806 = vpop.f32.mrf.mxu0
      %v1807 = vadd.f32 %v1710, %v1806
      %v1808 = vpop.f32.mrf.mxu0
      %1809 = vmatprep.mubr.bf16.mxu0 0
      %1810 = vmatmul.mubr.bf16.gmra.mxu0 %v1103
      %v1811 = vpop.f32.mrf.mxu0
      %v1812 = vadd.f32 %v1715, %v1811
      %v1813 = vpop.f32.mrf.mxu0
      %v1814 = vpop.f32.mrf.mxu0
      %v1815 = vadd.f32 %v1718, %v1814
      %v1816 = vpop.f32.mrf.mxu0
      %1817 = vmatprep.mubr.bf16.mxu0 0
      %1818 = vmatmul.mubr.bf16.gmra.mxu0 %v1106
      %v1819 = vpop.f32.mrf.mxu0
      %v1820 = vadd.f32 %v1723, %v1819
      %v1821 = vpop.f32.mrf.mxu0
      %v1822 = vpop.f32.mrf.mxu0
      %v1823 = vadd.f32 %v1726, %v1822
      %v1824 = vpop.f32.mrf.mxu0
      %1825 = vdwg.mxu0
      %v1826 = vld [vmem:[#allocation2 + $0x30] sm:$0xff]
      %v1827 = vld [vmem:[#allocation2 + $0x38] sm:$0xf]
      %v1828 = vld [vmem:[#allocation2 + $0x3c] sm:$0xff]
      %v1829 = vld [vmem:[#allocation2 + $0x44] sm:$0xf]
      %v1830 = vld [vmem:[#allocation2 + $0x48] sm:$0xff]
      %v1831 = vld [vmem:[#allocation2 + $0x50] sm:$0xf]
      %v1832 = vld [vmem:[#allocation2 + $0x54] sm:$0xff]
      %v1833 = vld [vmem:[#allocation2 + $0x5c] sm:$0xf]
      %v1834 = vld [vmem:[#allocation2 + $0x60] sm:$0xff]
      %v1835 = vld [vmem:[#allocation2 + $0x68] sm:$0xf]
      %v1836 = vld [vmem:[#allocation2 + $0x6c] sm:$0xff]
      %v1837 = vld [vmem:[#allocation2 + $0x74] sm:$0xf]
      %v1838 = vld [vmem:[#allocation2 + $0x78] sm:$0xff]
      %v1839 = vld [vmem:[#allocation2 + $0x80] sm:$0xf]
      %v1840 = vld [vmem:[#allocation2 + $0x84] sm:$0xff]
      %v1841 = vld [vmem:[#allocation2 + $0x8c] sm:$0xf]
      %v1842 = vld [vmem:[#allocation2 + $0x90] sm:$0xff]
      %v1843 = vld [vmem:[#allocation2 + $0x98] sm:$0xf]
      %v1844 = vld [vmem:[#allocation2 + $0x9c] sm:$0xff]
      %v1845 = vld [vmem:[#allocation2 + $0xa4] sm:$0xf]
      %v1846 = vld [vmem:[#allocation2 + $0xa8] sm:$0xff]
      %v1847 = vld [vmem:[#allocation2 + $0xb0] sm:$0xf]
      %v1848 = vld [vmem:[#allocation2 + $0xb4] sm:$0xff]
      %v1849 = vld [vmem:[#allocation2 + $0xbc] sm:$0xf]
      %v1850 = vld [vmem:[#allocation2 + $0xc0] sm:$0xff]
      %v1851 = vld [vmem:[#allocation2 + $0xc8] sm:$0xf]
      %v1852 = vld [vmem:[#allocation2 + $0xcc] sm:$0xff]
      %v1853 = vld [vmem:[#allocation2 + $0xd4] sm:$0xf]
      %v1854 = vld [vmem:[#allocation2 + $0xd8] sm:$0xff]
      %v1855 = vld [vmem:[#allocation2 + $0xe0] sm:$0xf]
      %v1856 = vld [vmem:[#allocation2 + $0xe4] sm:$0xff]
      %v1857 = vld [vmem:[#allocation2 + $0xec] sm:$0xf]
      %s1858 = scalar_lea.vmem %s272, 384
      %v1859 = vld [vmem:[%s1858] sm:$0xf]
      %v1860 = vld [vmem:[%s1858 + $0x4] sm:$0xf]
      %v1861 = vld [vmem:[%s1858 + $0x8] sm:$0xf]
      %v1862 = vld [vmem:[%s1858 + $0xc] sm:$0xf]
      %v1863 = vld [vmem:[%s1858 + $0x10] sm:$0xf]
      %v1864 = vld [vmem:[%s1858 + $0x14] sm:$0xf]
      %v1865 = vld [vmem:[%s1858 + $0x18] sm:$0xf]
      %v1866 = vld [vmem:[%s1858 + $0x1c] sm:$0xf]
      %v1867 = vld [vmem:[%s1858 + $0x20] sm:$0xf]
      %v1868 = vld [vmem:[%s1858 + $0x24] sm:$0xf]
      %v1869 = vld [vmem:[%s1858 + $0x28] sm:$0xf]
      %v1870 = vld [vmem:[%s1858 + $0x2c] sm:$0xf]
      %v1871 = vld [vmem:[%s1858 + $0x30] sm:$0xf]
      %v1872 = vld [vmem:[%s1858 + $0x34] sm:$0xf]
      %v1873 = vld [vmem:[%s1858 + $0x38] sm:$0xf]
      %v1874 = vld [vmem:[%s1858 + $0x3c] sm:$0xf]
      %v1875 = vld [vmem:[%s1858 + $0x40] sm:$0xf]
      %v1876 = vld [vmem:[%s1858 + $0x44] sm:$0xf]
      %v1877 = vld [vmem:[%s1858 + $0x48] sm:$0xf]
      %v1878 = vld [vmem:[%s1858 + $0x4c] sm:$0xf]
      %v1879 = vld [vmem:[%s1858 + $0x50] sm:$0xf]
      %v1880 = vld [vmem:[%s1858 + $0x54] sm:$0xf]
      %v1881 = vld [vmem:[%s1858 + $0x58] sm:$0xf]
      %v1882 = vld [vmem:[%s1858 + $0x5c] sm:$0xf]
      %v1883 = vld [vmem:[%s1858 + $0x60] sm:$0xf]
      %v1884 = vld [vmem:[%s1858 + $0x64] sm:$0xf]
      %v1885 = vld [vmem:[%s1858 + $0x68] sm:$0xf]
      %v1886 = vld [vmem:[%s1858 + $0x6c] sm:$0xf]
      %v1887 = vld [vmem:[%s1858 + $0x70] sm:$0xf]
      %v1888 = vld [vmem:[%s1858 + $0x74] sm:$0xf]
      %v1889 = vld [vmem:[%s1858 + $0x78] sm:$0xf]
      %v1890 = vld [vmem:[%s1858 + $0x7c] sm:$0xf]
      %v1891 = vld [vmem:[%s1858 + $0x80] sm:$0xf]
      %v1892 = vld [vmem:[%s1858 + $0x84] sm:$0xf]
      %v1893 = vld [vmem:[%s1858 + $0x88] sm:$0xf]
      %v1894 = vld [vmem:[%s1858 + $0x8c] sm:$0xf]
      %v1895 = vld [vmem:[%s1858 + $0x90] sm:$0xf]
      %v1896 = vld [vmem:[%s1858 + $0x94] sm:$0xf]
      %v1897 = vld [vmem:[%s1858 + $0x98] sm:$0xf]
      %v1898 = vld [vmem:[%s1858 + $0x9c] sm:$0xf]
      %v1899 = vld [vmem:[%s1858 + $0xa0] sm:$0xf]
      %v1900 = vld [vmem:[%s1858 + $0xa4] sm:$0xf]
      %v1901 = vld [vmem:[%s1858 + $0xa8] sm:$0xf]
      %v1902 = vld [vmem:[%s1858 + $0xac] sm:$0xf]
      %v1903 = vld [vmem:[%s1858 + $0xb0] sm:$0xf]
      %v1904 = vld [vmem:[%s1858 + $0xb4] sm:$0xf]
      %v1905 = vld [vmem:[%s1858 + $0xb8] sm:$0xf]
      %v1906 = vld [vmem:[%s1858 + $0xbc] sm:$0xf]
      %v1939 = vunpack.c.l.b16 %v1826
      %v1940 = vunpack.c.h.b16 %v1826
      %v1941 = vunpack.c.l.b16 %v1827
      %v1942 = vunpack.c.l.b16 %v1828
      %v1943 = vunpack.c.h.b16 %v1828
      %v1944 = vunpack.c.l.b16 %v1829
      %v1945 = vunpack.c.l.b16 %v1830
      %v1946 = vunpack.c.h.b16 %v1830
      %v1947 = vunpack.c.l.b16 %v1831
      %v1948 = vunpack.c.l.b16 %v1832
      %v1949 = vunpack.c.h.b16 %v1832
      %v1950 = vunpack.c.l.b16 %v1833
      %v1951 = vunpack.c.l.b16 %v1834
      %v1952 = vunpack.c.h.b16 %v1834
      %v1953 = vunpack.c.l.b16 %v1835
      %v1954 = vunpack.c.l.b16 %v1836
      %v1955 = vunpack.c.h.b16 %v1836
      %v1956 = vunpack.c.l.b16 %v1837
      %v1957 = vunpack.c.l.b16 %v1838
      %v1958 = vunpack.c.h.b16 %v1838
      %v1959 = vunpack.c.l.b16 %v1839
      %v1960 = vunpack.c.l.b16 %v1840
      %v1961 = vunpack.c.h.b16 %v1840
      %v1962 = vunpack.c.l.b16 %v1841
      %v1963 = vunpack.c.l.b16 %v1842
      %v1964 = vunpack.c.h.b16 %v1842
      %v1965 = vunpack.c.l.b16 %v1843
      %v1966 = vunpack.c.l.b16 %v1844
      %v1967 = vunpack.c.h.b16 %v1844
      %v1968 = vunpack.c.l.b16 %v1845
      %v1969 = vunpack.c.l.b16 %v1846
      %v1970 = vunpack.c.h.b16 %v1846
      %v1971 = vunpack.c.l.b16 %v1847
      %v1972 = vunpack.c.l.b16 %v1848
      %v1973 = vunpack.c.h.b16 %v1848
      %v1974 = vunpack.c.l.b16 %v1849
      %v1975 = vunpack.c.l.b16 %v1850
      %v1976 = vunpack.c.h.b16 %v1850
      %v1977 = vunpack.c.l.b16 %v1851
      %v1978 = vunpack.c.l.b16 %v1852
      %v1979 = vunpack.c.h.b16 %v1852
      %v1980 = vunpack.c.l.b16 %v1853
      %v1981 = vunpack.c.l.b16 %v1854
      %v1982 = vunpack.c.h.b16 %v1854
      %v1983 = vunpack.c.l.b16 %v1855
      %v1984 = vunpack.c.l.b16 %v1856
      %v1985 = vunpack.c.h.b16 %v1856
      %v1986 = vunpack.c.l.b16 %v1857
      %v1987 = vpack.c.b16 %v1942, %v1939
      %v1988 = vpack.c.b16 %v1943, %v1940
      %v1989 = vpack.c.b16 %v1944, %v1941
      %v1990 = vpack.c.b16 %v1948, %v1945
      %v1991 = vpack.c.b16 %v1949, %v1946
      %v1992 = vpack.c.b16 %v1950, %v1947
      %v1993 = vpack.c.b16 %v1954, %v1951
      %v1994 = vpack.c.b16 %v1955, %v1952
      %v1995 = vpack.c.b16 %v1956, %v1953
      %v1996 = vpack.c.b16 %v1960, %v1957
      %v1997 = vpack.c.b16 %v1961, %v1958
      %v1998 = vpack.c.b16 %v1962, %v1959
      %v1999 = vpack.c.b16 %v1966, %v1963
      %v2000 = vpack.c.b16 %v1967, %v1964
      %v2001 = vpack.c.b16 %v1968, %v1965
      %v2002 = vpack.c.b16 %v1972, %v1969
      %v2003 = vpack.c.b16 %v1973, %v1970
      %v2004 = vpack.c.b16 %v1974, %v1971
      %v2005 = vpack.c.b16 %v1978, %v1975
      %v2006 = vpack.c.b16 %v1979, %v1976
      %v2007 = vpack.c.b16 %v1980, %v1977
      %v2008 = vpack.c.b16 %v1984, %v1981
      %v2009 = vpack.c.b16 %v1985, %v1982
      %v2010 = vpack.c.b16 %v1986, %v1983
      %v2083 = vunpack.c.l.b16 %v1859
      %v2084 = vunpack.c.l.b16 %v1860
      %v2085 = vunpack.c.l.b16 %v1861
      %v2086 = vunpack.c.l.b16 %v1862
      %v2087 = vunpack.c.l.b16 %v1863
      %v2088 = vunpack.c.l.b16 %v1864
      %v2089 = vunpack.c.l.b16 %v1865
      %v2090 = vunpack.c.l.b16 %v1866
      %v2091 = vunpack.c.l.b16 %v1867
      %v2092 = vunpack.c.l.b16 %v1868
      %v2093 = vunpack.c.l.b16 %v1869
      %v2094 = vunpack.c.l.b16 %v1870
      %v2095 = vunpack.c.l.b16 %v1871
      %v2096 = vunpack.c.l.b16 %v1872
      %v2097 = vunpack.c.l.b16 %v1873
      %v2098 = vunpack.c.l.b16 %v1874
      %v2099 = vunpack.c.l.b16 %v1875
      %v2100 = vunpack.c.l.b16 %v1876
      %v2101 = vunpack.c.l.b16 %v1877
      %v2102 = vunpack.c.l.b16 %v1878
      %v2103 = vunpack.c.l.b16 %v1879
      %v2104 = vunpack.c.l.b16 %v1880
      %v2105 = vunpack.c.l.b16 %v1881
      %v2106 = vunpack.c.l.b16 %v1882
      %v2107 = vunpack.c.l.b16 %v1883
      %v2108 = vunpack.c.l.b16 %v1884
      %v2109 = vunpack.c.l.b16 %v1885
      %v2110 = vunpack.c.l.b16 %v1886
      %v2111 = vunpack.c.l.b16 %v1887
      %v2112 = vunpack.c.l.b16 %v1888
      %v2113 = vunpack.c.l.b16 %v1889
      %v2114 = vunpack.c.l.b16 %v1890
      %v2115 = vunpack.c.l.b16 %v1891
      %v2116 = vunpack.c.l.b16 %v1892
      %v2117 = vunpack.c.l.b16 %v1893
      %v2118 = vunpack.c.l.b16 %v1894
      %v2119 = vunpack.c.l.b16 %v1895
      %v2120 = vunpack.c.l.b16 %v1896
      %v2121 = vunpack.c.l.b16 %v1897
      %v2122 = vunpack.c.l.b16 %v1898
      %v2123 = vunpack.c.l.b16 %v1899
      %v2124 = vunpack.c.l.b16 %v1900
      %v2125 = vunpack.c.l.b16 %v1901
      %v2126 = vunpack.c.l.b16 %v1902
      %v2127 = vunpack.c.l.b16 %v1903
      %v2128 = vunpack.c.l.b16 %v1904
      %v2129 = vunpack.c.l.b16 %v1905
      %v2130 = vunpack.c.l.b16 %v1906
      %v2131 = vpack.c.b16 %v2084, %v2083
      %v2132 = vpack.c.b16 %v2086, %v2085
      %v2133 = vpack.c.b16 %v2088, %v2087
      %v2134 = vpack.c.b16 %v2090, %v2089
      %v2135 = vpack.c.b16 %v2092, %v2091
      %v2136 = vpack.c.b16 %v2094, %v2093
      %v2137 = vpack.c.b16 %v2096, %v2095
      %v2138 = vpack.c.b16 %v2098, %v2097
      %v2139 = vpack.c.b16 %v2100, %v2099
      %v2140 = vpack.c.b16 %v2102, %v2101
      %v2141 = vpack.c.b16 %v2104, %v2103
      %v2142 = vpack.c.b16 %v2106, %v2105
      %v2143 = vpack.c.b16 %v2108, %v2107
      %v2144 = vpack.c.b16 %v2110, %v2109
      %v2145 = vpack.c.b16 %v2112, %v2111
      %v2146 = vpack.c.b16 %v2114, %v2113
      %v2147 = vpack.c.b16 %v2116, %v2115
      %v2148 = vpack.c.b16 %v2118, %v2117
      %v2149 = vpack.c.b16 %v2120, %v2119
      %v2150 = vpack.c.b16 %v2122, %v2121
      %v2151 = vpack.c.b16 %v2124, %v2123
      %v2152 = vpack.c.b16 %v2126, %v2125
      %v2153 = vpack.c.b16 %v2128, %v2127
      %v2154 = vpack.c.b16 %v2130, %v2129
      %2179 = vmatprep.subr.bf16.mxu0 0
      %2180 = vmatpush1.bf16.msra.mxu0 %v2138
      %2181 = vmatprep.subr.bf16.mxu0 0
      %2182 = vmatpush1.bf16.msra.mxu0 %v2137
      %2183 = vmatprep.subr.bf16.mxu0 0
      %2184 = vmatpush1.bf16.msra.mxu0 %v2136
      %2185 = vmatprep.subr.bf16.mxu0 0
      %2186 = vmatpush1.bf16.msra.mxu0 %v2135
      %2187 = vmatprep.subr.bf16.mxu0 0
      %2188 = vmatpush1.bf16.msra.mxu0 %v2134
      %2189 = vmatprep.subr.bf16.mxu0 0
      %2190 = vmatpush1.bf16.msra.mxu0 %v2133
      %2191 = vmatprep.subr.bf16.mxu0 0
      %2192 = vmatpush1.bf16.msra.mxu0 %v2132
      %2193 = vmatprep.subr.bf16.mxu0 0
      %2194 = vmatpush1.bf16.msra.mxu0 %v2131
      %2195 = vmatprep.subr.bf16.mxu0 0
      %2196 = vmatpush2.bf16.msra.mxu0 %v2146
      %2197 = vmatprep.subr.bf16.mxu0 0
      %2198 = vmatpush2.bf16.msra.mxu0 %v2145
      %2199 = vmatprep.subr.bf16.mxu0 0
      %2200 = vmatpush2.bf16.msra.mxu0 %v2144
      %2201 = vmatprep.subr.bf16.mxu0 0
      %2202 = vmatpush2.bf16.msra.mxu0 %v2143
      %2203 = vmatprep.subr.bf16.mxu0 0
      %2204 = vmatpush2.bf16.msra.mxu0 %v2142
      %2205 = vmatprep.subr.bf16.mxu0 0
      %2206 = vmatpush2.bf16.msra.mxu0 %v2141
      %2207 = vmatprep.subr.bf16.mxu0 0
      %2208 = vmatpush2.bf16.msra.mxu0 %v2140
      %2209 = vmatprep.subr.bf16.mxu0 0
      %2210 = vmatpush2.bf16.msra.mxu0 %v2139
      %2211 = vmatprep.mubr.bf16.mxu0 %v1988
      %2212 = vmatmul.mubr.bf16.gmra.mxu0 %v1987
      %v2213 = vpop.f32.mrf.mxu0
      %v2214 = vadd.f32 0.0, %v2213
      %v2215 = vpop.f32.mrf.mxu0
      %v2216 = vpop.f32.mrf.mxu0
      %v2217 = vadd.f32 0.0, %v2216
      %v2218 = vpop.f32.mrf.mxu0
      %2219 = vmatprep.mubr.bf16.mxu0 %v1991
      %2220 = vmatmul.mubr.bf16.gmra.mxu0 %v1990
      %v2221 = vpop.f32.mrf.mxu0
      %v2222 = vadd.f32 0.0, %v2221
      %v2223 = vpop.f32.mrf.mxu0
      %v2224 = vpop.f32.mrf.mxu0
      %v2225 = vadd.f32 0.0, %v2224
      %v2226 = vpop.f32.mrf.mxu0
      %2227 = vmatprep.mubr.bf16.mxu0 %v1994
      %2228 = vmatmul.mubr.bf16.gmra.mxu0 %v1993
      %v2229 = vpop.f32.mrf.mxu0
      %v2230 = vadd.f32 0.0, %v2229
      %v2231 = vpop.f32.mrf.mxu0
      %v2232 = vpop.f32.mrf.mxu0
      %v2233 = vadd.f32 0.0, %v2232
      %v2234 = vpop.f32.mrf.mxu0
      %2235 = vmatprep.mubr.bf16.mxu0 %v1997
      %2236 = vmatmul.mubr.bf16.gmra.mxu0 %v1996
      %v2237 = vpop.f32.mrf.mxu0
      %v2238 = vadd.f32 0.0, %v2237
      %v2239 = vpop.f32.mrf.mxu0
      %v2240 = vpop.f32.mrf.mxu0
      %v2241 = vadd.f32 0.0, %v2240
      %v2242 = vpop.f32.mrf.mxu0
      %2243 = vmatprep.mubr.bf16.mxu0 %v2000
      %2244 = vmatmul.mubr.bf16.gmra.mxu0 %v1999
      %v2245 = vpop.f32.mrf.mxu0
      %v2246 = vadd.f32 0.0, %v2245
      %v2247 = vpop.f32.mrf.mxu0
      %v2248 = vpop.f32.mrf.mxu0
      %v2249 = vadd.f32 0.0, %v2248
      %v2250 = vpop.f32.mrf.mxu0
      %2251 = vmatprep.mubr.bf16.mxu0 %v2003
      %2252 = vmatmul.mubr.bf16.gmra.mxu0 %v2002
      %v2253 = vpop.f32.mrf.mxu0
      %v2254 = vadd.f32 0.0, %v2253
      %v2255 = vpop.f32.mrf.mxu0
      %v2256 = vpop.f32.mrf.mxu0
      %v2257 = vadd.f32 0.0, %v2256
      %v2258 = vpop.f32.mrf.mxu0
      %2259 = vmatprep.mubr.bf16.mxu0 %v2006
      %2260 = vmatmul.mubr.bf16.gmra.mxu0 %v2005
      %v2261 = vpop.f32.mrf.mxu0
      %v2262 = vadd.f32 0.0, %v2261
      %v2263 = vpop.f32.mrf.mxu0
      %v2264 = vpop.f32.mrf.mxu0
      %v2265 = vadd.f32 0.0, %v2264
      %v2266 = vpop.f32.mrf.mxu0
      %2267 = vmatprep.mubr.bf16.mxu0 %v2009
      %2268 = vmatmul.mubr.bf16.gmra.mxu0 %v2008
      %v2269 = vpop.f32.mrf.mxu0
      %v2270 = vadd.f32 0.0, %v2269
      %v2271 = vpop.f32.mrf.mxu0
      %v2272 = vpop.f32.mrf.mxu0
      %v2273 = vadd.f32 0.0, %v2272
      %v2274 = vpop.f32.mrf.mxu0
      %2275 = vdwg.mxu0
      %2276 = vmatprep.subr.bf16.mxu0 0
      %2277 = vmatpush1.bf16.msra.mxu0 %v2154
      %2278 = vmatprep.subr.bf16.mxu0 0
      %2279 = vmatpush1.bf16.msra.mxu0 %v2153
      %2280 = vmatprep.subr.bf16.mxu0 0
      %2281 = vmatpush1.bf16.msra.mxu0 %v2152
      %2282 = vmatprep.subr.bf16.mxu0 0
      %2283 = vmatpush1.bf16.msra.mxu0 %v2151
      %2284 = vmatprep.subr.bf16.mxu0 0
      %2285 = vmatpush1.bf16.msra.mxu0 %v2150
      %2286 = vmatprep.subr.bf16.mxu0 0
      %2287 = vmatpush1.bf16.msra.mxu0 %v2149
      %2288 = vmatprep.subr.bf16.mxu0 0
      %2289 = vmatpush1.bf16.msra.mxu0 %v2148
      %2290 = vmatprep.subr.bf16.mxu0 0
      %2291 = vmatpush1.bf16.msra.mxu0 %v2147
      %2292 = vmatprep.subr.bf16.mxu0 0
      %2293 = vmatpush2.bf16.msra.mxu0 0
      %2294 = vmatprep.subr.bf16.mxu0 0
      %2295 = vmatpush2.bf16.msra.mxu0 0
      %2296 = vmatprep.subr.bf16.mxu0 0
      %2297 = vmatpush2.bf16.msra.mxu0 0
      %2298 = vmatprep.subr.bf16.mxu0 0
      %2299 = vmatpush2.bf16.msra.mxu0 0
      %2300 = vmatprep.subr.bf16.mxu0 0
      %2301 = vmatpush2.bf16.msra.mxu0 0
      %2302 = vmatprep.subr.bf16.mxu0 0
      %2303 = vmatpush2.bf16.msra.mxu0 0
      %2304 = vmatprep.subr.bf16.mxu0 0
      %2305 = vmatpush2.bf16.msra.mxu0 0
      %2306 = vmatprep.subr.bf16.mxu0 0
      %2307 = vmatpush2.bf16.msra.mxu0 0
      %2308 = vmatprep.mubr.bf16.mxu0 0
      %2309 = vmatmul.mubr.bf16.gmra.mxu0 %v1989
      %v2310 = vpop.f32.mrf.mxu0
      %v2311 = vadd.f32 %v2214, %v2310
      %v2312 = vpop.f32.mrf.mxu0
      %v2313 = vpop.f32.mrf.mxu0
      %v2314 = vadd.f32 %v2217, %v2313
      %v2315 = vpop.f32.mrf.mxu0
      %2316 = vmatprep.mubr.bf16.mxu0 0
      %2317 = vmatmul.mubr.bf16.gmra.mxu0 %v1992
      %v2318 = vpop.f32.mrf.mxu0
      %v2319 = vadd.f32 %v2222, %v2318
      %v2320 = vpop.f32.mrf.mxu0
      %v2321 = vpop.f32.mrf.mxu0
      %v2322 = vadd.f32 %v2225, %v2321
      %v2323 = vpop.f32.mrf.mxu0
      %2324 = vmatprep.mubr.bf16.mxu0 0
      %2325 = vmatmul.mubr.bf16.gmra.mxu0 %v1995
      %v2326 = vpop.f32.mrf.mxu0
      %v2327 = vadd.f32 %v2230, %v2326
      %v2328 = vpop.f32.mrf.mxu0
      %v2329 = vpop.f32.mrf.mxu0
      %v2330 = vadd.f32 %v2233, %v2329
      %v2331 = vpop.f32.mrf.mxu0
      %2332 = vmatprep.mubr.bf16.mxu0 0
      %2333 = vmatmul.mubr.bf16.gmra.mxu0 %v1998
      %v2334 = vpop.f32.mrf.mxu0
      %v2335 = vadd.f32 %v2238, %v2334
      %v2336 = vpop.f32.mrf.mxu0
      %v2337 = vpop.f32.mrf.mxu0
      %v2338 = vadd.f32 %v2241, %v2337
      %v2339 = vpop.f32.mrf.mxu0
      %2340 = vmatprep.mubr.bf16.mxu0 0
      %2341 = vmatmul.mubr.bf16.gmra.mxu0 %v2001
      %v2342 = vpop.f32.mrf.mxu0
      %v2343 = vadd.f32 %v2246, %v2342
      %v2344 = vpop.f32.mrf.mxu0
      %v2345 = vpop.f32.mrf.mxu0
      %v2346 = vadd.f32 %v2249, %v2345
      %v2347 = vpop.f32.mrf.mxu0
      %2348 = vmatprep.mubr.bf16.mxu0 0
      %2349 = vmatmul.mubr.bf16.gmra.mxu0 %v2004
      %v2350 = vpop.f32.mrf.mxu0
      %v2351 = vadd.f32 %v2254, %v2350
      %v2352 = vpop.f32.mrf.mxu0
      %v2353 = vpop.f32.mrf.mxu0
      %v2354 = vadd.f32 %v2257, %v2353
      %v2355 = vpop.f32.mrf.mxu0
      %2356 = vmatprep.mubr.bf16.mxu0 0
      %2357 = vmatmul.mubr.bf16.gmra.mxu0 %v2007
      %v2358 = vpop.f32.mrf.mxu0
      %v2359 = vadd.f32 %v2262, %v2358
      %v2360 = vpop.f32.mrf.mxu0
      %v2361 = vpop.f32.mrf.mxu0
      %v2362 = vadd.f32 %v2265, %v2361
      %v2363 = vpop.f32.mrf.mxu0
      %2364 = vmatprep.mubr.bf16.mxu0 0
      %2365 = vmatmul.mubr.bf16.gmra.mxu0 %v2010
      %v2366 = vpop.f32.mrf.mxu0
      %v2367 = vadd.f32 %v2270, %v2366
      %v2368 = vpop.f32.mrf.mxu0
      %v2369 = vpop.f32.mrf.mxu0
      %v2370 = vadd.f32 %v2273, %v2369
      %v2371 = vpop.f32.mrf.mxu0
      %2372 = vdwg.mxu0
      %v2373 = vadd.f32 %v1764, %v2311
      %v2374 = vadd.f32 %v1767, %v2314
      %v2375 = vadd.f32 %v1772, %v2319
      %v2376 = vadd.f32 %v1775, %v2322
      %v2377 = vadd.f32 %v1780, %v2327
      %v2378 = vadd.f32 %v1783, %v2330
      %v2379 = vadd.f32 %v1788, %v2335
      %v2380 = vadd.f32 %v1791, %v2338
      %v2381 = vadd.f32 %v1796, %v2343
      %v2382 = vadd.f32 %v1799, %v2346
      %v2383 = vadd.f32 %v1804, %v2351
      %v2384 = vadd.f32 %v1807, %v2354
      %v2385 = vadd.f32 %v1812, %v2359
      %v2386 = vadd.f32 %v1815, %v2362
      %v2387 = vadd.f32 %v1820, %v2367
      %v2388 = vadd.f32 %v1823, %v2370
      %v2389 = vpack.c.bf16 %v2374, %v2373
      %v2390 = vpack.c.bf16 %v2376, %v2375
      %v2391 = vpack.c.bf16 %v2378, %v2377
      %v2392 = vpack.c.bf16 %v2380, %v2379
      %v2393 = vpack.c.bf16 %v2382, %v2381
      %v2394 = vpack.c.bf16 %v2384, %v2383
      %v2395 = vpack.c.bf16 %v2386, %v2385
      %v2396 = vpack.c.bf16 %v2388, %v2387
      %v2405 = vunpack.c.l.b16 %v2389
      %v2406 = vunpack.c.h.b16 %v2389
      %v2407 = vunpack.c.l.b16 %v2390
      %v2408 = vunpack.c.h.b16 %v2390
      %v2409 = vunpack.c.l.b16 %v2391
      %v2410 = vunpack.c.h.b16 %v2391
      %v2411 = vunpack.c.l.b16 %v2392
      %v2412 = vunpack.c.h.b16 %v2392
      %v2413 = vunpack.c.l.b16 %v2393
      %v2414 = vunpack.c.h.b16 %v2393
      %v2415 = vunpack.c.l.b16 %v2394
      %v2416 = vunpack.c.h.b16 %v2394
      %v2417 = vunpack.c.l.b16 %v2395
      %v2418 = vunpack.c.h.b16 %v2395
      %v2419 = vunpack.c.l.b16 %v2396
      %v2420 = vunpack.c.h.b16 %v2396
      %v2421 = vpack.c.b16 %v2405, %v2405
      %v2422 = vpack.c.b16 %v2406, %v2406
      %v2423 = vpack.c.b16 %v2407, %v2407
      %v2424 = vpack.c.b16 %v2408, %v2408
      %v2425 = vpack.c.b16 %v2409, %v2409
      %v2426 = vpack.c.b16 %v2410, %v2410
      %v2427 = vpack.c.b16 %v2411, %v2411
      %v2428 = vpack.c.b16 %v2412, %v2412
      %v2429 = vpack.c.b16 %v2413, %v2413
      %v2430 = vpack.c.b16 %v2414, %v2414
      %v2431 = vpack.c.b16 %v2415, %v2415
      %v2432 = vpack.c.b16 %v2416, %v2416
      %v2433 = vpack.c.b16 %v2417, %v2417
      %v2434 = vpack.c.b16 %v2418, %v2418
      %v2435 = vpack.c.b16 %v2419, %v2419
      %v2436 = vpack.c.b16 %v2420, %v2420
      %2453 = vst [vmem:[%s284] sm:$0xf] %v2421
      %2454 = vst [vmem:[%s284 + $0x4] sm:$0xf] %v2422
      %2455 = vst [vmem:[%s284 + $0x8] sm:$0xf] %v2423
      %2456 = vst [vmem:[%s284 + $0xc] sm:$0xf] %v2424
      %2457 = vst [vmem:[%s284 + $0x10] sm:$0xf] %v2425
      %2458 = vst [vmem:[%s284 + $0x14] sm:$0xf] %v2426
      %2459 = vst [vmem:[%s284 + $0x18] sm:$0xf] %v2427
      %2460 = vst [vmem:[%s284 + $0x1c] sm:$0xf] %v2428
      %2461 = vst [vmem:[%s284 + $0x20] sm:$0xf] %v2429
      %2462 = vst [vmem:[%s284 + $0x24] sm:$0xf] %v2430
      %2463 = vst [vmem:[%s284 + $0x28] sm:$0xf] %v2431
      %2464 = vst [vmem:[%s284 + $0x2c] sm:$0xf] %v2432
      %2465 = vst [vmem:[%s284 + $0x30] sm:$0xf] %v2433
      %2466 = vst [vmem:[%s284 + $0x34] sm:$0xf] %v2434
      %2467 = vst [vmem:[%s284 + $0x38] sm:$0xf] %v2435
      %2468 = vst [vmem:[%s284 + $0x3c] sm:$0xf] %v2436
      %v2469 = vadd.f32 %v2373, %v2374
      %v2470 = vadd.f32 %v2469, %v2375
      %v2471 = vadd.f32 %v2470, %v2376
      %v2472 = vadd.f32 %v2471, %v2377
      %v2473 = vadd.f32 %v2472, %v2378
      %v2474 = vadd.f32 %v2473, %v2379
      %v2475 = vadd.f32 %v2474, %v2380
      %v2476 = vadd.f32 %v2475, %v2381
      %v2477 = vadd.f32 %v2476, %v2382
      %v2478 = vadd.f32 %v2477, %v2383
      %v2479 = vadd.f32 %v2478, %v2384
      %v2480 = vadd.f32 %v2479, %v2385
      %v2481 = vadd.f32 %v2480, %v2386
      %v2482 = vadd.f32 %v2481, %v2387
      %v2483 = vadd.f32 %v2482, %v2388
      %v2484 = vrot.slane %v2483, 4
      %v2485 = vadd.f32 %v2483, %v2484
      %v2486 = vrot.slane %v2485, 2
      %v2487 = vadd.f32 %v2485, %v2486
      %v2488 = vrot.slane %v2487, 1
      %v2489 = vadd.f32 %v2487, %v2488
      %2490 = vst [vmem:[%s293] sm:$0x1] %v2489
      %v2491 = vmul.f32 %v2373, %v2373
      %v2492 = vmul.f32 %v2374, %v2374
      %v2493 = vmul.f32 %v2375, %v2375
      %v2494 = vmul.f32 %v2376, %v2376
      %v2495 = vmul.f32 %v2377, %v2377
      %v2496 = vmul.f32 %v2378, %v2378
      %v2497 = vmul.f32 %v2379, %v2379
      %v2498 = vmul.f32 %v2380, %v2380
      %v2499 = vmul.f32 %v2381, %v2381
      %v2500 = vmul.f32 %v2382, %v2382
      %v2501 = vmul.f32 %v2383, %v2383
      %v2502 = vmul.f32 %v2384, %v2384
      %v2503 = vmul.f32 %v2385, %v2385
      %v2504 = vmul.f32 %v2386, %v2386
      %v2505 = vmul.f32 %v2387, %v2387
      %v2506 = vmul.f32 %v2388, %v2388
      %v2507 = vadd.f32 %v2491, %v2492
      %v2508 = vadd.f32 %v2507, %v2493
      %v2509 = vadd.f32 %v2508, %v2494
      %v2510 = vadd.f32 %v2509, %v2495
      %v2511 = vadd.f32 %v2510, %v2496
      %v2512 = vadd.f32 %v2511, %v2497
      %v2513 = vadd.f32 %v2512, %v2498
      %v2514 = vadd.f32 %v2513, %v2499
      %v2515 = vadd.f32 %v2514, %v2500
      %v2516 = vadd.f32 %v2515, %v2501
      %v2517 = vadd.f32 %v2516, %v2502
      %v2518 = vadd.f32 %v2517, %v2503
      %v2519 = vadd.f32 %v2518, %v2504
      %v2520 = vadd.f32 %v2519, %v2505
      %v2521 = vadd.f32 %v2520, %v2506
      %v2522 = vrot.slane %v2521, 4
      %v2523 = vadd.f32 %v2521, %v2522
      %v2524 = vrot.slane %v2523, 2
      %v2525 = vadd.f32 %v2523, %v2524
      %v2526 = vrot.slane %v2525, 1
      %v2527 = vadd.f32 %v2525, %v2526
      %2528 = vst [vmem:[%s303] sm:$0x1] %v2527
      %s2529 = smul.u32 16, %s23
      %p2530 = scmp.lt.s32.totalorder %s21, 1
      %s2531 = scalar_select %p2530, %s21, 1
      %p2532 = scmp.lt.s32.totalorder %s2529, 31
      %s2533 = scalar_select %p2532, %s2529, 31
      %p2534 = scmp.lt.s32.totalorder %s22, 0
      %s2535 = scalar_select %p2534, %s22, 0
      %s2536 = sadd.s32 %s2535, %s2533
      %s2537 = smul.addr %s2531, 32
      %s2538 = sadd.s32 %s2536, %s2537
      %s2539 = smul.addr %s2538, 4
      %s2540 = scalar_lea.vmem %s2, %s2539
      %s2541 = smul.u32 %s21, 2
      %s2542 = sadd.s32 %s2541, %s23
      %p2543 = scmp.lt.s32.totalorder %s2542, 3
      %s2544 = scalar_select %p2543, %s2542, 3
      %p2545 = scmp.lt.s32.totalorder %s22, 0
      %s2546 = scalar_select %p2545, %s22, 0
      %s2547 = sadd.s32 %s2546, %s2544
      %s2548 = scalar_lea.vmem %s3, %s2547
      %s2549 = smul.u32 %s21, 2
      %s2550 = sadd.s32 %s2549, %s23
      %p2551 = scmp.lt.s32.totalorder %s2550, 3
      %s2552 = scalar_select %p2551, %s2550, 3
      %p2553 = scmp.lt.s32.totalorder %s22, 0
      %s2554 = scalar_select %p2553, %s22, 0
      %s2555 = sadd.s32 %s2554, %s2552
      %s2556 = scalar_lea.vmem %s4, %s2555
      // Predicated region
      $region29: #{residual_block_forward.6} parent=27 // pred_check
        %p2557 = pneg %p109
      $region30: #{residual_block_forward.6} parent=27 // pred_check_branch
        %2559 = sbr.rel (%p2557) target = $region32
      $region31: #{residual_block_forward.6} parent=27 // pred_region
        %s2560 = smul.u32 16, %s23
      $region32: #{residual_block_forward.6} parent=27 // pred_fallthru
        _
      // Predicated region
      $region33: #{residual_block_forward.6} parent=27 // pred_check
        %p2561 = pneg %p141
      $region34: #{residual_block_forward.6} parent=27 // pred_check_branch
        %2563 = sbr.rel (%p2561) target = $region36
      $region35: #{residual_block_forward.6} parent=27 // pred_region
        %s2564 = smul.u32 %s21, 2
        %s2565 = sadd.s32 %s2564, %s23
      $region36: #{residual_block_forward.6} parent=27 // pred_fallthru
        _
      // Predicated region
      $region37: #{residual_block_forward.6} parent=27 // pred_check
        %p2566 = pneg %p173
      $region38: #{residual_block_forward.6} parent=27 // pred_check_branch
        %2568 = sbr.rel (%p2566) target = $region40
      $region39: #{residual_block_forward.6} parent=27 // pred_region
        %s2569 = smul.u32 %s21, 2
        %s2570 = sadd.s32 %s2569, %s23
      $region40: #{residual_block_forward.6} parent=27 // pred_fallthru
        _
    $region28: #{residual_block_forward.6} parent=5 // pred_fallthru
      _
    %p2571 = scmp.le.s32.totalorder 2, %s11
    // Predicated region
    $region41: #{residual_block_forward.6} parent=5 // pred_check
      %p2572 = pneg %p2571
    $region42: #{residual_block_forward.6} parent=5 // pred_check_branch
      %2574 = sbr.rel (%p2572) target = $region44
    $region43: #{residual_block_forward.6} parent=5 // pred_region
      %s2575 = ssub.s32 %s11, 2
      // Predicated region
      $region45: #{residual_block_forward.6} parent=43 // pred_check
        %p2576 = pneg %p115
      $region46: #{residual_block_forward.6} parent=43 // pred_check_branch
        %2578 = sbr.rel (%p2576) target = $region48
      $region47: #{residual_block_forward.6} parent=43 // pred_region
        %s2579 = smul.u32 16, %s26
        %p2580 = scmp.lt.s32.totalorder %s24, 1
        %s2581 = scalar_select %p2580, %s24, 1
        %p2582 = scmp.lt.s32.totalorder %s2579, 31
        %s2583 = scalar_select %p2582, %s2579, 31
        %p2584 = scmp.lt.s32.totalorder %s25, 0
        %s2585 = scalar_select %p2584, %s25, 0
        %s2586 = sadd.s32 %s2585, %s2583
        %s2587 = smul.addr %s2581, 32
        %s2588 = sadd.s32 %s2586, %s2587
        %s2589 = smul.addr %s2588, 4
        %s2590 = scalar_lea.vmem %s2, %s2589
      $region48: #{residual_block_forward.6} parent=43 // pred_fallthru
        _
      // Predicated region
      $region49: #{residual_block_forward.6} parent=43 // pred_check
        %p2591 = pneg %p147
      $region50: #{residual_block_forward.6} parent=43 // pred_check_branch
        %2593 = sbr.rel (%p2591) target = $region52
      $region51: #{residual_block_forward.6} parent=43 // pred_region
        %s2594 = smul.u32 %s24, 2
        %s2595 = sadd.s32 %s2594, %s26
        %p2596 = scmp.lt.s32.totalorder %s2595, 3
        %s2597 = scalar_select %p2596, %s2595, 3
        %p2598 = scmp.lt.s32.totalorder %s25, 0
        %s2599 = scalar_select %p2598, %s25, 0
        %s2600 = sadd.s32 %s2599, %s2597
        %s2601 = scalar_lea.vmem %s3, %s2600
      $region52: #{residual_block_forward.6} parent=43 // pred_fallthru
        _
      // Predicated region
      $region53: #{residual_block_forward.6} parent=43 // pred_check
        %p2602 = pneg %p179
      $region54: #{residual_block_forward.6} parent=43 // pred_check_branch
        %2604 = sbr.rel (%p2602) target = $region56
      $region55: #{residual_block_forward.6} parent=43 // pred_region
        %s2605 = smul.u32 %s24, 2
        %s2606 = sadd.s32 %s2605, %s26
        %p2607 = scmp.lt.s32.totalorder %s2606, 3
        %s2608 = scalar_select %p2607, %s2606, 3
        %p2609 = scmp.lt.s32.totalorder %s25, 0
        %s2610 = scalar_select %p2609, %s25, 0
        %s2611 = sadd.s32 %s2610, %s2608
        %s2612 = scalar_lea.vmem %s4, %s2611
      $region56: #{residual_block_forward.6} parent=43 // pred_fallthru
        _
    $region44: #{residual_block_forward.6} parent=5 // pred_fallthru
      _
  $region6: #{residual_block_forward.6} parent=0 // loop_footer
    %s15 = sadd.s32 1, %s11
  $region7: #{residual_block_forward.6} parent=0 // loop_footer_branch
    %10 = sbr.rel target = $region3
  $region8: #{residual_block_forward.6} parent=0 // loop_exit
    _

</llo_original>
